<compile_context>
chip_gen: v7x
topology: tpu7x:2x2x1
jax: 0.10.0
libtpu: 0.0.40
codegen_flags: <defaults>
</compile_context>

<pallas_src>
import numpy as np

import jax
import jax.numpy as jnp
from jax.experimental import pallas as pl
from jax.experimental.pallas import tpu as pltpu


# ---------------------------------------------------------------------------
# Static helpers (plain Python / numpy, depend on hyper-parameters only).
# ---------------------------------------------------------------------------
def _triple(v):
    if isinstance(v, (tuple, list)):
        assert len(v) == 3, v
        return tuple(int(i) for i in v)
    return (int(v),) * 3


def _out_size(size, k, s, p):
    return (size + 2 * p - k) // s + 1


def _round_up(x, m):
    return (x + m - 1) // m * m


def _build_unfold_matrix(spatial, kernel, stride, padding):
    """One-hot matrix M (S, K*L): col[k, l] = sum_s plane[s] * M[s, k*L + l],
    reproducing unfoldNd (3-D im2col, zero padding) on a single channel plane."""
    D, H, W = spatial
    kd, kh, kw = kernel
    sd, sh, sw = stride
    pd, ph, pw = padding
    Do = _out_size(D, kd, sd, pd)
    Ho = _out_size(H, kh, sh, ph)
    Wo = _out_size(W, kw, sw, pw)
    S, K, L = D * H * W, kd * kh * kw, Do * Ho * Wo
    M = np.zeros((S, K, L), dtype=np.float32)
    for od in range(Do):
        for oh in range(Ho):
            for ow in range(Wo):
                l = (od * Ho + oh) * Wo + ow
                for a in range(kd):
                    for b in range(kh):
                        for c in range(kw):
                            k = (a * kh + b) * kw + c
                            zd = od * sd + a - pd
                            zh = oh * sh + b - ph
                            zw = ow * sw + c - pw
                            if 0 <= zd < D and 0 <= zh < H and 0 <= zw < W:
                                M[(zd * H + zh) * W + zw, k, l] = 1.0
    return M.reshape(S, K * L), (Do, Ho, Wo), K, L


def _build_avgpool_matrix(spatial, kernel, stride, padding):
    """Matrix P (S, Do*Ho*Wo) reproducing AvgPool3d (count_include_pad=True)."""
    D, H, W = spatial
    kd, kh, kw = kernel
    sd, sh, sw = stride
    pd, ph, pw = padding
    Do = _out_size(D, kd, sd, pd)
    Ho = _out_size(H, kh, sh, ph)
    Wo = _out_size(W, kw, sw, pw)
    S, P = D * H * W, Do * Ho * Wo
    inv = 1.0 / float(kd * kh * kw)
    M = np.zeros((S, P), dtype=np.float32)
    for od in range(Do):
        for oh in range(Ho):
            for ow in range(Wo):
                p = (od * Ho + oh) * Wo + ow
                for a in range(kd):
                    for b in range(kh):
                        for c in range(kw):
                            zd = od * sd + a - pd
                            zh = oh * sh + b - ph
                            zw = ow * sw + c - pw
                            if 0 <= zd < D and 0 <= zh < H and 0 <= zw < W:
                                M[(zd * H + zh) * W + zw, p] += inv
    return M, (Do, Ho, Wo)


# ---------------------------------------------------------------------------
# Pallas kernel: tiled GEMM   out2d = x2d @ Wmat
# ---------------------------------------------------------------------------
def _inception_matmul_kernel(x_ref, w_ref, o_ref):
    # x_ref: (TM, S)   w_ref: (S, TN)   o_ref: (TM, TN)
    o_ref[...] = jnp.dot(
        x_ref[...],
        w_ref[...],
        preferred_element_type=jnp.float32,
        precision=jax.lax.Precision.HIGHEST,  # exact gather/pool semantics
    ).astype(o_ref.dtype)


# Per-tile caps: 2 buffers * (x + W + out) tiles stay far below the smallest
# per-TensorCore VMEM of the three generations (v7x: 64 MiB physical).
_TM_MAX = 256   # rows per tile       (multiple of 8  -> sublane aligned)
_TN_MAX = 512   # out columns per tile (multiple of 128 -> lane-dense stores)


def _pallas_matmul(x2d, wmat):
    """out2d = x2d @ wmat via a tiled Pallas TPU kernel.

    x2d: (M, S) float32 with M % 8 == 0, wmat: (S, N) float32.
    Returns (M, N) float32."""
    M, S = x2d.shape
    S2, N = wmat.shape
    assert S == S2 and M % 8 == 0

    tm = M if M <= _TM_MAX else _TM_MAX
    tn = _round_up(N, 128) if N <= _TN_MAX else _TN_MAX
    m_pad = _round_up(M, tm)
    n_pad = _round_up(N, tn)
    s_pad = _round_up(S, 128)

    xp = jnp.pad(x2d, ((0, m_pad - M), (0, s_pad - S)))
    wp = jnp.pad(wmat, ((0, s_pad - S), (0, n_pad - N)))

    grid = (m_pad // tm, n_pad // tn)
    flops = 2 * m_pad * s_pad * n_pad
    bytes_accessed = 4 * (m_pad * s_pad * grid[1]      # x read per column tile
                          + s_pad * n_pad * grid[0]    # W read per row tile
                          + m_pad * n_pad)             # output written once

    out = pl.pallas_call(
        _inception_matmul_kernel,
        out_shape=jax.ShapeDtypeStruct((m_pad, n_pad), jnp.float32),
        grid_spec=pltpu.PrefetchScalarGridSpec(
            num_scalar_prefetch=0,
            grid=grid,
            in_specs=[
                pl.BlockSpec((tm, s_pad), lambda i, j: (i, 0)),
                pl.BlockSpec((s_pad, tn), lambda i, j: (0, j)),
            ],
            out_specs=pl.BlockSpec((tm, tn), lambda i, j: (i, j)),
        ),
        compiler_params=pltpu.CompilerParams(
            dimension_semantics=("parallel", "parallel"),
            vmem_limit_bytes=64 * 1024 * 1024,
        ),
        cost_estimate=pl.CostEstimate(
            flops=flops, transcendentals=0, bytes_accessed=bytes_accessed),
    )(xp, wp)
    return out[:M, :N]


# ---------------------------------------------------------------------------
# Forward wrapper (matches Inception.forward semantics)
# ---------------------------------------------------------------------------
def inception_forward(x, unfold1, pool, unfold2):
    """x: (B, C, D, H, W) float32.
    unfold1/pool/unfold2: (kernel_size, stride, padding), ints or 3-tuples."""
    B, C, D, H, W = x.shape
    k1, s1, p1 = _triple(unfold1[0]), _triple(unfold1[1]), _triple(unfold1[2])
    kp, sp, pp = _triple(pool[0]), _triple(pool[1]), _triple(pool[2])
    k2, s2, p2 = _triple(unfold2[0]), _triple(unfold2[1]), _triple(unfold2[2])

    # Static gather / average matrices (built once per hyper-parameter set).
    w1, _, K1, L1 = _build_unfold_matrix((D, H, W), k1, s1, p1)        # (S, K1*L1)
    pmat, pooled_shape = _build_avgpool_matrix((D, H, W), kp, sp, pp)  # (S, P)
    sel2, _, K2, L2 = _build_unfold_matrix(pooled_shape, k2, s2, p2)   # (P, K2*L2)
    if L1 != L2:
        raise ValueError(
            f"unfold1 and pool+unfold2 give different column counts "
            f"({L1} vs {L2}); torch.cat along dim=1 would fail.")
    w2 = pmat @ sel2                                                   # (S, K2*L2)
    wmat = jnp.asarray(np.concatenate([w1, w2], axis=1))               # (S, N1+N2)

    S = D * H * W
    N1, N2 = K1 * L1, K2 * L2

    # Fold (B, C) into the GEMM row dimension (batches the per-channel work
    # into one MXU-friendly matmul); pad channels to a sublane multiple.
    c_pad = _round_up(C, 8)
    x2d = jnp.pad(x.reshape(B, C, S).astype(jnp.float32),
                  ((0, 0), (0, c_pad - C), (0, 0)))
    x2d = x2d.reshape(B * c_pad, S)

    out2d = _pallas_matmul(x2d, wmat)                                  # (B*c_pad, N1+N2)
    out = out2d.reshape(B, c_pad, N1 + N2)[:, :C, :]

    # Pure-layout epilogue (XLA): (B, C, K*L) -> (B, C*K, L), then concat.
    x1 = out[:, :, :N1].reshape(B, C * K1, L1)
    x2 = out[:, :, N1:].reshape(B, C * K2, L2)
    return jnp.concatenate([x1, x2], axis=1)


# ---------------------------------------------------------------------------
# Independent pure-JAX reference (for correctness checking)
# ---------------------------------------------------------------------------
def _unfold3d_ref(x, kernel, stride, padding):
    kd, kh, kw = kernel
    sd, sh, sw = stride
    pd, ph, pw = padding
    xp = jnp.pad(x, ((0, 0), (0, 0), (pd, pd), (ph, ph), (pw, pw)))
    B, C, D, H, W = xp.shape
    Do = (D - kd) // sd + 1
    Ho = (H - kh) // sh + 1
    Wo = (W - kw) // sw + 1
    cols = []
    for a in range(kd):
        for b in range(kh):
            for c in range(kw):
                patch = xp[:, :, a:a + sd * (Do - 1) + 1:sd,
                           b:b + sh * (Ho - 1) + 1:sh,
                           c:c + sw * (Wo - 1) + 1:sw]
                cols.append(patch.reshape(B, C, 1, Do * Ho * Wo))
    col = jnp.concatenate(cols, axis=2)                 # (B, C, K, L)
    return col.reshape(B, C * kd * kh * kw, Do * Ho * Wo)


def _avgpool3d_ref(x, kernel, stride, padding):
    kd, kh, kw = kernel
    sd, sh, sw = stride
    pd, ph, pw = padding
    xp = jnp.pad(x, ((0, 0), (0, 0), (pd, pd), (ph, ph), (pw, pw)))
    summed = jax.lax.reduce_window(xp, 0.0, jax.lax.add,
                                   (1, 1, kd, kh, kw), (1, 1, sd, sh, sw),
                                   "VALID")
    return summed / float(kd * kh * kw)                 # count_include_pad=True


def inception_reference(x, unfold1, pool, unfold2):
    k1, s1, p1 = map(_triple, unfold1)
    kp, sp, pp = map(_triple, pool)
    k2, s2, p2 = map(_triple, unfold2)
    x1 = _unfold3d_ref(x, k1, s1, p1)
    x2 = _unfold3d_ref(_avgpool3d_ref(x, kp, sp, pp), k2, s2, p2)
    return jnp.concatenate([x1, x2], axis=1)


if __name__ == "__main__":
    key = jax.random.PRNGKey(0)
    B, C, D, H, W = 2, 4, 8, 8, 8
    unfold1 = (2, 2, 0)   # (kernel, stride, padding)
    pool = (2, 2, 0)
    unfold2 = (1, 1, 0)

    x = jax.random.normal(key, (B, C, D, H, W), dtype=jnp.float32)

    out = inception_forward(x, unfold1, pool, unfold2)
    out = jax.block_until_ready(out)

    ref = inception_reference(x, unfold1, pool, unfold2)
    assert out.shape == ref.shape == (B, C * 8 + C * 1, 64), out.shape
    err = float(jnp.max(jnp.abs(out - ref)))
    assert err < 1e-3, f"mismatch vs reference: max |err| = {err}"

    print("KERNEL_OK")
</pallas_src>

<mosaic_0001>
module attributes {stable_mosaic.version = 11 : i64} {
  func.func @_inception_matmul_kernel(%arg0: i32, %arg1: i32, %arg2: memref<16x512xf32, #tpu.memory_space<vmem>>, %arg3: memref<512x512xf32, #tpu.memory_space<vmem>>, %arg4: memref<16x512xf32, #tpu.memory_space<vmem>>) attributes {dimension_semantics = [#tpu.dimension_semantics<parallel>, #tpu.dimension_semantics<parallel>], iteration_bounds = array<i64: 1, 2>, scalar_prefetch = 0 : i64, scratch_operands = 0 : i64, tpu.core_type = #tpu.core_type<tc>, window_params = [{transform_indices = @transform_0, window_bounds = array<i64: 16, 512>}, {transform_indices = @transform_1, window_bounds = array<i64: 512, 512>}, {transform_indices = @transform_2, window_bounds = array<i64: 16, 512>}]} {
    %c0 = arith.constant 0 : index
    %c0_0 = arith.constant 0 : index
    %0 = vector.load %arg2[%c0, %c0_0] : memref<16x512xf32, #tpu.memory_space<vmem>>, vector<16x512xf32>
    %c0_1 = arith.constant 0 : index
    %c0_2 = arith.constant 0 : index
    %1 = vector.load %arg3[%c0_1, %c0_2] : memref<512x512xf32, #tpu.memory_space<vmem>>, vector<512x512xf32>
    %cst = arith.constant dense<0.000000e+00> : vector<16x512xf32>
    %2 = tpu.matmul %0, %1, %cst {dimension_numbers = #tpu.dot_dimension_numbers<[1], [0], [0], [1], [0, 0, 1, 1], [], []>, precision = #tpu.contract_precision<fp32>} : vector<16x512xf32>, vector<512x512xf32>, vector<16x512xf32> -> vector<16x512xf32>
    %c0_3 = arith.constant 0 : index
    %c0_4 = arith.constant 0 : index
    %3 = vector.load %arg4[%c0_3, %c0_4] : memref<16x512xf32, #tpu.memory_space<vmem>>, vector<16x512xf32>
    tpu.vector_store %arg4[%c0_3, %c0_4], %2 {strides = array<i32>} : memref<16x512xf32, #tpu.memory_space<vmem>>, vector<16x512xf32>,
    return
  }
  func.func @transform_0(%arg0: i32, %arg1: i32) -> (i32, i32) {
    %c0_i32 = arith.constant 0 : i32
    %c0_i32_0 = arith.constant 0 : i32
    return %arg0, %c0_i32 : i32, i32
  }
  func.func @transform_1(%arg0: i32, %arg1: i32) -> (i32, i32) {
    %c0_i32 = arith.constant 0 : i32
    %c0_i32_0 = arith.constant 0 : i32
    return %c0_i32, %arg1 : i32, i32
  }
  func.func @transform_2(%arg0: i32, %arg1: i32) -> (i32, i32) {
    %c0_i32 = arith.constant 0 : i32
    return %arg0, %arg1 : i32, i32
  }
}

</mosaic_0001>

<llo_original>
// kernel: tpu_custom_call.1
$region0: #{tpu_custom_call.1}
  #allocation0 [shape = 'u32[]', space=smem, size = 0x4, offset = 0x4, fixed_abs, tag = 'smem constant byte address 0x4 - core index']
  #allocation1 [shape = 'u32[144,128]{1,0:T(1,128)}', space=vmem, size = 0x12000, scoped, tag = 'internal scratch']
  %s0 = inlined_call_operand.hbm [shape: f32[16,512], index: 0, kind: input, shape index: {}]
  %s1 = inlined_call_operand.hbm [shape: f32[512,1024], index: 1, kind: input, shape index: {}]
  %s2 = inlined_call_operand.hbm [shape: f32[16,1024], index: 2, kind: output, shape index: {}]
  %s3 = sld [smem:[#allocation0]]
  $region49: #{tpu_custom_call.1} parent=0
    _
  %s5 = ssub.s32 1, %s3
  %s6 = scalar_select 0, %s5, %s3
  $region1: #{tpu_custom_call.1} parent=0
    #allocation2 [shape = 'u8[32768]{0}', space=vmem, size = 0x8000, scoped, tag = 'input window, operand 0, single buffered']
    #allocation3 [shape = 's32[2]{0}', space=sflag, size = 0x8, scoped, tag = 'scoped memory for tpu_custom_call.1']
    #allocation4 [shape = 's32[2]{0}', space=sflag, size = 0x8, scoped, tag = 'scoped memory for tpu_custom_call.1']
    #allocation5 [shape = 'u8[2097152]{0}', space=vmem, size = 0x200000, scoped, tag = 'input window, operand 1']
    #allocation6 [shape = 's32[2]{0}', space=sflag, size = 0x8, scoped, tag = 'scoped memory for tpu_custom_call.1']
    #allocation7 [shape = 'u8[65536]{0}', space=vmem, size = 0x10000, scoped, tag = 'output window, operand 0']
    %7 = vsyncpa [#allocation3], 0
    %8 = vsyncpa [#allocation6], 0
    %s9 = scalar_lea.sflag [#allocation6], 1
    %10 = vsyncpa %s9, 0
    %11 = vsyncpa [#allocation4], 0
    %s12 = scalar_lea.sflag [#allocation4], 1
    %13 = vsyncpa %s12, 0
    loop: start=0, step=1, limit=4
    $region2: #{tpu_custom_call.1} parent=1 // loop_pre_header
      _
    $region3: #{tpu_custom_call.1} parent=1 // loop_header
      %s15 = sphi 0, %s19
      %p16 = scmp.ge.s32.totalorder %s15, 4
      %s22 = sphi 0, %s34
      %s23 = sphi 0, %s30
      %s24 = sphi 0, %s22
      %s25 = sphi 0, %s23
      %s26 = sphi 0, %s24
      %s27 = sphi 0, %s25
      %s37 = sphi 0, %s39
      %s40 = sphi 0, %s37
      %s41 = sphi 0, %s40
      %s57 = sphi 0, %s41
      %s63 = sphi 0, %s65
      %s66 = sphi 0, %s63
      %s67 = sphi 0, %s66
      %s83 = sphi 0, %s67
      %s91 = sphi 0, %s93
      %s94 = sphi 0, %s91
      %s95 = sphi 0, %s94
      %s111 = sphi 0, %s95
    $region4: #{tpu_custom_call.1} parent=1 // loop_header_branch
      %18 = sbr.rel (%p16) target = $region8
    $region5: #{tpu_custom_call.1} parent=1 // loop_body
      %s20 = ssub.s32 %s15, 1
      %s21 = ssub.s32 %s15, 2
      %s28 = sadd.s32 1, %s23
      %p29 = scmp.ge.s32.totalorder %s28, 2
      %s30 = scalar_select %p29, 0, %s28
      %s31 = sadd.s32 1, %s22
      %s32 = scalar_select %p29, %s31, %s22
      %p33 = scmp.ge.s32.totalorder %s32, 1
      %s34 = scalar_select %p33, 0, %s32
      %s35 = ssub.s32 %s22, %s34
      %p36 = scmp.eq.s32.totalorder %s35, 0
      %s38 = sadd.s32 %s37, 1
      %s39 = scalar_select %p36, %s37, %s38
      %p42 = pneg %p36
      %p43 = scmp.eq.s32.totalorder %s15, 1
      %p44 = por %p42, %p43
      %p45 = scmp.ne.s32.totalorder %s37, %s40
      %p46 = scmp.eq.s32.totalorder %s15, 0
      %p47 = por %p45, %p46
      %p48 = scmp.ne.s32.totalorder %s37, %s40
      %p49 = scmp.eq.s32.totalorder %s20, 1
      %p50 = por %p48, %p49
      %p51 = scmp.ne.s32.totalorder %s40, %s41
      %p52 = scmp.eq.s32.totalorder %s20, 0
      %p53 = por %p51, %p52
      %p54 = scmp.ne.s32.totalorder %s40, %s41
      %p55 = scmp.eq.s32.totalorder %s21, 1
      %p56 = por %p54, %p55
      %p58 = scmp.ne.s32.totalorder %s41, %s57
      %p59 = scmp.eq.s32.totalorder %s21, 0
      %p60 = por %p58, %p59
      %s61 = ssub.s32 %s23, %s30
      %p62 = scmp.eq.s32.totalorder %s61, 0
      %s64 = sadd.s32 %s63, 1
      %s65 = scalar_select %p62, %s63, %s64
      %p68 = pneg %p62
      %p69 = scmp.eq.s32.totalorder %s15, 1
      %p70 = por %p68, %p69
      %p71 = scmp.ne.s32.totalorder %s63, %s66
      %p72 = scmp.eq.s32.totalorder %s15, 0
      %p73 = por %p71, %p72
      %p74 = scmp.ne.s32.totalorder %s63, %s66
      %p75 = scmp.eq.s32.totalorder %s20, 1
      %p76 = por %p74, %p75
      %p77 = scmp.ne.s32.totalorder %s66, %s67
      %p78 = scmp.eq.s32.totalorder %s20, 0
      %p79 = por %p77, %p78
      %p80 = scmp.ne.s32.totalorder %s66, %s67
      %p81 = scmp.eq.s32.totalorder %s21, 1
      %p82 = por %p80, %p81
      %p84 = scmp.ne.s32.totalorder %s67, %s83
      %p85 = scmp.eq.s32.totalorder %s21, 0
      %p86 = por %p84, %p85
      %s87 = ssub.s32 %s22, %s34
      %s88 = ssub.s32 %s23, %s30
      %s89 = sor.u32 %s87, %s88
      %p90 = scmp.eq.s32.totalorder %s89, 0
      %s92 = sadd.s32 %s91, 1
      %s93 = scalar_select %p90, %s91, %s92
      %p96 = pneg %p90
      %p97 = scmp.eq.s32.totalorder %s15, 1
      %p98 = por %p96, %p97
      %p99 = scmp.ne.s32.totalorder %s91, %s94
      %p100 = scmp.eq.s32.totalorder %s15, 0
      %p101 = por %p99, %p100
      %p102 = scmp.ne.s32.totalorder %s91, %s94
      %p103 = scmp.eq.s32.totalorder %s20, 1
      %p104 = por %p102, %p103
      %p105 = scmp.ne.s32.totalorder %s94, %s95
      %p106 = scmp.eq.s32.totalorder %s20, 0
      %p107 = por %p105, %p106
      %p108 = scmp.ne.s32.totalorder %s94, %s95
      %p109 = scmp.eq.s32.totalorder %s21, 1
      %p110 = por %p108, %p109
      %p112 = scmp.ne.s32.totalorder %s95, %s111
      %p113 = scmp.eq.s32.totalorder %s21, 0
      %p114 = por %p112, %p113
      %p115 = scmp.le.s32.totalorder 1, %s15
      %p116 = scmp.lt.s32.totalorder %s15, 3
      %p117 = pnand %p115, %p116
      %p118 = pneg %p117
      // Predicated region
      $region9: #{tpu_custom_call.1} parent=5 // pred_check
        _
      $region10: #{tpu_custom_call.1} parent=5 // pred_check_branch
        %120 = sbr.rel (%p117) target = $region12
      $region11: #{tpu_custom_call.1} parent=5 // pred_region
        %s121 = ssub.s32 %s15, 1
        // Predicated region
        $region13: #{tpu_custom_call.1} parent=11 // pred_check
          %p122 = pneg %p53
        $region14: #{tpu_custom_call.1} parent=11 // pred_check_branch
          %124 = sbr.rel (%p122) target = $region16
        $region15: #{tpu_custom_call.1} parent=11 // pred_region
          %s125 = smul.u32 2, %s24
          %s127 = ssub.s32 1024, 1024
          %128 = vsyncadd [#allocation3], %s127
          %s129 = smul.addr %s125, 4
          %s130 = smul.addr %s129, 128
          %s131 = scalar_lea.hbm %s0, %s130
          %s132 = sshll.u32 [#allocation2], 4
          %s133 = int_to_ptr.vmem [resolvable:$true] %s132
          %138 = dma.hbm_to_vmem [thread:$0]  %s131, 1024, %s133, [#allocation3], 512, 512, 32
        $region16: #{tpu_custom_call.1} parent=11 // pred_fallthru
          _
      $region12: #{tpu_custom_call.1} parent=5 // pred_fallthru
        _
      %p139 = scmp.lt.s32.totalorder %s15, 2
      // Predicated region
      $region17: #{tpu_custom_call.1} parent=5 // pred_check
        %p140 = pneg %p139
      $region18: #{tpu_custom_call.1} parent=5 // pred_check_branch
        %142 = sbr.rel (%p140) target = $region20
      $region19: #{tpu_custom_call.1} parent=5 // pred_region
        // Predicated region
        $region21: #{tpu_custom_call.1} parent=19 // pred_check
          %p143 = pneg %p73
        $region22: #{tpu_custom_call.1} parent=19 // pred_check_branch
          %145 = sbr.rel (%p143) target = $region24
        $region23: #{tpu_custom_call.1} parent=19 // pred_region
          %s146 = sand.u32 %s63, 1
          %s147 = scalar_lea.sflag [#allocation6], %s146
          %s148 = sand.u32 %s63, 1
          %s149 = smul.addr %s148, 2048
          %s150 = scalar_lea.vmem [#allocation5], %s149
          %s151 = smul.u32 4, %s23
          %s153 = ssub.s32 32768, 32768
          %154 = vsyncadd %s147, %s153
          %s155 = smul.addr %s151, 128
          %s156 = scalar_lea.hbm %s1, %s155
          %s157 = sshll.u32 %s150, 4
          %s158 = int_to_ptr.vmem [resolvable:$true] %s157
          %163 = dma.hbm_to_vmem [thread:$0]  %s156, 32768, %s158, %s147, 1024, 512, 32
        $region24: #{tpu_custom_call.1} parent=19 // pred_fallthru
          _
      $region20: #{tpu_custom_call.1} parent=5 // pred_fallthru
        _
      %p164 = scmp.le.s32.totalorder 1, %s15
      %p165 = scmp.lt.s32.totalorder %s15, 3
      %p166 = pnand %p164, %p165
      %p167 = pneg %p166
      // Predicated region
      $region25: #{tpu_custom_call.1} parent=5 // pred_check
        _
      $region26: #{tpu_custom_call.1} parent=5 // pred_check_branch
        %169 = sbr.rel (%p166) target = $region28
      $region27: #{tpu_custom_call.1} parent=5 // pred_region
        %s170 = ssub.s32 %s15, 1
        // Predicated region
        $region29: #{tpu_custom_call.1} parent=27 // pred_check
          %p171 = pneg %p53
        $region30: #{tpu_custom_call.1} parent=27 // pred_check_branch
          %173 = sbr.rel (%p171) target = $region32
        $region31: #{tpu_custom_call.1} parent=27 // pred_region
          %174 = dma.done [#allocation3], 1024
        $region32: #{tpu_custom_call.1} parent=27 // pred_fallthru
          _
        %s175 = sand.u32 %s66, 1
        %s176 = scalar_lea.sflag [#allocation6], %s175
        %s177 = sand.u32 %s66, 1
        %s178 = smul.addr %s177, 2048
        %s179 = scalar_lea.vmem [#allocation5], %s178
        // Predicated region
        $region33: #{tpu_custom_call.1} parent=27 // pred_check
          %p180 = pneg %p79
        $region34: #{tpu_custom_call.1} parent=27 // pred_check_branch
          %182 = sbr.rel (%p180) target = $region36
        $region35: #{tpu_custom_call.1} parent=27 // pred_region
          %183 = dma.done %s176, 32768
        $region36: #{tpu_custom_call.1} parent=27 // pred_fallthru
          _
        %p184 = pneg %p53
        %p185 = pneg %p50
        %s186 = sand.u32 %s66, 1
        %s187 = scalar_lea.sflag [#allocation6], %s186
        %s188 = sand.u32 %s66, 1
        %s189 = smul.addr %s188, 2048
        %s190 = scalar_lea.vmem [#allocation5], %s189
        %p191 = pneg %p79
        %p192 = pneg %p76
        %p193 = pneg %p107
        %p194 = pneg %p104
        %s195 = sand.u32 %s94, 1
        %s196 = scalar_lea.sflag [#allocation4], %s195
        %s197 = sand.u32 %s94, 1
        %s198 = smul.addr %s197, 64
        %s199 = scalar_lea.vmem [#allocation7], %s198
        %s200 = smul.u32 2, %s24
        %s201 = smul.u32 4, %s25
        %s202 = smul.u32 2, %s24
        %s203 = smul.u32 4, %s25
        %v204 = vld [vmem:[#allocation2] sm:$0xff]
        %v205 = vld [vmem:[#allocation2 + $0x8] sm:$0xff]
        %v206 = vld [vmem:[#allocation2 + $0x10] sm:$0xff]
        %v207 = vld [vmem:[#allocation2 + $0x18] sm:$0xff]
        %v208 = vld [vmem:[#allocation2 + $0x20] sm:$0xff]
        %v209 = vld [vmem:[#allocation2 + $0x28] sm:$0xff]
        %v210 = vld [vmem:[#allocation2 + $0x30] sm:$0xff]
        %v211 = vld [vmem:[#allocation2 + $0x38] sm:$0xff]
        %v212 = vld [vmem:[%s179] sm:$0xff]
        %v213 = vld [vmem:[%s179 + $0x8] sm:$0xff]
        %v214 = vld [vmem:[%s179 + $0x10] sm:$0xff]
        %v215 = vld [vmem:[%s179 + $0x18] sm:$0xff]
        %v216 = vld [vmem:[%s179 + $0x20] sm:$0xff]
        %v217 = vld [vmem:[%s179 + $0x28] sm:$0xff]
        %v218 = vld [vmem:[%s179 + $0x30] sm:$0xff]
        %v219 = vld [vmem:[%s179 + $0x38] sm:$0xff]
        %v220 = vld [vmem:[%s179 + $0x40] sm:$0xff]
        %v221 = vld [vmem:[%s179 + $0x48] sm:$0xff]
        %v222 = vld [vmem:[%s179 + $0x50] sm:$0xff]
        %v223 = vld [vmem:[%s179 + $0x58] sm:$0xff]
        %v224 = vld [vmem:[%s179 + $0x60] sm:$0xff]
        %v225 = vld [vmem:[%s179 + $0x68] sm:$0xff]
        %v226 = vld [vmem:[%s179 + $0x70] sm:$0xff]
        %v227 = vld [vmem:[%s179 + $0x78] sm:$0xff]
        %v228 = vld [vmem:[%s179 + $0x80] sm:$0xff]
        %v229 = vld [vmem:[%s179 + $0x88] sm:$0xff]
        %v230 = vld [vmem:[%s179 + $0x90] sm:$0xff]
        %v231 = vld [vmem:[%s179 + $0x98] sm:$0xff]
        %v232 = vld [vmem:[%s179 + $0xa0] sm:$0xff]
        %v233 = vld [vmem:[%s179 + $0xa8] sm:$0xff]
        %v234 = vld [vmem:[%s179 + $0xb0] sm:$0xff]
        %v235 = vld [vmem:[%s179 + $0xb8] sm:$0xff]
        %v236 = vld [vmem:[%s179 + $0xc0] sm:$0xff]
        %v237 = vld [vmem:[%s179 + $0xc8] sm:$0xff]
        %v238 = vld [vmem:[%s179 + $0xd0] sm:$0xff]
        %v239 = vld [vmem:[%s179 + $0xd8] sm:$0xff]
        %v240 = vld [vmem:[%s179 + $0xe0] sm:$0xff]
        %v241 = vld [vmem:[%s179 + $0xe8] sm:$0xff]
        %v242 = vld [vmem:[%s179 + $0xf0] sm:$0xff]
        %v243 = vld [vmem:[%s179 + $0xf8] sm:$0xff]
        %v244 = vld [vmem:[%s179 + $0x100] sm:$0xff]
        %v245 = vld [vmem:[%s179 + $0x108] sm:$0xff]
        %v246 = vld [vmem:[%s179 + $0x110] sm:$0xff]
        %v247 = vld [vmem:[%s179 + $0x118] sm:$0xff]
        %v248 = vld [vmem:[%s179 + $0x120] sm:$0xff]
        %v249 = vld [vmem:[%s179 + $0x128] sm:$0xff]
        %v250 = vld [vmem:[%s179 + $0x130] sm:$0xff]
        %v251 = vld [vmem:[%s179 + $0x138] sm:$0xff]
        %v252 = vld [vmem:[%s179 + $0x140] sm:$0xff]
        %v253 = vld [vmem:[%s179 + $0x148] sm:$0xff]
        %v254 = vld [vmem:[%s179 + $0x150] sm:$0xff]
        %v255 = vld [vmem:[%s179 + $0x158] sm:$0xff]
        %v256 = vld [vmem:[%s179 + $0x160] sm:$0xff]
        %v257 = vld [vmem:[%s179 + $0x168] sm:$0xff]
        %v258 = vld [vmem:[%s179 + $0x170] sm:$0xff]
        %v259 = vld [vmem:[%s179 + $0x178] sm:$0xff]
        %v260 = vld [vmem:[%s179 + $0x180] sm:$0xff]
        %v261 = vld [vmem:[%s179 + $0x188] sm:$0xff]
        %v262 = vld [vmem:[%s179 + $0x190] sm:$0xff]
        %v263 = vld [vmem:[%s179 + $0x198] sm:$0xff]
        %v264 = vld [vmem:[%s179 + $0x1a0] sm:$0xff]
        %v265 = vld [vmem:[%s179 + $0x1a8] sm:$0xff]
        %v266 = vld [vmem:[%s179 + $0x1b0] sm:$0xff]
        %v267 = vld [vmem:[%s179 + $0x1b8] sm:$0xff]
        %v268 = vld [vmem:[%s179 + $0x1c0] sm:$0xff]
        %v269 = vld [vmem:[%s179 + $0x1c8] sm:$0xff]
        %v270 = vld [vmem:[%s179 + $0x1d0] sm:$0xff]
        %v271 = vld [vmem:[%s179 + $0x1d8] sm:$0xff]
        %v272 = vld [vmem:[%s179 + $0x1e0] sm:$0xff]
        %v273 = vld [vmem:[%s179 + $0x1e8] sm:$0xff]
        %v274 = vld [vmem:[%s179 + $0x1f0] sm:$0xff]
        %v275 = vld [vmem:[%s179 + $0x1f8] sm:$0xff]
        %v276 = vld [vmem:[%s179 + $0x200] sm:$0xff]
        %v277 = vld [vmem:[%s179 + $0x208] sm:$0xff]
        %v278 = vld [vmem:[%s179 + $0x210] sm:$0xff]
        %v279 = vld [vmem:[%s179 + $0x218] sm:$0xff]
        %v280 = vld [vmem:[%s179 + $0x220] sm:$0xff]
        %v281 = vld [vmem:[%s179 + $0x228] sm:$0xff]
        %v282 = vld [vmem:[%s179 + $0x230] sm:$0xff]
        %v283 = vld [vmem:[%s179 + $0x238] sm:$0xff]
        %v284 = vld [vmem:[%s179 + $0x240] sm:$0xff]
        %v285 = vld [vmem:[%s179 + $0x248] sm:$0xff]
        %v286 = vld [vmem:[%s179 + $0x250] sm:$0xff]
        %v287 = vld [vmem:[%s179 + $0x258] sm:$0xff]
        %v288 = vld [vmem:[%s179 + $0x260] sm:$0xff]
        %v289 = vld [vmem:[%s179 + $0x268] sm:$0xff]
        %v290 = vld [vmem:[%s179 + $0x270] sm:$0xff]
        %v291 = vld [vmem:[%s179 + $0x278] sm:$0xff]
        %v292 = vld [vmem:[%s179 + $0x280] sm:$0xff]
        %v293 = vld [vmem:[%s179 + $0x288] sm:$0xff]
        %v294 = vld [vmem:[%s179 + $0x290] sm:$0xff]
        %v295 = vld [vmem:[%s179 + $0x298] sm:$0xff]
        %v296 = vld [vmem:[%s179 + $0x2a0] sm:$0xff]
        %v297 = vld [vmem:[%s179 + $0x2a8] sm:$0xff]
        %v298 = vld [vmem:[%s179 + $0x2b0] sm:$0xff]
        %v299 = vld [vmem:[%s179 + $0x2b8] sm:$0xff]
        %v300 = vld [vmem:[%s179 + $0x2c0] sm:$0xff]
        %v301 = vld [vmem:[%s179 + $0x2c8] sm:$0xff]
        %v302 = vld [vmem:[%s179 + $0x2d0] sm:$0xff]
        %v303 = vld [vmem:[%s179 + $0x2d8] sm:$0xff]
        %v304 = vld [vmem:[%s179 + $0x2e0] sm:$0xff]
        %v305 = vld [vmem:[%s179 + $0x2e8] sm:$0xff]
        %v306 = vld [vmem:[%s179 + $0x2f0] sm:$0xff]
        %v307 = vld [vmem:[%s179 + $0x2f8] sm:$0xff]
        %v308 = vld [vmem:[%s179 + $0x300] sm:$0xff]
        %v309 = vld [vmem:[%s179 + $0x308] sm:$0xff]
        %v310 = vld [vmem:[%s179 + $0x310] sm:$0xff]
        %v311 = vld [vmem:[%s179 + $0x318] sm:$0xff]
        %v312 = vld [vmem:[%s179 + $0x320] sm:$0xff]
        %v313 = vld [vmem:[%s179 + $0x328] sm:$0xff]
        %v314 = vld [vmem:[%s179 + $0x330] sm:$0xff]
        %v315 = vld [vmem:[%s179 + $0x338] sm:$0xff]
        %v316 = vld [vmem:[%s179 + $0x340] sm:$0xff]
        %v317 = vld [vmem:[%s179 + $0x348] sm:$0xff]
        %v318 = vld [vmem:[%s179 + $0x350] sm:$0xff]
        %v319 = vld [vmem:[%s179 + $0x358] sm:$0xff]
        %v320 = vld [vmem:[%s179 + $0x360] sm:$0xff]
        %v321 = vld [vmem:[%s179 + $0x368] sm:$0xff]
        %v322 = vld [vmem:[%s179 + $0x370] sm:$0xff]
        %v323 = vld [vmem:[%s179 + $0x378] sm:$0xff]
        %v324 = vld [vmem:[%s179 + $0x380] sm:$0xff]
        %v325 = vld [vmem:[%s179 + $0x388] sm:$0xff]
        %v326 = vld [vmem:[%s179 + $0x390] sm:$0xff]
        %v327 = vld [vmem:[%s179 + $0x398] sm:$0xff]
        %v328 = vld [vmem:[%s179 + $0x3a0] sm:$0xff]
        %v329 = vld [vmem:[%s179 + $0x3a8] sm:$0xff]
        %v330 = vld [vmem:[%s179 + $0x3b0] sm:$0xff]
        %v331 = vld [vmem:[%s179 + $0x3b8] sm:$0xff]
        %v332 = vld [vmem:[%s179 + $0x3c0] sm:$0xff]
        %v333 = vld [vmem:[%s179 + $0x3c8] sm:$0xff]
        %v334 = vld [vmem:[%s179 + $0x3d0] sm:$0xff]
        %v335 = vld [vmem:[%s179 + $0x3d8] sm:$0xff]
        %v336 = vld [vmem:[%s179 + $0x3e0] sm:$0xff]
        %v337 = vld [vmem:[%s179 + $0x3e8] sm:$0xff]
        %v338 = vld [vmem:[%s179 + $0x3f0] sm:$0xff]
        %v339 = vld [vmem:[%s179 + $0x3f8] sm:$0xff]
        %v340 = vld [vmem:[%s179 + $0x400] sm:$0xff]
        %v341 = vld [vmem:[%s179 + $0x408] sm:$0xff]
        %v342 = vld [vmem:[%s179 + $0x410] sm:$0xff]
        %v343 = vld [vmem:[%s179 + $0x418] sm:$0xff]
        %v344 = vld [vmem:[%s179 + $0x420] sm:$0xff]
        %v345 = vld [vmem:[%s179 + $0x428] sm:$0xff]
        %v346 = vld [vmem:[%s179 + $0x430] sm:$0xff]
        %v347 = vld [vmem:[%s179 + $0x438] sm:$0xff]
        %v348 = vld [vmem:[%s179 + $0x440] sm:$0xff]
        %v349 = vld [vmem:[%s179 + $0x448] sm:$0xff]
        %v350 = vld [vmem:[%s179 + $0x450] sm:$0xff]
        %v351 = vld [vmem:[%s179 + $0x458] sm:$0xff]
        %v352 = vld [vmem:[%s179 + $0x460] sm:$0xff]
        %v353 = vld [vmem:[%s179 + $0x468] sm:$0xff]
        %v354 = vld [vmem:[%s179 + $0x470] sm:$0xff]
        %v355 = vld [vmem:[%s179 + $0x478] sm:$0xff]
        %v356 = vld [vmem:[%s179 + $0x480] sm:$0xff]
        %v357 = vld [vmem:[%s179 + $0x488] sm:$0xff]
        %v358 = vld [vmem:[%s179 + $0x490] sm:$0xff]
        %v359 = vld [vmem:[%s179 + $0x498] sm:$0xff]
        %v360 = vld [vmem:[%s179 + $0x4a0] sm:$0xff]
        %v361 = vld [vmem:[%s179 + $0x4a8] sm:$0xff]
        %v362 = vld [vmem:[%s179 + $0x4b0] sm:$0xff]
        %v363 = vld [vmem:[%s179 + $0x4b8] sm:$0xff]
        %v364 = vld [vmem:[%s179 + $0x4c0] sm:$0xff]
        %v365 = vld [vmem:[%s179 + $0x4c8] sm:$0xff]
        %v366 = vld [vmem:[%s179 + $0x4d0] sm:$0xff]
        %v367 = vld [vmem:[%s179 + $0x4d8] sm:$0xff]
        %v368 = vld [vmem:[%s179 + $0x4e0] sm:$0xff]
        %v369 = vld [vmem:[%s179 + $0x4e8] sm:$0xff]
        %v370 = vld [vmem:[%s179 + $0x4f0] sm:$0xff]
        %v371 = vld [vmem:[%s179 + $0x4f8] sm:$0xff]
        %v372 = vld [vmem:[%s179 + $0x500] sm:$0xff]
        %v373 = vld [vmem:[%s179 + $0x508] sm:$0xff]
        %v374 = vld [vmem:[%s179 + $0x510] sm:$0xff]
        %v375 = vld [vmem:[%s179 + $0x518] sm:$0xff]
        %v376 = vld [vmem:[%s179 + $0x520] sm:$0xff]
        %v377 = vld [vmem:[%s179 + $0x528] sm:$0xff]
        %v378 = vld [vmem:[%s179 + $0x530] sm:$0xff]
        %v379 = vld [vmem:[%s179 + $0x538] sm:$0xff]
        %v380 = vld [vmem:[%s179 + $0x540] sm:$0xff]
        %v381 = vld [vmem:[%s179 + $0x548] sm:$0xff]
        %v382 = vld [vmem:[%s179 + $0x550] sm:$0xff]
        %v383 = vld [vmem:[%s179 + $0x558] sm:$0xff]
        %v384 = vld [vmem:[%s179 + $0x560] sm:$0xff]
        %v385 = vld [vmem:[%s179 + $0x568] sm:$0xff]
        %v386 = vld [vmem:[%s179 + $0x570] sm:$0xff]
        %v387 = vld [vmem:[%s179 + $0x578] sm:$0xff]
        %v388 = vld [vmem:[%s179 + $0x580] sm:$0xff]
        %v389 = vld [vmem:[%s179 + $0x588] sm:$0xff]
        %v390 = vld [vmem:[%s179 + $0x590] sm:$0xff]
        %v391 = vld [vmem:[%s179 + $0x598] sm:$0xff]
        %v392 = vld [vmem:[%s179 + $0x5a0] sm:$0xff]
        %v393 = vld [vmem:[%s179 + $0x5a8] sm:$0xff]
        %v394 = vld [vmem:[%s179 + $0x5b0] sm:$0xff]
        %v395 = vld [vmem:[%s179 + $0x5b8] sm:$0xff]
        %v396 = vld [vmem:[%s179 + $0x5c0] sm:$0xff]
        %v397 = vld [vmem:[%s179 + $0x5c8] sm:$0xff]
        %v398 = vld [vmem:[%s179 + $0x5d0] sm:$0xff]
        %v399 = vld [vmem:[%s179 + $0x5d8] sm:$0xff]
        %v400 = vld [vmem:[%s179 + $0x5e0] sm:$0xff]
        %v401 = vld [vmem:[%s179 + $0x5e8] sm:$0xff]
        %v402 = vld [vmem:[%s179 + $0x5f0] sm:$0xff]
        %v403 = vld [vmem:[%s179 + $0x5f8] sm:$0xff]
        %v404 = vld [vmem:[%s179 + $0x600] sm:$0xff]
        %v405 = vld [vmem:[%s179 + $0x608] sm:$0xff]
        %v406 = vld [vmem:[%s179 + $0x610] sm:$0xff]
        %v407 = vld [vmem:[%s179 + $0x618] sm:$0xff]
        %v408 = vld [vmem:[%s179 + $0x620] sm:$0xff]
        %v409 = vld [vmem:[%s179 + $0x628] sm:$0xff]
        %v410 = vld [vmem:[%s179 + $0x630] sm:$0xff]
        %v411 = vld [vmem:[%s179 + $0x638] sm:$0xff]
        %v412 = vld [vmem:[%s179 + $0x640] sm:$0xff]
        %v413 = vld [vmem:[%s179 + $0x648] sm:$0xff]
        %v414 = vld [vmem:[%s179 + $0x650] sm:$0xff]
        %v415 = vld [vmem:[%s179 + $0x658] sm:$0xff]
        %v416 = vld [vmem:[%s179 + $0x660] sm:$0xff]
        %v417 = vld [vmem:[%s179 + $0x668] sm:$0xff]
        %v418 = vld [vmem:[%s179 + $0x670] sm:$0xff]
        %v419 = vld [vmem:[%s179 + $0x678] sm:$0xff]
        %v420 = vld [vmem:[%s179 + $0x680] sm:$0xff]
        %v421 = vld [vmem:[%s179 + $0x688] sm:$0xff]
        %v422 = vld [vmem:[%s179 + $0x690] sm:$0xff]
        %v423 = vld [vmem:[%s179 + $0x698] sm:$0xff]
        %v424 = vld [vmem:[%s179 + $0x6a0] sm:$0xff]
        %v425 = vld [vmem:[%s179 + $0x6a8] sm:$0xff]
        %v426 = vld [vmem:[%s179 + $0x6b0] sm:$0xff]
        %v427 = vld [vmem:[%s179 + $0x6b8] sm:$0xff]
        %v428 = vld [vmem:[%s179 + $0x6c0] sm:$0xff]
        %v429 = vld [vmem:[%s179 + $0x6c8] sm:$0xff]
        %v430 = vld [vmem:[%s179 + $0x6d0] sm:$0xff]
        %v431 = vld [vmem:[%s179 + $0x6d8] sm:$0xff]
        %v432 = vld [vmem:[%s179 + $0x6e0] sm:$0xff]
        %v433 = vld [vmem:[%s179 + $0x6e8] sm:$0xff]
        %v434 = vld [vmem:[%s179 + $0x6f0] sm:$0xff]
        %v435 = vld [vmem:[%s179 + $0x6f8] sm:$0xff]
        %v436 = vld [vmem:[%s179 + $0x700] sm:$0xff]
        %v437 = vld [vmem:[%s179 + $0x708] sm:$0xff]
        %v438 = vld [vmem:[%s179 + $0x710] sm:$0xff]
        %v439 = vld [vmem:[%s179 + $0x718] sm:$0xff]
        %v440 = vld [vmem:[%s179 + $0x720] sm:$0xff]
        %v441 = vld [vmem:[%s179 + $0x728] sm:$0xff]
        %v442 = vld [vmem:[%s179 + $0x730] sm:$0xff]
        %v443 = vld [vmem:[%s179 + $0x738] sm:$0xff]
        %v444 = vld [vmem:[%s179 + $0x740] sm:$0xff]
        %v445 = vld [vmem:[%s179 + $0x748] sm:$0xff]
        %v446 = vld [vmem:[%s179 + $0x750] sm:$0xff]
        %v447 = vld [vmem:[%s179 + $0x758] sm:$0xff]
        %v448 = vld [vmem:[%s179 + $0x760] sm:$0xff]
        %v449 = vld [vmem:[%s179 + $0x768] sm:$0xff]
        %v450 = vld [vmem:[%s179 + $0x770] sm:$0xff]
        %v451 = vld [vmem:[%s179 + $0x778] sm:$0xff]
        %v452 = vld [vmem:[%s179 + $0x780] sm:$0xff]
        %v453 = vld [vmem:[%s179 + $0x788] sm:$0xff]
        %v454 = vld [vmem:[%s179 + $0x790] sm:$0xff]
        %v455 = vld [vmem:[%s179 + $0x798] sm:$0xff]
        %v456 = vld [vmem:[%s179 + $0x7a0] sm:$0xff]
        %v457 = vld [vmem:[%s179 + $0x7a8] sm:$0xff]
        %v458 = vld [vmem:[%s179 + $0x7b0] sm:$0xff]
        %v459 = vld [vmem:[%s179 + $0x7b8] sm:$0xff]
        %v460 = vld [vmem:[%s179 + $0x7c0] sm:$0xff]
        %v461 = vld [vmem:[%s179 + $0x7c8] sm:$0xff]
        %v462 = vld [vmem:[%s179 + $0x7d0] sm:$0xff]
        %v463 = vld [vmem:[%s179 + $0x7d8] sm:$0xff]
        %v464 = vld [vmem:[%s179 + $0x7e0] sm:$0xff]
        %v465 = vld [vmem:[%s179 + $0x7e8] sm:$0xff]
        %v466 = vld [vmem:[%s179 + $0x7f0] sm:$0xff]
        %v467 = vld [vmem:[%s179 + $0x7f8] sm:$0xff]
        %v468 = vand.u32 %v213, 4294901760
        %469 = vmatprep.subr.mxu0 %v468
        %v470 = vand.u32 %v212, 4294901760
        %471 = vmatpush1.msra.mxu0 %v470
        %v472 = vand.u32 %v217, 4294901760
        %473 = vmatprep.subr.mxu0 %v472
        %v474 = vand.u32 %v216, 4294901760
        %475 = vmatpush1.msra.mxu0 %v474
        %v476 = vand.u32 %v221, 4294901760
        %477 = vmatprep.subr.mxu0 %v476
        %v478 = vand.u32 %v220, 4294901760
        %479 = vmatpush1.msra.mxu0 %v478
        %v480 = vand.u32 %v225, 4294901760
        %481 = vmatprep.subr.mxu0 %v480
        %v482 = vand.u32 %v224, 4294901760
        %483 = vmatpush1.msra.mxu0 %v482
        %v484 = vand.u32 %v229, 4294901760
        %485 = vmatprep.subr.mxu0 %v484
        %v486 = vand.u32 %v228, 4294901760
        %487 = vmatpush1.msra.mxu0 %v486
        %v488 = vand.u32 %v233, 4294901760
        %489 = vmatprep.subr.mxu0 %v488
        %v490 = vand.u32 %v232, 4294901760
        %491 = vmatpush1.msra.mxu0 %v490
        %v492 = vand.u32 %v237, 4294901760
        %493 = vmatprep.subr.mxu0 %v492
        %v494 = vand.u32 %v236, 4294901760
        %495 = vmatpush1.msra.mxu0 %v494
        %v496 = vand.u32 %v241, 4294901760
        %497 = vmatprep.subr.mxu0 %v496
        %v498 = vand.u32 %v240, 4294901760
        %499 = vmatpush1.msra.mxu0 %v498
        %v500 = vand.u32 %v245, 4294901760
        %501 = vmatprep.subr.mxu0 %v500
        %v502 = vand.u32 %v244, 4294901760
        %503 = vmatpush1.msra.mxu0 %v502
        %v504 = vand.u32 %v249, 4294901760
        %505 = vmatprep.subr.mxu0 %v504
        %v506 = vand.u32 %v248, 4294901760
        %507 = vmatpush1.msra.mxu0 %v506
        %v508 = vand.u32 %v253, 4294901760
        %509 = vmatprep.subr.mxu0 %v508
        %v510 = vand.u32 %v252, 4294901760
        %511 = vmatpush1.msra.mxu0 %v510
        %v512 = vand.u32 %v257, 4294901760
        %513 = vmatprep.subr.mxu0 %v512
        %v514 = vand.u32 %v256, 4294901760
        %515 = vmatpush1.msra.mxu0 %v514
        %v516 = vand.u32 %v261, 4294901760
        %517 = vmatprep.subr.mxu0 %v516
        %v518 = vand.u32 %v260, 4294901760
        %519 = vmatpush1.msra.mxu0 %v518
        %v520 = vand.u32 %v265, 4294901760
        %521 = vmatprep.subr.mxu0 %v520
        %v522 = vand.u32 %v264, 4294901760
        %523 = vmatpush1.msra.mxu0 %v522
        %v524 = vand.u32 %v269, 4294901760
        %525 = vmatprep.subr.mxu0 %v524
        %v526 = vand.u32 %v268, 4294901760
        %527 = vmatpush1.msra.mxu0 %v526
        %v528 = vand.u32 %v273, 4294901760
        %529 = vmatprep.subr.mxu0 %v528
        %v530 = vand.u32 %v272, 4294901760
        %531 = vmatpush1.msra.mxu0 %v530
        %v532 = vand.u32 %v277, 4294901760
        %533 = vmatprep.subr.mxu0 %v532
        %v534 = vand.u32 %v276, 4294901760
        %535 = vmatpush1.msra.mxu0 %v534
        %v536 = vand.u32 %v281, 4294901760
        %537 = vmatprep.subr.mxu0 %v536
        %v538 = vand.u32 %v280, 4294901760
        %539 = vmatpush1.msra.mxu0 %v538
        %v540 = vand.u32 %v285, 4294901760
        %541 = vmatprep.subr.mxu0 %v540
        %v542 = vand.u32 %v284, 4294901760
        %543 = vmatpush1.msra.mxu0 %v542
        %v544 = vand.u32 %v289, 4294901760
        %545 = vmatprep.subr.mxu0 %v544
        %v546 = vand.u32 %v288, 4294901760
        %547 = vmatpush1.msra.mxu0 %v546
        %v548 = vand.u32 %v293, 4294901760
        %549 = vmatprep.subr.mxu0 %v548
        %v550 = vand.u32 %v292, 4294901760
        %551 = vmatpush1.msra.mxu0 %v550
        %v552 = vand.u32 %v297, 4294901760
        %553 = vmatprep.subr.mxu0 %v552
        %v554 = vand.u32 %v296, 4294901760
        %555 = vmatpush1.msra.mxu0 %v554
        %v556 = vand.u32 %v301, 4294901760
        %557 = vmatprep.subr.mxu0 %v556
        %v558 = vand.u32 %v300, 4294901760
        %559 = vmatpush1.msra.mxu0 %v558
        %v560 = vand.u32 %v305, 4294901760
        %561 = vmatprep.subr.mxu0 %v560
        %v562 = vand.u32 %v304, 4294901760
        %563 = vmatpush1.msra.mxu0 %v562
        %v564 = vand.u32 %v309, 4294901760
        %565 = vmatprep.subr.mxu0 %v564
        %v566 = vand.u32 %v308, 4294901760
        %567 = vmatpush1.msra.mxu0 %v566
        %v568 = vand.u32 %v313, 4294901760
        %569 = vmatprep.subr.mxu0 %v568
        %v570 = vand.u32 %v312, 4294901760
        %571 = vmatpush1.msra.mxu0 %v570
        %v572 = vand.u32 %v317, 4294901760
        %573 = vmatprep.subr.mxu0 %v572
        %v574 = vand.u32 %v316, 4294901760
        %575 = vmatpush1.msra.mxu0 %v574
        %v576 = vand.u32 %v321, 4294901760
        %577 = vmatprep.subr.mxu0 %v576
        %v578 = vand.u32 %v320, 4294901760
        %579 = vmatpush1.msra.mxu0 %v578
        %v580 = vand.u32 %v325, 4294901760
        %581 = vmatprep.subr.mxu0 %v580
        %v582 = vand.u32 %v324, 4294901760
        %583 = vmatpush1.msra.mxu0 %v582
        %v584 = vand.u32 %v329, 4294901760
        %585 = vmatprep.subr.mxu0 %v584
        %v586 = vand.u32 %v328, 4294901760
        %587 = vmatpush1.msra.mxu0 %v586
        %v588 = vand.u32 %v333, 4294901760
        %589 = vmatprep.subr.mxu0 %v588
        %v590 = vand.u32 %v332, 4294901760
        %591 = vmatpush1.msra.mxu0 %v590
        %v592 = vand.u32 %v337, 4294901760
        %593 = vmatprep.subr.mxu0 %v592
        %v594 = vand.u32 %v336, 4294901760
        %595 = vmatpush1.msra.mxu0 %v594
        %v596 = vand.u32 %v205, 4294901760
        %v597 = vsub.f32 %v205, %v596
        %v598 = vand.u32 %v597, 4294901760
        %v599 = vsub.f32 %v597, %v598
        %v600 = vand.u32 %v599, 4294901760
        %601 = vmatprep.mubr.f32.mxu0 %v600
        %v602 = vand.u32 %v204, 4294901760
        %v603 = vsub.f32 %v204, %v602
        %v604 = vand.u32 %v603, 4294901760
        %v605 = vsub.f32 %v603, %v604
        %v606 = vand.u32 %v605, 4294901760
        %607 = vmatmul.mubr.f32.gmra.mrb[0].mxu0 %v606
        %v608 = vpop.f32.mrb[0].mxu0
        %v609 = vadd.f32 0.0, %v608
        %v610 = vpop.f32.mrb[0].mxu0
        %v611 = vadd.f32 0.0, %v610
        %v612 = vand.u32 %v209, 4294901760
        %v613 = vsub.f32 %v209, %v612
        %v614 = vand.u32 %v613, 4294901760
        %v615 = vsub.f32 %v613, %v614
        %v616 = vand.u32 %v615, 4294901760
        %617 = vmatprep.mubr.f32.mxu0 %v616
        %v618 = vand.u32 %v208, 4294901760
        %v619 = vsub.f32 %v208, %v618
        %v620 = vand.u32 %v619, 4294901760
        %v621 = vsub.f32 %v619, %v620
        %v622 = vand.u32 %v621, 4294901760
        %623 = vmatmul.mubr.f32.gmra.mrb[0].mxu0 %v622
        %v624 = vpop.f32.mrb[0].mxu0
        %v625 = vadd.f32 0.0, %v624
        %v626 = vpop.f32.mrb[0].mxu0
        %v627 = vadd.f32 0.0, %v626
        %628 = vdwg.mxu0
        %v629 = vand.u32 %v213, 4294901760
        %v630 = vsub.f32 %v213, %v629
        %v631 = vand.u32 %v630, 4294901760
        %v632 = vsub.f32 %v630, %v631
        %v633 = vand.u32 %v632, 4294901760
        %634 = vmatprep.subr.mxu0 %v633
        %v635 = vand.u32 %v212, 4294901760
        %v636 = vsub.f32 %v212, %v635
        %v637 = vand.u32 %v636, 4294901760
        %v638 = vsub.f32 %v636, %v637
        %v639 = vand.u32 %v638, 4294901760
        %640 = vmatpush1.msra.mxu0 %v639
        %v641 = vand.u32 %v217, 4294901760
        %v642 = vsub.f32 %v217, %v641
        %v643 = vand.u32 %v642, 4294901760
        %v644 = vsub.f32 %v642, %v643
        %v645 = vand.u32 %v644, 4294901760
        %646 = vmatprep.subr.mxu0 %v645
        %v647 = vand.u32 %v216, 4294901760
        %v648 = vsub.f32 %v216, %v647
        %v649 = vand.u32 %v648, 4294901760
        %v650 = vsub.f32 %v648, %v649
        %v651 = vand.u32 %v650, 4294901760
        %652 = vmatpush1.msra.mxu0 %v651
        %v653 = vand.u32 %v221, 4294901760
        %v654 = vsub.f32 %v221, %v653
        %v655 = vand.u32 %v654, 4294901760
        %v656 = vsub.f32 %v654, %v655
        %v657 = vand.u32 %v656, 4294901760
        %658 = vmatprep.subr.mxu0 %v657
        %v659 = vand.u32 %v220, 4294901760
        %v660 = vsub.f32 %v220, %v659
        %v661 = vand.u32 %v660, 4294901760
        %v662 = vsub.f32 %v660, %v661
        %v663 = vand.u32 %v662, 4294901760
        %664 = vmatpush1.msra.mxu0 %v663
        %v665 = vand.u32 %v225, 4294901760
        %v666 = vsub.f32 %v225, %v665
        %v667 = vand.u32 %v666, 4294901760
        %v668 = vsub.f32 %v666, %v667
        %v669 = vand.u32 %v668, 4294901760
        %670 = vmatprep.subr.mxu0 %v669
        %v671 = vand.u32 %v224, 4294901760
        %v672 = vsub.f32 %v224, %v671
        %v673 = vand.u32 %v672, 4294901760
        %v674 = vsub.f32 %v672, %v673
        %v675 = vand.u32 %v674, 4294901760
        %676 = vmatpush1.msra.mxu0 %v675
        %v677 = vand.u32 %v229, 4294901760
        %v678 = vsub.f32 %v229, %v677
        %v679 = vand.u32 %v678, 4294901760
        %v680 = vsub.f32 %v678, %v679
        %v681 = vand.u32 %v680, 4294901760
        %682 = vmatprep.subr.mxu0 %v681
        %v683 = vand.u32 %v228, 4294901760
        %v684 = vsub.f32 %v228, %v683
        %v685 = vand.u32 %v684, 4294901760
        %v686 = vsub.f32 %v684, %v685
        %v687 = vand.u32 %v686, 4294901760
        %688 = vmatpush1.msra.mxu0 %v687
        %v689 = vand.u32 %v233, 4294901760
        %v690 = vsub.f32 %v233, %v689
        %v691 = vand.u32 %v690, 4294901760
        %v692 = vsub.f32 %v690, %v691
        %v693 = vand.u32 %v692, 4294901760
        %694 = vmatprep.subr.mxu0 %v693
        %v695 = vand.u32 %v232, 4294901760
        %v696 = vsub.f32 %v232, %v695
        %v697 = vand.u32 %v696, 4294901760
        %v698 = vsub.f32 %v696, %v697
        %v699 = vand.u32 %v698, 4294901760
        %700 = vmatpush1.msra.mxu0 %v699
        %v701 = vand.u32 %v237, 4294901760
        %v702 = vsub.f32 %v237, %v701
        %v703 = vand.u32 %v702, 4294901760
        %v704 = vsub.f32 %v702, %v703
        %v705 = vand.u32 %v704, 4294901760
        %706 = vmatprep.subr.mxu0 %v705
        %v707 = vand.u32 %v236, 4294901760
        %v708 = vsub.f32 %v236, %v707
        %v709 = vand.u32 %v708, 4294901760
        %v710 = vsub.f32 %v708, %v709
        %v711 = vand.u32 %v710, 4294901760
        %712 = vmatpush1.msra.mxu0 %v711
        %v713 = vand.u32 %v241, 4294901760
        %v714 = vsub.f32 %v241, %v713
        %v715 = vand.u32 %v714, 4294901760
        %v716 = vsub.f32 %v714, %v715
        %v717 = vand.u32 %v716, 4294901760
        %718 = vmatprep.subr.mxu0 %v717
        %v719 = vand.u32 %v240, 4294901760
        %v720 = vsub.f32 %v240, %v719
        %v721 = vand.u32 %v720, 4294901760
        %v722 = vsub.f32 %v720, %v721
        %v723 = vand.u32 %v722, 4294901760
        %724 = vmatpush1.msra.mxu0 %v723
        %v725 = vand.u32 %v245, 4294901760
        %v726 = vsub.f32 %v245, %v725
        %v727 = vand.u32 %v726, 4294901760
        %v728 = vsub.f32 %v726, %v727
        %v729 = vand.u32 %v728, 4294901760
        %730 = vmatprep.subr.mxu0 %v729
        %v731 = vand.u32 %v244, 4294901760
        %v732 = vsub.f32 %v244, %v731
        %v733 = vand.u32 %v732, 4294901760
        %v734 = vsub.f32 %v732, %v733
        %v735 = vand.u32 %v734, 4294901760
        %736 = vmatpush1.msra.mxu0 %v735
        %v737 = vand.u32 %v249, 4294901760
        %v738 = vsub.f32 %v249, %v737
        %v739 = vand.u32 %v738, 4294901760
        %v740 = vsub.f32 %v738, %v739
        %v741 = vand.u32 %v740, 4294901760
        %742 = vmatprep.subr.mxu0 %v741
        %v743 = vand.u32 %v248, 4294901760
        %v744 = vsub.f32 %v248, %v743
        %v745 = vand.u32 %v744, 4294901760
        %v746 = vsub.f32 %v744, %v745
        %v747 = vand.u32 %v746, 4294901760
        %748 = vmatpush1.msra.mxu0 %v747
        %v749 = vand.u32 %v253, 4294901760
        %v750 = vsub.f32 %v253, %v749
        %v751 = vand.u32 %v750, 4294901760
        %v752 = vsub.f32 %v750, %v751
        %v753 = vand.u32 %v752, 4294901760
        %754 = vmatprep.subr.mxu0 %v753
        %v755 = vand.u32 %v252, 4294901760
        %v756 = vsub.f32 %v252, %v755
        %v757 = vand.u32 %v756, 4294901760
        %v758 = vsub.f32 %v756, %v757
        %v759 = vand.u32 %v758, 4294901760
        %760 = vmatpush1.msra.mxu0 %v759
        %v761 = vand.u32 %v257, 4294901760
        %v762 = vsub.f32 %v257, %v761
        %v763 = vand.u32 %v762, 4294901760
        %v764 = vsub.f32 %v762, %v763
        %v765 = vand.u32 %v764, 4294901760
        %766 = vmatprep.subr.mxu0 %v765
        %v767 = vand.u32 %v256, 4294901760
        %v768 = vsub.f32 %v256, %v767
        %v769 = vand.u32 %v768, 4294901760
        %v770 = vsub.f32 %v768, %v769
        %v771 = vand.u32 %v770, 4294901760
        %772 = vmatpush1.msra.mxu0 %v771
        %v773 = vand.u32 %v261, 4294901760
        %v774 = vsub.f32 %v261, %v773
        %v775 = vand.u32 %v774, 4294901760
        %v776 = vsub.f32 %v774, %v775
        %v777 = vand.u32 %v776, 4294901760
        %778 = vmatprep.subr.mxu0 %v777
        %v779 = vand.u32 %v260, 4294901760
        %v780 = vsub.f32 %v260, %v779
        %v781 = vand.u32 %v780, 4294901760
        %v782 = vsub.f32 %v780, %v781
        %v783 = vand.u32 %v782, 4294901760
        %784 = vmatpush1.msra.mxu0 %v783
        %v785 = vand.u32 %v265, 4294901760
        %v786 = vsub.f32 %v265, %v785
        %v787 = vand.u32 %v786, 4294901760
        %v788 = vsub.f32 %v786, %v787
        %v789 = vand.u32 %v788, 4294901760
        %790 = vmatprep.subr.mxu0 %v789
        %v791 = vand.u32 %v264, 4294901760
        %v792 = vsub.f32 %v264, %v791
        %v793 = vand.u32 %v792, 4294901760
        %v794 = vsub.f32 %v792, %v793
        %v795 = vand.u32 %v794, 4294901760
        %796 = vmatpush1.msra.mxu0 %v795
        %v797 = vand.u32 %v269, 4294901760
        %v798 = vsub.f32 %v269, %v797
        %v799 = vand.u32 %v798, 4294901760
        %v800 = vsub.f32 %v798, %v799
        %v801 = vand.u32 %v800, 4294901760
        %802 = vmatprep.subr.mxu0 %v801
        %v803 = vand.u32 %v268, 4294901760
        %v804 = vsub.f32 %v268, %v803
        %v805 = vand.u32 %v804, 4294901760
        %v806 = vsub.f32 %v804, %v805
        %v807 = vand.u32 %v806, 4294901760
        %808 = vmatpush1.msra.mxu0 %v807
        %v809 = vand.u32 %v273, 4294901760
        %v810 = vsub.f32 %v273, %v809
        %v811 = vand.u32 %v810, 4294901760
        %v812 = vsub.f32 %v810, %v811
        %v813 = vand.u32 %v812, 4294901760
        %814 = vmatprep.subr.mxu0 %v813
        %v815 = vand.u32 %v272, 4294901760
        %v816 = vsub.f32 %v272, %v815
        %v817 = vand.u32 %v816, 4294901760
        %v818 = vsub.f32 %v816, %v817
        %v819 = vand.u32 %v818, 4294901760
        %820 = vmatpush1.msra.mxu0 %v819
        %v821 = vand.u32 %v277, 4294901760
        %v822 = vsub.f32 %v277, %v821
        %v823 = vand.u32 %v822, 4294901760
        %v824 = vsub.f32 %v822, %v823
        %v825 = vand.u32 %v824, 4294901760
        %826 = vmatprep.subr.mxu0 %v825
        %v827 = vand.u32 %v276, 4294901760
        %v828 = vsub.f32 %v276, %v827
        %v829 = vand.u32 %v828, 4294901760
        %v830 = vsub.f32 %v828, %v829
        %v831 = vand.u32 %v830, 4294901760
        %832 = vmatpush1.msra.mxu0 %v831
        %v833 = vand.u32 %v281, 4294901760
        %v834 = vsub.f32 %v281, %v833
        %v835 = vand.u32 %v834, 4294901760
        %v836 = vsub.f32 %v834, %v835
        %v837 = vand.u32 %v836, 4294901760
        %838 = vmatprep.subr.mxu0 %v837
        %v839 = vand.u32 %v280, 4294901760
        %v840 = vsub.f32 %v280, %v839
        %v841 = vand.u32 %v840, 4294901760
        %v842 = vsub.f32 %v840, %v841
        %v843 = vand.u32 %v842, 4294901760
        %844 = vmatpush1.msra.mxu0 %v843
        %v845 = vand.u32 %v285, 4294901760
        %v846 = vsub.f32 %v285, %v845
        %v847 = vand.u32 %v846, 4294901760
        %v848 = vsub.f32 %v846, %v847
        %v849 = vand.u32 %v848, 4294901760
        %850 = vmatprep.subr.mxu0 %v849
        %v851 = vand.u32 %v284, 4294901760
        %v852 = vsub.f32 %v284, %v851
        %v853 = vand.u32 %v852, 4294901760
        %v854 = vsub.f32 %v852, %v853
        %v855 = vand.u32 %v854, 4294901760
        %856 = vmatpush1.msra.mxu0 %v855
        %v857 = vand.u32 %v289, 4294901760
        %v858 = vsub.f32 %v289, %v857
        %v859 = vand.u32 %v858, 4294901760
        %v860 = vsub.f32 %v858, %v859
        %v861 = vand.u32 %v860, 4294901760
        %862 = vmatprep.subr.mxu0 %v861
        %v863 = vand.u32 %v288, 4294901760
        %v864 = vsub.f32 %v288, %v863
        %v865 = vand.u32 %v864, 4294901760
        %v866 = vsub.f32 %v864, %v865
        %v867 = vand.u32 %v866, 4294901760
        %868 = vmatpush1.msra.mxu0 %v867
        %v869 = vand.u32 %v293, 4294901760
        %v870 = vsub.f32 %v293, %v869
        %v871 = vand.u32 %v870, 4294901760
        %v872 = vsub.f32 %v870, %v871
        %v873 = vand.u32 %v872, 4294901760
        %874 = vmatprep.subr.mxu0 %v873
        %v875 = vand.u32 %v292, 4294901760
        %v876 = vsub.f32 %v292, %v875
        %v877 = vand.u32 %v876, 4294901760
        %v878 = vsub.f32 %v876, %v877
        %v879 = vand.u32 %v878, 4294901760
        %880 = vmatpush1.msra.mxu0 %v879
        %v881 = vand.u32 %v297, 4294901760
        %v882 = vsub.f32 %v297, %v881
        %v883 = vand.u32 %v882, 4294901760
        %v884 = vsub.f32 %v882, %v883
        %v885 = vand.u32 %v884, 4294901760
        %886 = vmatprep.subr.mxu0 %v885
        %v887 = vand.u32 %v296, 4294901760
        %v888 = vsub.f32 %v296, %v887
        %v889 = vand.u32 %v888, 4294901760
        %v890 = vsub.f32 %v888, %v889
        %v891 = vand.u32 %v890, 4294901760
        %892 = vmatpush1.msra.mxu0 %v891
        %v893 = vand.u32 %v301, 4294901760
        %v894 = vsub.f32 %v301, %v893
        %v895 = vand.u32 %v894, 4294901760
        %v896 = vsub.f32 %v894, %v895
        %v897 = vand.u32 %v896, 4294901760
        %898 = vmatprep.subr.mxu0 %v897
        %v899 = vand.u32 %v300, 4294901760
        %v900 = vsub.f32 %v300, %v899
        %v901 = vand.u32 %v900, 4294901760
        %v902 = vsub.f32 %v900, %v901
        %v903 = vand.u32 %v902, 4294901760
        %904 = vmatpush1.msra.mxu0 %v903
        %v905 = vand.u32 %v305, 4294901760
        %v906 = vsub.f32 %v305, %v905
        %v907 = vand.u32 %v906, 4294901760
        %v908 = vsub.f32 %v906, %v907
        %v909 = vand.u32 %v908, 4294901760
        %910 = vmatprep.subr.mxu0 %v909
        %v911 = vand.u32 %v304, 4294901760
        %v912 = vsub.f32 %v304, %v911
        %v913 = vand.u32 %v912, 4294901760
        %v914 = vsub.f32 %v912, %v913
        %v915 = vand.u32 %v914, 4294901760
        %916 = vmatpush1.msra.mxu0 %v915
        %v917 = vand.u32 %v309, 4294901760
        %v918 = vsub.f32 %v309, %v917
        %v919 = vand.u32 %v918, 4294901760
        %v920 = vsub.f32 %v918, %v919
        %v921 = vand.u32 %v920, 4294901760
        %922 = vmatprep.subr.mxu0 %v921
        %v923 = vand.u32 %v308, 4294901760
        %v924 = vsub.f32 %v308, %v923
        %v925 = vand.u32 %v924, 4294901760
        %v926 = vsub.f32 %v924, %v925
        %v927 = vand.u32 %v926, 4294901760
        %928 = vmatpush1.msra.mxu0 %v927
        %v929 = vand.u32 %v313, 4294901760
        %v930 = vsub.f32 %v313, %v929
        %v931 = vand.u32 %v930, 4294901760
        %v932 = vsub.f32 %v930, %v931
        %v933 = vand.u32 %v932, 4294901760
        %934 = vmatprep.subr.mxu0 %v933
        %v935 = vand.u32 %v312, 4294901760
        %v936 = vsub.f32 %v312, %v935
        %v937 = vand.u32 %v936, 4294901760
        %v938 = vsub.f32 %v936, %v937
        %v939 = vand.u32 %v938, 4294901760
        %940 = vmatpush1.msra.mxu0 %v939
        %v941 = vand.u32 %v317, 4294901760
        %v942 = vsub.f32 %v317, %v941
        %v943 = vand.u32 %v942, 4294901760
        %v944 = vsub.f32 %v942, %v943
        %v945 = vand.u32 %v944, 4294901760
        %946 = vmatprep.subr.mxu0 %v945
        %v947 = vand.u32 %v316, 4294901760
        %v948 = vsub.f32 %v316, %v947
        %v949 = vand.u32 %v948, 4294901760
        %v950 = vsub.f32 %v948, %v949
        %v951 = vand.u32 %v950, 4294901760
        %952 = vmatpush1.msra.mxu0 %v951
        %v953 = vand.u32 %v321, 4294901760
        %v954 = vsub.f32 %v321, %v953
        %v955 = vand.u32 %v954, 4294901760
        %v956 = vsub.f32 %v954, %v955
        %v957 = vand.u32 %v956, 4294901760
        %958 = vmatprep.subr.mxu0 %v957
        %v959 = vand.u32 %v320, 4294901760
        %v960 = vsub.f32 %v320, %v959
        %v961 = vand.u32 %v960, 4294901760
        %v962 = vsub.f32 %v960, %v961
        %v963 = vand.u32 %v962, 4294901760
        %964 = vmatpush1.msra.mxu0 %v963
        %v965 = vand.u32 %v325, 4294901760
        %v966 = vsub.f32 %v325, %v965
        %v967 = vand.u32 %v966, 4294901760
        %v968 = vsub.f32 %v966, %v967
        %v969 = vand.u32 %v968, 4294901760
        %970 = vmatprep.subr.mxu0 %v969
        %v971 = vand.u32 %v324, 4294901760
        %v972 = vsub.f32 %v324, %v971
        %v973 = vand.u32 %v972, 4294901760
        %v974 = vsub.f32 %v972, %v973
        %v975 = vand.u32 %v974, 4294901760
        %976 = vmatpush1.msra.mxu0 %v975
        %v977 = vand.u32 %v329, 4294901760
        %v978 = vsub.f32 %v329, %v977
        %v979 = vand.u32 %v978, 4294901760
        %v980 = vsub.f32 %v978, %v979
        %v981 = vand.u32 %v980, 4294901760
        %982 = vmatprep.subr.mxu0 %v981
        %v983 = vand.u32 %v328, 4294901760
        %v984 = vsub.f32 %v328, %v983
        %v985 = vand.u32 %v984, 4294901760
        %v986 = vsub.f32 %v984, %v985
        %v987 = vand.u32 %v986, 4294901760
        %988 = vmatpush1.msra.mxu0 %v987
        %v989 = vand.u32 %v333, 4294901760
        %v990 = vsub.f32 %v333, %v989
        %v991 = vand.u32 %v990, 4294901760
        %v992 = vsub.f32 %v990, %v991
        %v993 = vand.u32 %v992, 4294901760
        %994 = vmatprep.subr.mxu0 %v993
        %v995 = vand.u32 %v332, 4294901760
        %v996 = vsub.f32 %v332, %v995
        %v997 = vand.u32 %v996, 4294901760
        %v998 = vsub.f32 %v996, %v997
        %v999 = vand.u32 %v998, 4294901760
        %1000 = vmatpush1.msra.mxu0 %v999
        %v1001 = vand.u32 %v337, 4294901760
        %v1002 = vsub.f32 %v337, %v1001
        %v1003 = vand.u32 %v1002, 4294901760
        %v1004 = vsub.f32 %v1002, %v1003
        %v1005 = vand.u32 %v1004, 4294901760
        %1006 = vmatprep.subr.mxu0 %v1005
        %v1007 = vand.u32 %v336, 4294901760
        %v1008 = vsub.f32 %v336, %v1007
        %v1009 = vand.u32 %v1008, 4294901760
        %v1010 = vsub.f32 %v1008, %v1009
        %v1011 = vand.u32 %v1010, 4294901760
        %1012 = vmatpush1.msra.mxu0 %v1011
        %v1013 = vand.u32 %v205, 4294901760
        %1014 = vmatprep.mubr.f32.mxu0 %v1013
        %v1015 = vand.u32 %v204, 4294901760
        %1016 = vmatmul.mubr.f32.gmra.mrb[0].mxu0 %v1015
        %v1017 = vpop.f32.mrb[0].mxu0
        %v1018 = vadd.f32 %v609, %v1017
        %v1019 = vpop.f32.mrb[0].mxu0
        %v1020 = vadd.f32 %v611, %v1019
        %v1021 = vand.u32 %v209, 4294901760
        %1022 = vmatprep.mubr.f32.mxu0 %v1021
        %v1023 = vand.u32 %v208, 4294901760
        %1024 = vmatmul.mubr.f32.gmra.mrb[0].mxu0 %v1023
        %v1025 = vpop.f32.mrb[0].mxu0
        %v1026 = vadd.f32 %v625, %v1025
        %v1027 = vpop.f32.mrb[0].mxu0
        %v1028 = vadd.f32 %v627, %v1027
        %1029 = vdwg.mxu0
        %v1030 = vand.u32 %v213, 4294901760
        %v1031 = vsub.f32 %v213, %v1030
        %1032 = vmatprep.subr.mxu0 %v1031
        %v1033 = vand.u32 %v212, 4294901760
        %v1034 = vsub.f32 %v212, %v1033
        %1035 = vmatpush1.msra.mxu0 %v1034
        %v1036 = vand.u32 %v217, 4294901760
        %v1037 = vsub.f32 %v217, %v1036
        %1038 = vmatprep.subr.mxu0 %v1037
        %v1039 = vand.u32 %v216, 4294901760
        %v1040 = vsub.f32 %v216, %v1039
        %1041 = vmatpush1.msra.mxu0 %v1040
        %v1042 = vand.u32 %v221, 4294901760
        %v1043 = vsub.f32 %v221, %v1042
        %1044 = vmatprep.subr.mxu0 %v1043
        %v1045 = vand.u32 %v220, 4294901760
        %v1046 = vsub.f32 %v220, %v1045
        %1047 = vmatpush1.msra.mxu0 %v1046
        %v1048 = vand.u32 %v225, 4294901760
        %v1049 = vsub.f32 %v225, %v1048
        %1050 = vmatprep.subr.mxu0 %v1049
        %v1051 = vand.u32 %v224, 4294901760
        %v1052 = vsub.f32 %v224, %v1051
        %1053 = vmatpush1.msra.mxu0 %v1052
        %v1054 = vand.u32 %v229, 4294901760
        %v1055 = vsub.f32 %v229, %v1054
        %1056 = vmatprep.subr.mxu0 %v1055
        %v1057 = vand.u32 %v228, 4294901760
        %v1058 = vsub.f32 %v228, %v1057
        %1059 = vmatpush1.msra.mxu0 %v1058
        %v1060 = vand.u32 %v233, 4294901760
        %v1061 = vsub.f32 %v233, %v1060
        %1062 = vmatprep.subr.mxu0 %v1061
        %v1063 = vand.u32 %v232, 4294901760
        %v1064 = vsub.f32 %v232, %v1063
        %1065 = vmatpush1.msra.mxu0 %v1064
        %v1066 = vand.u32 %v237, 4294901760
        %v1067 = vsub.f32 %v237, %v1066
        %1068 = vmatprep.subr.mxu0 %v1067
        %v1069 = vand.u32 %v236, 4294901760
        %v1070 = vsub.f32 %v236, %v1069
        %1071 = vmatpush1.msra.mxu0 %v1070
        %v1072 = vand.u32 %v241, 4294901760
        %v1073 = vsub.f32 %v241, %v1072
        %1074 = vmatprep.subr.mxu0 %v1073
        %v1075 = vand.u32 %v240, 4294901760
        %v1076 = vsub.f32 %v240, %v1075
        %1077 = vmatpush1.msra.mxu0 %v1076
        %v1078 = vand.u32 %v245, 4294901760
        %v1079 = vsub.f32 %v245, %v1078
        %1080 = vmatprep.subr.mxu0 %v1079
        %v1081 = vand.u32 %v244, 4294901760
        %v1082 = vsub.f32 %v244, %v1081
        %1083 = vmatpush1.msra.mxu0 %v1082
        %v1084 = vand.u32 %v249, 4294901760
        %v1085 = vsub.f32 %v249, %v1084
        %1086 = vmatprep.subr.mxu0 %v1085
        %v1087 = vand.u32 %v248, 4294901760
        %v1088 = vsub.f32 %v248, %v1087
        %1089 = vmatpush1.msra.mxu0 %v1088
        %v1090 = vand.u32 %v253, 4294901760
        %v1091 = vsub.f32 %v253, %v1090
        %1092 = vmatprep.subr.mxu0 %v1091
        %v1093 = vand.u32 %v252, 4294901760
        %v1094 = vsub.f32 %v252, %v1093
        %1095 = vmatpush1.msra.mxu0 %v1094
        %v1096 = vand.u32 %v257, 4294901760
        %v1097 = vsub.f32 %v257, %v1096
        %1098 = vmatprep.subr.mxu0 %v1097
        %v1099 = vand.u32 %v256, 4294901760
        %v1100 = vsub.f32 %v256, %v1099
        %1101 = vmatpush1.msra.mxu0 %v1100
        %v1102 = vand.u32 %v261, 4294901760
        %v1103 = vsub.f32 %v261, %v1102
        %1104 = vmatprep.subr.mxu0 %v1103
        %v1105 = vand.u32 %v260, 4294901760
        %v1106 = vsub.f32 %v260, %v1105
        %1107 = vmatpush1.msra.mxu0 %v1106
        %v1108 = vand.u32 %v265, 4294901760
        %v1109 = vsub.f32 %v265, %v1108
        %1110 = vmatprep.subr.mxu0 %v1109
        %v1111 = vand.u32 %v264, 4294901760
        %v1112 = vsub.f32 %v264, %v1111
        %1113 = vmatpush1.msra.mxu0 %v1112
        %v1114 = vand.u32 %v269, 4294901760
        %v1115 = vsub.f32 %v269, %v1114
        %1116 = vmatprep.subr.mxu0 %v1115
        %v1117 = vand.u32 %v268, 4294901760
        %v1118 = vsub.f32 %v268, %v1117
        %1119 = vmatpush1.msra.mxu0 %v1118
        %v1120 = vand.u32 %v273, 4294901760
        %v1121 = vsub.f32 %v273, %v1120
        %1122 = vmatprep.subr.mxu0 %v1121
        %v1123 = vand.u32 %v272, 4294901760
        %v1124 = vsub.f32 %v272, %v1123
        %1125 = vmatpush1.msra.mxu0 %v1124
        %v1126 = vand.u32 %v277, 4294901760
        %v1127 = vsub.f32 %v277, %v1126
        %1128 = vmatprep.subr.mxu0 %v1127
        %v1129 = vand.u32 %v276, 4294901760
        %v1130 = vsub.f32 %v276, %v1129
        %1131 = vmatpush1.msra.mxu0 %v1130
        %v1132 = vand.u32 %v281, 4294901760
        %v1133 = vsub.f32 %v281, %v1132
        %1134 = vmatprep.subr.mxu0 %v1133
        %v1135 = vand.u32 %v280, 4294901760
        %v1136 = vsub.f32 %v280, %v1135
        %1137 = vmatpush1.msra.mxu0 %v1136
        %v1138 = vand.u32 %v285, 4294901760
        %v1139 = vsub.f32 %v285, %v1138
        %1140 = vmatprep.subr.mxu0 %v1139
        %v1141 = vand.u32 %v284, 4294901760
        %v1142 = vsub.f32 %v284, %v1141
        %1143 = vmatpush1.msra.mxu0 %v1142
        %v1144 = vand.u32 %v289, 4294901760
        %v1145 = vsub.f32 %v289, %v1144
        %1146 = vmatprep.subr.mxu0 %v1145
        %v1147 = vand.u32 %v288, 4294901760
        %v1148 = vsub.f32 %v288, %v1147
        %1149 = vmatpush1.msra.mxu0 %v1148
        %v1150 = vand.u32 %v293, 4294901760
        %v1151 = vsub.f32 %v293, %v1150
        %1152 = vmatprep.subr.mxu0 %v1151
        %v1153 = vand.u32 %v292, 4294901760
        %v1154 = vsub.f32 %v292, %v1153
        %1155 = vmatpush1.msra.mxu0 %v1154
        %v1156 = vand.u32 %v297, 4294901760
        %v1157 = vsub.f32 %v297, %v1156
        %1158 = vmatprep.subr.mxu0 %v1157
        %v1159 = vand.u32 %v296, 4294901760
        %v1160 = vsub.f32 %v296, %v1159
        %1161 = vmatpush1.msra.mxu0 %v1160
        %v1162 = vand.u32 %v301, 4294901760
        %v1163 = vsub.f32 %v301, %v1162
        %1164 = vmatprep.subr.mxu0 %v1163
        %v1165 = vand.u32 %v300, 4294901760
        %v1166 = vsub.f32 %v300, %v1165
        %1167 = vmatpush1.msra.mxu0 %v1166
        %v1168 = vand.u32 %v305, 4294901760
        %v1169 = vsub.f32 %v305, %v1168
        %1170 = vmatprep.subr.mxu0 %v1169
        %v1171 = vand.u32 %v304, 4294901760
        %v1172 = vsub.f32 %v304, %v1171
        %1173 = vmatpush1.msra.mxu0 %v1172
        %v1174 = vand.u32 %v309, 4294901760
        %v1175 = vsub.f32 %v309, %v1174
        %1176 = vmatprep.subr.mxu0 %v1175
        %v1177 = vand.u32 %v308, 4294901760
        %v1178 = vsub.f32 %v308, %v1177
        %1179 = vmatpush1.msra.mxu0 %v1178
        %v1180 = vand.u32 %v313, 4294901760
        %v1181 = vsub.f32 %v313, %v1180
        %1182 = vmatprep.subr.mxu0 %v1181
        %v1183 = vand.u32 %v312, 4294901760
        %v1184 = vsub.f32 %v312, %v1183
        %1185 = vmatpush1.msra.mxu0 %v1184
        %v1186 = vand.u32 %v317, 4294901760
        %v1187 = vsub.f32 %v317, %v1186
        %1188 = vmatprep.subr.mxu0 %v1187
        %v1189 = vand.u32 %v316, 4294901760
        %v1190 = vsub.f32 %v316, %v1189
        %1191 = vmatpush1.msra.mxu0 %v1190
        %v1192 = vand.u32 %v321, 4294901760
        %v1193 = vsub.f32 %v321, %v1192
        %1194 = vmatprep.subr.mxu0 %v1193
        %v1195 = vand.u32 %v320, 4294901760
        %v1196 = vsub.f32 %v320, %v1195
        %1197 = vmatpush1.msra.mxu0 %v1196
        %v1198 = vand.u32 %v325, 4294901760
        %v1199 = vsub.f32 %v325, %v1198
        %1200 = vmatprep.subr.mxu0 %v1199
        %v1201 = vand.u32 %v324, 4294901760
        %v1202 = vsub.f32 %v324, %v1201
        %1203 = vmatpush1.msra.mxu0 %v1202
        %v1204 = vand.u32 %v329, 4294901760
        %v1205 = vsub.f32 %v329, %v1204
        %1206 = vmatprep.subr.mxu0 %v1205
        %v1207 = vand.u32 %v328, 4294901760
        %v1208 = vsub.f32 %v328, %v1207
        %1209 = vmatpush1.msra.mxu0 %v1208
        %v1210 = vand.u32 %v333, 4294901760
        %v1211 = vsub.f32 %v333, %v1210
        %1212 = vmatprep.subr.mxu0 %v1211
        %v1213 = vand.u32 %v332, 4294901760
        %v1214 = vsub.f32 %v332, %v1213
        %1215 = vmatpush1.msra.mxu0 %v1214
        %v1216 = vand.u32 %v337, 4294901760
        %v1217 = vsub.f32 %v337, %v1216
        %1218 = vmatprep.subr.mxu0 %v1217
        %v1219 = vand.u32 %v336, 4294901760
        %v1220 = vsub.f32 %v336, %v1219
        %1221 = vmatpush1.msra.mxu0 %v1220
        %v1222 = vand.u32 %v205, 4294901760
        %v1223 = vsub.f32 %v205, %v1222
        %1224 = vmatprep.mubr.f32.mxu0 %v1223
        %v1225 = vand.u32 %v204, 4294901760
        %v1226 = vsub.f32 %v204, %v1225
        %1227 = vmatmul.mubr.f32.gmra.mrb[0].mxu0 %v1226
        %v1228 = vpop.f32.mrb[0].mxu0
        %v1229 = vadd.f32 %v1018, %v1228
        %v1230 = vpop.f32.mrb[0].mxu0
        %v1231 = vadd.f32 %v1020, %v1230
        %v1232 = vand.u32 %v209, 4294901760
        %v1233 = vsub.f32 %v209, %v1232
        %1234 = vmatprep.mubr.f32.mxu0 %v1233
        %v1235 = vand.u32 %v208, 4294901760
        %v1236 = vsub.f32 %v208, %v1235
        %1237 = vmatmul.mubr.f32.gmra.mrb[0].mxu0 %v1236
        %v1238 = vpop.f32.mrb[0].mxu0
        %v1239 = vadd.f32 %v1026, %v1238
        %v1240 = vpop.f32.mrb[0].mxu0
        %v1241 = vadd.f32 %v1028, %v1240
        %1242 = vdwg.mxu0
        %v1243 = vand.u32 %v213, 4294901760
        %1244 = vmatprep.subr.mxu0 %v1243
        %v1245 = vand.u32 %v212, 4294901760
        %1246 = vmatpush1.msra.mxu0 %v1245
        %v1247 = vand.u32 %v217, 4294901760
        %1248 = vmatprep.subr.mxu0 %v1247
        %v1249 = vand.u32 %v216, 4294901760
        %1250 = vmatpush1.msra.mxu0 %v1249
        %v1251 = vand.u32 %v221, 4294901760
        %1252 = vmatprep.subr.mxu0 %v1251
        %v1253 = vand.u32 %v220, 4294901760
        %1254 = vmatpush1.msra.mxu0 %v1253
        %v1255 = vand.u32 %v225, 4294901760
        %1256 = vmatprep.subr.mxu0 %v1255
        %v1257 = vand.u32 %v224, 4294901760
        %1258 = vmatpush1.msra.mxu0 %v1257
        %v1259 = vand.u32 %v229, 4294901760
        %1260 = vmatprep.subr.mxu0 %v1259
        %v1261 = vand.u32 %v228, 4294901760
        %1262 = vmatpush1.msra.mxu0 %v1261
        %v1263 = vand.u32 %v233, 4294901760
        %1264 = vmatprep.subr.mxu0 %v1263
        %v1265 = vand.u32 %v232, 4294901760
        %1266 = vmatpush1.msra.mxu0 %v1265
        %v1267 = vand.u32 %v237, 4294901760
        %1268 = vmatprep.subr.mxu0 %v1267
        %v1269 = vand.u32 %v236, 4294901760
        %1270 = vmatpush1.msra.mxu0 %v1269
        %v1271 = vand.u32 %v241, 4294901760
        %1272 = vmatprep.subr.mxu0 %v1271
        %v1273 = vand.u32 %v240, 4294901760
        %1274 = vmatpush1.msra.mxu0 %v1273
        %v1275 = vand.u32 %v245, 4294901760
        %1276 = vmatprep.subr.mxu0 %v1275
        %v1277 = vand.u32 %v244, 4294901760
        %1278 = vmatpush1.msra.mxu0 %v1277
        %v1279 = vand.u32 %v249, 4294901760
        %1280 = vmatprep.subr.mxu0 %v1279
        %v1281 = vand.u32 %v248, 4294901760
        %1282 = vmatpush1.msra.mxu0 %v1281
        %v1283 = vand.u32 %v253, 4294901760
        %1284 = vmatprep.subr.mxu0 %v1283
        %v1285 = vand.u32 %v252, 4294901760
        %1286 = vmatpush1.msra.mxu0 %v1285
        %v1287 = vand.u32 %v257, 4294901760
        %1288 = vmatprep.subr.mxu0 %v1287
        %v1289 = vand.u32 %v256, 4294901760
        %1290 = vmatpush1.msra.mxu0 %v1289
        %v1291 = vand.u32 %v261, 4294901760
        %1292 = vmatprep.subr.mxu0 %v1291
        %v1293 = vand.u32 %v260, 4294901760
        %1294 = vmatpush1.msra.mxu0 %v1293
        %v1295 = vand.u32 %v265, 4294901760
        %1296 = vmatprep.subr.mxu0 %v1295
        %v1297 = vand.u32 %v264, 4294901760
        %1298 = vmatpush1.msra.mxu0 %v1297
        %v1299 = vand.u32 %v269, 4294901760
        %1300 = vmatprep.subr.mxu0 %v1299
        %v1301 = vand.u32 %v268, 4294901760
        %1302 = vmatpush1.msra.mxu0 %v1301
        %v1303 = vand.u32 %v273, 4294901760
        %1304 = vmatprep.subr.mxu0 %v1303
        %v1305 = vand.u32 %v272, 4294901760
        %1306 = vmatpush1.msra.mxu0 %v1305
        %v1307 = vand.u32 %v277, 4294901760
        %1308 = vmatprep.subr.mxu0 %v1307
        %v1309 = vand.u32 %v276, 4294901760
        %1310 = vmatpush1.msra.mxu0 %v1309
        %v1311 = vand.u32 %v281, 4294901760
        %1312 = vmatprep.subr.mxu0 %v1311
        %v1313 = vand.u32 %v280, 4294901760
        %1314 = vmatpush1.msra.mxu0 %v1313
        %v1315 = vand.u32 %v285, 4294901760
        %1316 = vmatprep.subr.mxu0 %v1315
        %v1317 = vand.u32 %v284, 4294901760
        %1318 = vmatpush1.msra.mxu0 %v1317
        %v1319 = vand.u32 %v289, 4294901760
        %1320 = vmatprep.subr.mxu0 %v1319
        %v1321 = vand.u32 %v288, 4294901760
        %1322 = vmatpush1.msra.mxu0 %v1321
        %v1323 = vand.u32 %v293, 4294901760
        %1324 = vmatprep.subr.mxu0 %v1323
        %v1325 = vand.u32 %v292, 4294901760
        %1326 = vmatpush1.msra.mxu0 %v1325
        %v1327 = vand.u32 %v297, 4294901760
        %1328 = vmatprep.subr.mxu0 %v1327
        %v1329 = vand.u32 %v296, 4294901760
        %1330 = vmatpush1.msra.mxu0 %v1329
        %v1331 = vand.u32 %v301, 4294901760
        %1332 = vmatprep.subr.mxu0 %v1331
        %v1333 = vand.u32 %v300, 4294901760
        %1334 = vmatpush1.msra.mxu0 %v1333
        %v1335 = vand.u32 %v305, 4294901760
        %1336 = vmatprep.subr.mxu0 %v1335
        %v1337 = vand.u32 %v304, 4294901760
        %1338 = vmatpush1.msra.mxu0 %v1337
        %v1339 = vand.u32 %v309, 4294901760
        %1340 = vmatprep.subr.mxu0 %v1339
        %v1341 = vand.u32 %v308, 4294901760
        %1342 = vmatpush1.msra.mxu0 %v1341
        %v1343 = vand.u32 %v313, 4294901760
        %1344 = vmatprep.subr.mxu0 %v1343
        %v1345 = vand.u32 %v312, 4294901760
        %1346 = vmatpush1.msra.mxu0 %v1345
        %v1347 = vand.u32 %v317, 4294901760
        %1348 = vmatprep.subr.mxu0 %v1347
        %v1349 = vand.u32 %v316, 4294901760
        %1350 = vmatpush1.msra.mxu0 %v1349
        %v1351 = vand.u32 %v321, 4294901760
        %1352 = vmatprep.subr.mxu0 %v1351
        %v1353 = vand.u32 %v320, 4294901760
        %1354 = vmatpush1.msra.mxu0 %v1353
        %v1355 = vand.u32 %v325, 4294901760
        %1356 = vmatprep.subr.mxu0 %v1355
        %v1357 = vand.u32 %v324, 4294901760
        %1358 = vmatpush1.msra.mxu0 %v1357
        %v1359 = vand.u32 %v329, 4294901760
        %1360 = vmatprep.subr.mxu0 %v1359
        %v1361 = vand.u32 %v328, 4294901760
        %1362 = vmatpush1.msra.mxu0 %v1361
        %v1363 = vand.u32 %v333, 4294901760
        %1364 = vmatprep.subr.mxu0 %v1363
        %v1365 = vand.u32 %v332, 4294901760
        %1366 = vmatpush1.msra.mxu0 %v1365
        %v1367 = vand.u32 %v337, 4294901760
        %1368 = vmatprep.subr.mxu0 %v1367
        %v1369 = vand.u32 %v336, 4294901760
        %1370 = vmatpush1.msra.mxu0 %v1369
        %v1371 = vand.u32 %v205, 4294901760
        %v1372 = vsub.f32 %v205, %v1371
        %v1373 = vand.u32 %v1372, 4294901760
        %1374 = vmatprep.mubr.f32.mxu0 %v1373
        %v1375 = vand.u32 %v204, 4294901760
        %v1376 = vsub.f32 %v204, %v1375
        %v1377 = vand.u32 %v1376, 4294901760
        %1378 = vmatmul.mubr.f32.gmra.mrb[0].mxu0 %v1377
        %v1379 = vpop.f32.mrb[0].mxu0
        %v1380 = vadd.f32 %v1229, %v1379
        %v1381 = vpop.f32.mrb[0].mxu0
        %v1382 = vadd.f32 %v1231, %v1381
        %v1383 = vand.u32 %v209, 4294901760
        %v1384 = vsub.f32 %v209, %v1383
        %v1385 = vand.u32 %v1384, 4294901760
        %1386 = vmatprep.mubr.f32.mxu0 %v1385
        %v1387 = vand.u32 %v208, 4294901760
        %v1388 = vsub.f32 %v208, %v1387
        %v1389 = vand.u32 %v1388, 4294901760
        %1390 = vmatmul.mubr.f32.gmra.mrb[0].mxu0 %v1389
        %v1391 = vpop.f32.mrb[0].mxu0
        %v1392 = vadd.f32 %v1239, %v1391
        %v1393 = vpop.f32.mrb[0].mxu0
        %v1394 = vadd.f32 %v1241, %v1393
        %1395 = vdwg.mxu0
        %v1396 = vand.u32 %v213, 4294901760
        %v1397 = vsub.f32 %v213, %v1396
        %v1398 = vand.u32 %v1397, 4294901760
        %1399 = vmatprep.subr.mxu0 %v1398
        %v1400 = vand.u32 %v212, 4294901760
        %v1401 = vsub.f32 %v212, %v1400
        %v1402 = vand.u32 %v1401, 4294901760
        %1403 = vmatpush1.msra.mxu0 %v1402
        %v1404 = vand.u32 %v217, 4294901760
        %v1405 = vsub.f32 %v217, %v1404
        %v1406 = vand.u32 %v1405, 4294901760
        %1407 = vmatprep.subr.mxu0 %v1406
        %v1408 = vand.u32 %v216, 4294901760
        %v1409 = vsub.f32 %v216, %v1408
        %v1410 = vand.u32 %v1409, 4294901760
        %1411 = vmatpush1.msra.mxu0 %v1410
        %v1412 = vand.u32 %v221, 4294901760
        %v1413 = vsub.f32 %v221, %v1412
        %v1414 = vand.u32 %v1413, 4294901760
        %1415 = vmatprep.subr.mxu0 %v1414
        %v1416 = vand.u32 %v220, 4294901760
        %v1417 = vsub.f32 %v220, %v1416
        %v1418 = vand.u32 %v1417, 4294901760
        %1419 = vmatpush1.msra.mxu0 %v1418
        %v1420 = vand.u32 %v225, 4294901760
        %v1421 = vsub.f32 %v225, %v1420
        %v1422 = vand.u32 %v1421, 4294901760
        %1423 = vmatprep.subr.mxu0 %v1422
        %v1424 = vand.u32 %v224, 4294901760
        %v1425 = vsub.f32 %v224, %v1424
        %v1426 = vand.u32 %v1425, 4294901760
        %1427 = vmatpush1.msra.mxu0 %v1426
        %v1428 = vand.u32 %v229, 4294901760
        %v1429 = vsub.f32 %v229, %v1428
        %v1430 = vand.u32 %v1429, 4294901760
        %1431 = vmatprep.subr.mxu0 %v1430
        %v1432 = vand.u32 %v228, 4294901760
        %v1433 = vsub.f32 %v228, %v1432
        %v1434 = vand.u32 %v1433, 4294901760
        %1435 = vmatpush1.msra.mxu0 %v1434
        %v1436 = vand.u32 %v233, 4294901760
        %v1437 = vsub.f32 %v233, %v1436
        %v1438 = vand.u32 %v1437, 4294901760
        %1439 = vmatprep.subr.mxu0 %v1438
        %v1440 = vand.u32 %v232, 4294901760
        %v1441 = vsub.f32 %v232, %v1440
        %v1442 = vand.u32 %v1441, 4294901760
        %1443 = vmatpush1.msra.mxu0 %v1442
        %v1444 = vand.u32 %v237, 4294901760
        %v1445 = vsub.f32 %v237, %v1444
        %v1446 = vand.u32 %v1445, 4294901760
        %1447 = vmatprep.subr.mxu0 %v1446
        %v1448 = vand.u32 %v236, 4294901760
        %v1449 = vsub.f32 %v236, %v1448
        %v1450 = vand.u32 %v1449, 4294901760
        %1451 = vmatpush1.msra.mxu0 %v1450
        %v1452 = vand.u32 %v241, 4294901760
        %v1453 = vsub.f32 %v241, %v1452
        %v1454 = vand.u32 %v1453, 4294901760
        %1455 = vmatprep.subr.mxu0 %v1454
        %v1456 = vand.u32 %v240, 4294901760
        %v1457 = vsub.f32 %v240, %v1456
        %v1458 = vand.u32 %v1457, 4294901760
        %1459 = vmatpush1.msra.mxu0 %v1458
        %v1460 = vand.u32 %v245, 4294901760
        %v1461 = vsub.f32 %v245, %v1460
        %v1462 = vand.u32 %v1461, 4294901760
        %1463 = vmatprep.subr.mxu0 %v1462
        %v1464 = vand.u32 %v244, 4294901760
        %v1465 = vsub.f32 %v244, %v1464
        %v1466 = vand.u32 %v1465, 4294901760
        %1467 = vmatpush1.msra.mxu0 %v1466
        %v1468 = vand.u32 %v249, 4294901760
        %v1469 = vsub.f32 %v249, %v1468
        %v1470 = vand.u32 %v1469, 4294901760
        %1471 = vmatprep.subr.mxu0 %v1470
        %v1472 = vand.u32 %v248, 4294901760
        %v1473 = vsub.f32 %v248, %v1472
        %v1474 = vand.u32 %v1473, 4294901760
        %1475 = vmatpush1.msra.mxu0 %v1474
        %v1476 = vand.u32 %v253, 4294901760
        %v1477 = vsub.f32 %v253, %v1476
        %v1478 = vand.u32 %v1477, 4294901760
        %1479 = vmatprep.subr.mxu0 %v1478
        %v1480 = vand.u32 %v252, 4294901760
        %v1481 = vsub.f32 %v252, %v1480
        %v1482 = vand.u32 %v1481, 4294901760
        %1483 = vmatpush1.msra.mxu0 %v1482
        %v1484 = vand.u32 %v257, 4294901760
        %v1485 = vsub.f32 %v257, %v1484
        %v1486 = vand.u32 %v1485, 4294901760
        %1487 = vmatprep.subr.mxu0 %v1486
        %v1488 = vand.u32 %v256, 4294901760
        %v1489 = vsub.f32 %v256, %v1488
        %v1490 = vand.u32 %v1489, 4294901760
        %1491 = vmatpush1.msra.mxu0 %v1490
        %v1492 = vand.u32 %v261, 4294901760
        %v1493 = vsub.f32 %v261, %v1492
        %v1494 = vand.u32 %v1493, 4294901760
        %1495 = vmatprep.subr.mxu0 %v1494
        %v1496 = vand.u32 %v260, 4294901760
        %v1497 = vsub.f32 %v260, %v1496
        %v1498 = vand.u32 %v1497, 4294901760
        %1499 = vmatpush1.msra.mxu0 %v1498
        %v1500 = vand.u32 %v265, 4294901760
        %v1501 = vsub.f32 %v265, %v1500
        %v1502 = vand.u32 %v1501, 4294901760
        %1503 = vmatprep.subr.mxu0 %v1502
        %v1504 = vand.u32 %v264, 4294901760
        %v1505 = vsub.f32 %v264, %v1504
        %v1506 = vand.u32 %v1505, 4294901760
        %1507 = vmatpush1.msra.mxu0 %v1506
        %v1508 = vand.u32 %v269, 4294901760
        %v1509 = vsub.f32 %v269, %v1508
        %v1510 = vand.u32 %v1509, 4294901760
        %1511 = vmatprep.subr.mxu0 %v1510
        %v1512 = vand.u32 %v268, 4294901760
        %v1513 = vsub.f32 %v268, %v1512
        %v1514 = vand.u32 %v1513, 4294901760
        %1515 = vmatpush1.msra.mxu0 %v1514
        %v1516 = vand.u32 %v273, 4294901760
        %v1517 = vsub.f32 %v273, %v1516
        %v1518 = vand.u32 %v1517, 4294901760
        %1519 = vmatprep.subr.mxu0 %v1518
        %v1520 = vand.u32 %v272, 4294901760
        %v1521 = vsub.f32 %v272, %v1520
        %v1522 = vand.u32 %v1521, 4294901760
        %1523 = vmatpush1.msra.mxu0 %v1522
        %v1524 = vand.u32 %v277, 4294901760
        %v1525 = vsub.f32 %v277, %v1524
        %v1526 = vand.u32 %v1525, 4294901760
        %1527 = vmatprep.subr.mxu0 %v1526
        %v1528 = vand.u32 %v276, 4294901760
        %v1529 = vsub.f32 %v276, %v1528
        %v1530 = vand.u32 %v1529, 4294901760
        %1531 = vmatpush1.msra.mxu0 %v1530
        %v1532 = vand.u32 %v281, 4294901760
        %v1533 = vsub.f32 %v281, %v1532
        %v1534 = vand.u32 %v1533, 4294901760
        %1535 = vmatprep.subr.mxu0 %v1534
        %v1536 = vand.u32 %v280, 4294901760
        %v1537 = vsub.f32 %v280, %v1536
        %v1538 = vand.u32 %v1537, 4294901760
        %1539 = vmatpush1.msra.mxu0 %v1538
        %v1540 = vand.u32 %v285, 4294901760
        %v1541 = vsub.f32 %v285, %v1540
        %v1542 = vand.u32 %v1541, 4294901760
        %1543 = vmatprep.subr.mxu0 %v1542
        %v1544 = vand.u32 %v284, 4294901760
        %v1545 = vsub.f32 %v284, %v1544
        %v1546 = vand.u32 %v1545, 4294901760
        %1547 = vmatpush1.msra.mxu0 %v1546
        %v1548 = vand.u32 %v289, 4294901760
        %v1549 = vsub.f32 %v289, %v1548
        %v1550 = vand.u32 %v1549, 4294901760
        %1551 = vmatprep.subr.mxu0 %v1550
        %v1552 = vand.u32 %v288, 4294901760
        %v1553 = vsub.f32 %v288, %v1552
        %v1554 = vand.u32 %v1553, 4294901760
        %1555 = vmatpush1.msra.mxu0 %v1554
        %v1556 = vand.u32 %v293, 4294901760
        %v1557 = vsub.f32 %v293, %v1556
        %v1558 = vand.u32 %v1557, 4294901760
        %1559 = vmatprep.subr.mxu0 %v1558
        %v1560 = vand.u32 %v292, 4294901760
        %v1561 = vsub.f32 %v292, %v1560
        %v1562 = vand.u32 %v1561, 4294901760
        %1563 = vmatpush1.msra.mxu0 %v1562
        %v1564 = vand.u32 %v297, 4294901760
        %v1565 = vsub.f32 %v297, %v1564
        %v1566 = vand.u32 %v1565, 4294901760
        %1567 = vmatprep.subr.mxu0 %v1566
        %v1568 = vand.u32 %v296, 4294901760
        %v1569 = vsub.f32 %v296, %v1568
        %v1570 = vand.u32 %v1569, 4294901760
        %1571 = vmatpush1.msra.mxu0 %v1570
        %v1572 = vand.u32 %v301, 4294901760
        %v1573 = vsub.f32 %v301, %v1572
        %v1574 = vand.u32 %v1573, 4294901760
        %1575 = vmatprep.subr.mxu0 %v1574
        %v1576 = vand.u32 %v300, 4294901760
        %v1577 = vsub.f32 %v300, %v1576
        %v1578 = vand.u32 %v1577, 4294901760
        %1579 = vmatpush1.msra.mxu0 %v1578
        %v1580 = vand.u32 %v305, 4294901760
        %v1581 = vsub.f32 %v305, %v1580
        %v1582 = vand.u32 %v1581, 4294901760
        %1583 = vmatprep.subr.mxu0 %v1582
        %v1584 = vand.u32 %v304, 4294901760
        %v1585 = vsub.f32 %v304, %v1584
        %v1586 = vand.u32 %v1585, 4294901760
        %1587 = vmatpush1.msra.mxu0 %v1586
        %v1588 = vand.u32 %v309, 4294901760
        %v1589 = vsub.f32 %v309, %v1588
        %v1590 = vand.u32 %v1589, 4294901760
        %1591 = vmatprep.subr.mxu0 %v1590
        %v1592 = vand.u32 %v308, 4294901760
        %v1593 = vsub.f32 %v308, %v1592
        %v1594 = vand.u32 %v1593, 4294901760
        %1595 = vmatpush1.msra.mxu0 %v1594
        %v1596 = vand.u32 %v313, 4294901760
        %v1597 = vsub.f32 %v313, %v1596
        %v1598 = vand.u32 %v1597, 4294901760
        %1599 = vmatprep.subr.mxu0 %v1598
        %v1600 = vand.u32 %v312, 4294901760
        %v1601 = vsub.f32 %v312, %v1600
        %v1602 = vand.u32 %v1601, 4294901760
        %1603 = vmatpush1.msra.mxu0 %v1602
        %v1604 = vand.u32 %v317, 4294901760
        %v1605 = vsub.f32 %v317, %v1604
        %v1606 = vand.u32 %v1605, 4294901760
        %1607 = vmatprep.subr.mxu0 %v1606
        %v1608 = vand.u32 %v316, 4294901760
        %v1609 = vsub.f32 %v316, %v1608
        %v1610 = vand.u32 %v1609, 4294901760
        %1611 = vmatpush1.msra.mxu0 %v1610
        %v1612 = vand.u32 %v321, 4294901760
        %v1613 = vsub.f32 %v321, %v1612
        %v1614 = vand.u32 %v1613, 4294901760
        %1615 = vmatprep.subr.mxu0 %v1614
        %v1616 = vand.u32 %v320, 4294901760
        %v1617 = vsub.f32 %v320, %v1616
        %v1618 = vand.u32 %v1617, 4294901760
        %1619 = vmatpush1.msra.mxu0 %v1618
        %v1620 = vand.u32 %v325, 4294901760
        %v1621 = vsub.f32 %v325, %v1620
        %v1622 = vand.u32 %v1621, 4294901760
        %1623 = vmatprep.subr.mxu0 %v1622
        %v1624 = vand.u32 %v324, 4294901760
        %v1625 = vsub.f32 %v324, %v1624
        %v1626 = vand.u32 %v1625, 4294901760
        %1627 = vmatpush1.msra.mxu0 %v1626
        %v1628 = vand.u32 %v329, 4294901760
        %v1629 = vsub.f32 %v329, %v1628
        %v1630 = vand.u32 %v1629, 4294901760
        %1631 = vmatprep.subr.mxu0 %v1630
        %v1632 = vand.u32 %v328, 4294901760
        %v1633 = vsub.f32 %v328, %v1632
        %v1634 = vand.u32 %v1633, 4294901760
        %1635 = vmatpush1.msra.mxu0 %v1634
        %v1636 = vand.u32 %v333, 4294901760
        %v1637 = vsub.f32 %v333, %v1636
        %v1638 = vand.u32 %v1637, 4294901760
        %1639 = vmatprep.subr.mxu0 %v1638
        %v1640 = vand.u32 %v332, 4294901760
        %v1641 = vsub.f32 %v332, %v1640
        %v1642 = vand.u32 %v1641, 4294901760
        %1643 = vmatpush1.msra.mxu0 %v1642
        %v1644 = vand.u32 %v337, 4294901760
        %v1645 = vsub.f32 %v337, %v1644
        %v1646 = vand.u32 %v1645, 4294901760
        %1647 = vmatprep.subr.mxu0 %v1646
        %v1648 = vand.u32 %v336, 4294901760
        %v1649 = vsub.f32 %v336, %v1648
        %v1650 = vand.u32 %v1649, 4294901760
        %1651 = vmatpush1.msra.mxu0 %v1650
        %v1652 = vand.u32 %v205, 4294901760
        %1653 = vmatprep.mubr.f32.mxu0 %v1652
        %v1654 = vand.u32 %v204, 4294901760
        %1655 = vmatmul.mubr.f32.gmra.mrb[0].mxu0 %v1654
        %v1656 = vpop.f32.mrb[0].mxu0
        %v1657 = vadd.f32 %v1380, %v1656
        %v1658 = vpop.f32.mrb[0].mxu0
        %v1659 = vadd.f32 %v1382, %v1658
        %v1660 = vand.u32 %v209, 4294901760
        %1661 = vmatprep.mubr.f32.mxu0 %v1660
        %v1662 = vand.u32 %v208, 4294901760
        %1663 = vmatmul.mubr.f32.gmra.mrb[0].mxu0 %v1662
        %v1664 = vpop.f32.mrb[0].mxu0
        %v1665 = vadd.f32 %v1392, %v1664
        %v1666 = vpop.f32.mrb[0].mxu0
        %v1667 = vadd.f32 %v1394, %v1666
        %1668 = vdwg.mxu0
        %v1669 = vand.u32 %v213, 4294901760
        %1670 = vmatprep.subr.mxu0 %v1669
        %v1671 = vand.u32 %v212, 4294901760
        %1672 = vmatpush1.msra.mxu0 %v1671
        %v1673 = vand.u32 %v217, 4294901760
        %1674 = vmatprep.subr.mxu0 %v1673
        %v1675 = vand.u32 %v216, 4294901760
        %1676 = vmatpush1.msra.mxu0 %v1675
        %v1677 = vand.u32 %v221, 4294901760
        %1678 = vmatprep.subr.mxu0 %v1677
        %v1679 = vand.u32 %v220, 4294901760
        %1680 = vmatpush1.msra.mxu0 %v1679
        %v1681 = vand.u32 %v225, 4294901760
        %1682 = vmatprep.subr.mxu0 %v1681
        %v1683 = vand.u32 %v224, 4294901760
        %1684 = vmatpush1.msra.mxu0 %v1683
        %v1685 = vand.u32 %v229, 4294901760
        %1686 = vmatprep.subr.mxu0 %v1685
        %v1687 = vand.u32 %v228, 4294901760
        %1688 = vmatpush1.msra.mxu0 %v1687
        %v1689 = vand.u32 %v233, 4294901760
        %1690 = vmatprep.subr.mxu0 %v1689
        %v1691 = vand.u32 %v232, 4294901760
        %1692 = vmatpush1.msra.mxu0 %v1691
        %v1693 = vand.u32 %v237, 4294901760
        %1694 = vmatprep.subr.mxu0 %v1693
        %v1695 = vand.u32 %v236, 4294901760
        %1696 = vmatpush1.msra.mxu0 %v1695
        %v1697 = vand.u32 %v241, 4294901760
        %1698 = vmatprep.subr.mxu0 %v1697
        %v1699 = vand.u32 %v240, 4294901760
        %1700 = vmatpush1.msra.mxu0 %v1699
        %v1701 = vand.u32 %v245, 4294901760
        %1702 = vmatprep.subr.mxu0 %v1701
        %v1703 = vand.u32 %v244, 4294901760
        %1704 = vmatpush1.msra.mxu0 %v1703
        %v1705 = vand.u32 %v249, 4294901760
        %1706 = vmatprep.subr.mxu0 %v1705
        %v1707 = vand.u32 %v248, 4294901760
        %1708 = vmatpush1.msra.mxu0 %v1707
        %v1709 = vand.u32 %v253, 4294901760
        %1710 = vmatprep.subr.mxu0 %v1709
        %v1711 = vand.u32 %v252, 4294901760
        %1712 = vmatpush1.msra.mxu0 %v1711
        %v1713 = vand.u32 %v257, 4294901760
        %1714 = vmatprep.subr.mxu0 %v1713
        %v1715 = vand.u32 %v256, 4294901760
        %1716 = vmatpush1.msra.mxu0 %v1715
        %v1717 = vand.u32 %v261, 4294901760
        %1718 = vmatprep.subr.mxu0 %v1717
        %v1719 = vand.u32 %v260, 4294901760
        %1720 = vmatpush1.msra.mxu0 %v1719
        %v1721 = vand.u32 %v265, 4294901760
        %1722 = vmatprep.subr.mxu0 %v1721
        %v1723 = vand.u32 %v264, 4294901760
        %1724 = vmatpush1.msra.mxu0 %v1723
        %v1725 = vand.u32 %v269, 4294901760
        %1726 = vmatprep.subr.mxu0 %v1725
        %v1727 = vand.u32 %v268, 4294901760
        %1728 = vmatpush1.msra.mxu0 %v1727
        %v1729 = vand.u32 %v273, 4294901760
        %1730 = vmatprep.subr.mxu0 %v1729
        %v1731 = vand.u32 %v272, 4294901760
        %1732 = vmatpush1.msra.mxu0 %v1731
        %v1733 = vand.u32 %v277, 4294901760
        %1734 = vmatprep.subr.mxu0 %v1733
        %v1735 = vand.u32 %v276, 4294901760
        %1736 = vmatpush1.msra.mxu0 %v1735
        %v1737 = vand.u32 %v281, 4294901760
        %1738 = vmatprep.subr.mxu0 %v1737
        %v1739 = vand.u32 %v280, 4294901760
        %1740 = vmatpush1.msra.mxu0 %v1739
        %v1741 = vand.u32 %v285, 4294901760
        %1742 = vmatprep.subr.mxu0 %v1741
        %v1743 = vand.u32 %v284, 4294901760
        %1744 = vmatpush1.msra.mxu0 %v1743
        %v1745 = vand.u32 %v289, 4294901760
        %1746 = vmatprep.subr.mxu0 %v1745
        %v1747 = vand.u32 %v288, 4294901760
        %1748 = vmatpush1.msra.mxu0 %v1747
        %v1749 = vand.u32 %v293, 4294901760
        %1750 = vmatprep.subr.mxu0 %v1749
        %v1751 = vand.u32 %v292, 4294901760
        %1752 = vmatpush1.msra.mxu0 %v1751
        %v1753 = vand.u32 %v297, 4294901760
        %1754 = vmatprep.subr.mxu0 %v1753
        %v1755 = vand.u32 %v296, 4294901760
        %1756 = vmatpush1.msra.mxu0 %v1755
        %v1757 = vand.u32 %v301, 4294901760
        %1758 = vmatprep.subr.mxu0 %v1757
        %v1759 = vand.u32 %v300, 4294901760
        %1760 = vmatpush1.msra.mxu0 %v1759
        %v1761 = vand.u32 %v305, 4294901760
        %1762 = vmatprep.subr.mxu0 %v1761
        %v1763 = vand.u32 %v304, 4294901760
        %1764 = vmatpush1.msra.mxu0 %v1763
        %v1765 = vand.u32 %v309, 4294901760
        %1766 = vmatprep.subr.mxu0 %v1765
        %v1767 = vand.u32 %v308, 4294901760
        %1768 = vmatpush1.msra.mxu0 %v1767
        %v1769 = vand.u32 %v313, 4294901760
        %1770 = vmatprep.subr.mxu0 %v1769
        %v1771 = vand.u32 %v312, 4294901760
        %1772 = vmatpush1.msra.mxu0 %v1771
        %v1773 = vand.u32 %v317, 4294901760
        %1774 = vmatprep.subr.mxu0 %v1773
        %v1775 = vand.u32 %v316, 4294901760
        %1776 = vmatpush1.msra.mxu0 %v1775
        %v1777 = vand.u32 %v321, 4294901760
        %1778 = vmatprep.subr.mxu0 %v1777
        %v1779 = vand.u32 %v320, 4294901760
        %1780 = vmatpush1.msra.mxu0 %v1779
        %v1781 = vand.u32 %v325, 4294901760
        %1782 = vmatprep.subr.mxu0 %v1781
        %v1783 = vand.u32 %v324, 4294901760
        %1784 = vmatpush1.msra.mxu0 %v1783
        %v1785 = vand.u32 %v329, 4294901760
        %1786 = vmatprep.subr.mxu0 %v1785
        %v1787 = vand.u32 %v328, 4294901760
        %1788 = vmatpush1.msra.mxu0 %v1787
        %v1789 = vand.u32 %v333, 4294901760
        %1790 = vmatprep.subr.mxu0 %v1789
        %v1791 = vand.u32 %v332, 4294901760
        %1792 = vmatpush1.msra.mxu0 %v1791
        %v1793 = vand.u32 %v337, 4294901760
        %1794 = vmatprep.subr.mxu0 %v1793
        %v1795 = vand.u32 %v336, 4294901760
        %1796 = vmatpush1.msra.mxu0 %v1795
        %v1797 = vand.u32 %v205, 4294901760
        %1798 = vmatprep.mubr.f32.mxu0 %v1797
        %v1799 = vand.u32 %v204, 4294901760
        %1800 = vmatmul.mubr.f32.gmra.mrb[0].mxu0 %v1799
        %v1801 = vpop.f32.mrb[0].mxu0
        %v1802 = vadd.f32 %v1657, %v1801
        %v1803 = vpop.f32.mrb[0].mxu0
        %v1804 = vadd.f32 %v1659, %v1803
        %v1805 = vand.u32 %v209, 4294901760
        %1806 = vmatprep.mubr.f32.mxu0 %v1805
        %v1807 = vand.u32 %v208, 4294901760
        %1808 = vmatmul.mubr.f32.gmra.mrb[0].mxu0 %v1807
        %v1809 = vpop.f32.mrb[0].mxu0
        %v1810 = vadd.f32 %v1665, %v1809
        %v1811 = vpop.f32.mrb[0].mxu0
        %v1812 = vadd.f32 %v1667, %v1811
        %1813 = vdwg.mxu0
        %v1814 = vand.u32 %v341, 4294901760
        %1815 = vmatprep.subr.mxu0 %v1814
        %v1816 = vand.u32 %v340, 4294901760
        %1817 = vmatpush1.msra.mxu0 %v1816
        %v1818 = vand.u32 %v345, 4294901760
        %1819 = vmatprep.subr.mxu0 %v1818
        %v1820 = vand.u32 %v344, 4294901760
        %1821 = vmatpush1.msra.mxu0 %v1820
        %v1822 = vand.u32 %v349, 4294901760
        %1823 = vmatprep.subr.mxu0 %v1822
        %v1824 = vand.u32 %v348, 4294901760
        %1825 = vmatpush1.msra.mxu0 %v1824
        %v1826 = vand.u32 %v353, 4294901760
        %1827 = vmatprep.subr.mxu0 %v1826
        %v1828 = vand.u32 %v352, 4294901760
        %1829 = vmatpush1.msra.mxu0 %v1828
        %v1830 = vand.u32 %v357, 4294901760
        %1831 = vmatprep.subr.mxu0 %v1830
        %v1832 = vand.u32 %v356, 4294901760
        %1833 = vmatpush1.msra.mxu0 %v1832
        %v1834 = vand.u32 %v361, 4294901760
        %1835 = vmatprep.subr.mxu0 %v1834
        %v1836 = vand.u32 %v360, 4294901760
        %1837 = vmatpush1.msra.mxu0 %v1836
        %v1838 = vand.u32 %v365, 4294901760
        %1839 = vmatprep.subr.mxu0 %v1838
        %v1840 = vand.u32 %v364, 4294901760
        %1841 = vmatpush1.msra.mxu0 %v1840
        %v1842 = vand.u32 %v369, 4294901760
        %1843 = vmatprep.subr.mxu0 %v1842
        %v1844 = vand.u32 %v368, 4294901760
        %1845 = vmatpush1.msra.mxu0 %v1844
        %v1846 = vand.u32 %v373, 4294901760
        %1847 = vmatprep.subr.mxu0 %v1846
        %v1848 = vand.u32 %v372, 4294901760
        %1849 = vmatpush1.msra.mxu0 %v1848
        %v1850 = vand.u32 %v377, 4294901760
        %1851 = vmatprep.subr.mxu0 %v1850
        %v1852 = vand.u32 %v376, 4294901760
        %1853 = vmatpush1.msra.mxu0 %v1852
        %v1854 = vand.u32 %v381, 4294901760
        %1855 = vmatprep.subr.mxu0 %v1854
        %v1856 = vand.u32 %v380, 4294901760
        %1857 = vmatpush1.msra.mxu0 %v1856
        %v1858 = vand.u32 %v385, 4294901760
        %1859 = vmatprep.subr.mxu0 %v1858
        %v1860 = vand.u32 %v384, 4294901760
        %1861 = vmatpush1.msra.mxu0 %v1860
        %v1862 = vand.u32 %v389, 4294901760
        %1863 = vmatprep.subr.mxu0 %v1862
        %v1864 = vand.u32 %v388, 4294901760
        %1865 = vmatpush1.msra.mxu0 %v1864
        %v1866 = vand.u32 %v393, 4294901760
        %1867 = vmatprep.subr.mxu0 %v1866
        %v1868 = vand.u32 %v392, 4294901760
        %1869 = vmatpush1.msra.mxu0 %v1868
        %v1870 = vand.u32 %v397, 4294901760
        %1871 = vmatprep.subr.mxu0 %v1870
        %v1872 = vand.u32 %v396, 4294901760
        %1873 = vmatpush1.msra.mxu0 %v1872
        %v1874 = vand.u32 %v401, 4294901760
        %1875 = vmatprep.subr.mxu0 %v1874
        %v1876 = vand.u32 %v400, 4294901760
        %1877 = vmatpush1.msra.mxu0 %v1876
        %v1878 = vand.u32 %v405, 4294901760
        %1879 = vmatprep.subr.mxu0 %v1878
        %v1880 = vand.u32 %v404, 4294901760
        %1881 = vmatpush1.msra.mxu0 %v1880
        %v1882 = vand.u32 %v409, 4294901760
        %1883 = vmatprep.subr.mxu0 %v1882
        %v1884 = vand.u32 %v408, 4294901760
        %1885 = vmatpush1.msra.mxu0 %v1884
        %v1886 = vand.u32 %v413, 4294901760
        %1887 = vmatprep.subr.mxu0 %v1886
        %v1888 = vand.u32 %v412, 4294901760
        %1889 = vmatpush1.msra.mxu0 %v1888
        %v1890 = vand.u32 %v417, 4294901760
        %1891 = vmatprep.subr.mxu0 %v1890
        %v1892 = vand.u32 %v416, 4294901760
        %1893 = vmatpush1.msra.mxu0 %v1892
        %v1894 = vand.u32 %v421, 4294901760
        %1895 = vmatprep.subr.mxu0 %v1894
        %v1896 = vand.u32 %v420, 4294901760
        %1897 = vmatpush1.msra.mxu0 %v1896
        %v1898 = vand.u32 %v425, 4294901760
        %1899 = vmatprep.subr.mxu0 %v1898
        %v1900 = vand.u32 %v424, 4294901760
        %1901 = vmatpush1.msra.mxu0 %v1900
        %v1902 = vand.u32 %v429, 4294901760
        %1903 = vmatprep.subr.mxu0 %v1902
        %v1904 = vand.u32 %v428, 4294901760
        %1905 = vmatpush1.msra.mxu0 %v1904
        %v1906 = vand.u32 %v433, 4294901760
        %1907 = vmatprep.subr.mxu0 %v1906
        %v1908 = vand.u32 %v432, 4294901760
        %1909 = vmatpush1.msra.mxu0 %v1908
        %v1910 = vand.u32 %v437, 4294901760
        %1911 = vmatprep.subr.mxu0 %v1910
        %v1912 = vand.u32 %v436, 4294901760
        %1913 = vmatpush1.msra.mxu0 %v1912
        %v1914 = vand.u32 %v441, 4294901760
        %1915 = vmatprep.subr.mxu0 %v1914
        %v1916 = vand.u32 %v440, 4294901760
        %1917 = vmatpush1.msra.mxu0 %v1916
        %v1918 = vand.u32 %v445, 4294901760
        %1919 = vmatprep.subr.mxu0 %v1918
        %v1920 = vand.u32 %v444, 4294901760
        %1921 = vmatpush1.msra.mxu0 %v1920
        %v1922 = vand.u32 %v449, 4294901760
        %1923 = vmatprep.subr.mxu0 %v1922
        %v1924 = vand.u32 %v448, 4294901760
        %1925 = vmatpush1.msra.mxu0 %v1924
        %v1926 = vand.u32 %v453, 4294901760
        %1927 = vmatprep.subr.mxu0 %v1926
        %v1928 = vand.u32 %v452, 4294901760
        %1929 = vmatpush1.msra.mxu0 %v1928
        %v1930 = vand.u32 %v457, 4294901760
        %1931 = vmatprep.subr.mxu0 %v1930
        %v1932 = vand.u32 %v456, 4294901760
        %1933 = vmatpush1.msra.mxu0 %v1932
        %v1934 = vand.u32 %v461, 4294901760
        %1935 = vmatprep.subr.mxu0 %v1934
        %v1936 = vand.u32 %v460, 4294901760
        %1937 = vmatpush1.msra.mxu0 %v1936
        %v1938 = vand.u32 %v465, 4294901760
        %1939 = vmatprep.subr.mxu0 %v1938
        %v1940 = vand.u32 %v464, 4294901760
        %1941 = vmatpush1.msra.mxu0 %v1940
        %v1942 = vand.u32 %v207, 4294901760
        %v1943 = vsub.f32 %v207, %v1942
        %v1944 = vand.u32 %v1943, 4294901760
        %v1945 = vsub.f32 %v1943, %v1944
        %v1946 = vand.u32 %v1945, 4294901760
        %1947 = vmatprep.mubr.f32.mxu0 %v1946
        %v1948 = vand.u32 %v206, 4294901760
        %v1949 = vsub.f32 %v206, %v1948
        %v1950 = vand.u32 %v1949, 4294901760
        %v1951 = vsub.f32 %v1949, %v1950
        %v1952 = vand.u32 %v1951, 4294901760
        %1953 = vmatmul.mubr.f32.gmra.mrb[0].mxu0 %v1952
        %v1954 = vpop.f32.mrb[0].mxu0
        %v1955 = vadd.f32 %v1802, %v1954
        %v1956 = vpop.f32.mrb[0].mxu0
        %v1957 = vadd.f32 %v1804, %v1956
        %v1958 = vand.u32 %v211, 4294901760
        %v1959 = vsub.f32 %v211, %v1958
        %v1960 = vand.u32 %v1959, 4294901760
        %v1961 = vsub.f32 %v1959, %v1960
        %v1962 = vand.u32 %v1961, 4294901760
        %1963 = vmatprep.mubr.f32.mxu0 %v1962
        %v1964 = vand.u32 %v210, 4294901760
        %v1965 = vsub.f32 %v210, %v1964
        %v1966 = vand.u32 %v1965, 4294901760
        %v1967 = vsub.f32 %v1965, %v1966
        %v1968 = vand.u32 %v1967, 4294901760
        %1969 = vmatmul.mubr.f32.gmra.mrb[0].mxu0 %v1968
        %v1970 = vpop.f32.mrb[0].mxu0
        %v1971 = vadd.f32 %v1810, %v1970
        %v1972 = vpop.f32.mrb[0].mxu0
        %v1973 = vadd.f32 %v1812, %v1972
        %1974 = vdwg.mxu0
        %v1975 = vand.u32 %v341, 4294901760
        %v1976 = vsub.f32 %v341, %v1975
        %v1977 = vand.u32 %v1976, 4294901760
        %v1978 = vsub.f32 %v1976, %v1977
        %v1979 = vand.u32 %v1978, 4294901760
        %1980 = vmatprep.subr.mxu0 %v1979
        %v1981 = vand.u32 %v340, 4294901760
        %v1982 = vsub.f32 %v340, %v1981
        %v1983 = vand.u32 %v1982, 4294901760
        %v1984 = vsub.f32 %v1982, %v1983
        %v1985 = vand.u32 %v1984, 4294901760
        %1986 = vmatpush1.msra.mxu0 %v1985
        %v1987 = vand.u32 %v345, 4294901760
        %v1988 = vsub.f32 %v345, %v1987
        %v1989 = vand.u32 %v1988, 4294901760
        %v1990 = vsub.f32 %v1988, %v1989
        %v1991 = vand.u32 %v1990, 4294901760
        %1992 = vmatprep.subr.mxu0 %v1991
        %v1993 = vand.u32 %v344, 4294901760
        %v1994 = vsub.f32 %v344, %v1993
        %v1995 = vand.u32 %v1994, 4294901760
        %v1996 = vsub.f32 %v1994, %v1995
        %v1997 = vand.u32 %v1996, 4294901760
        %1998 = vmatpush1.msra.mxu0 %v1997
        %v1999 = vand.u32 %v349, 4294901760
        %v2000 = vsub.f32 %v349, %v1999
        %v2001 = vand.u32 %v2000, 4294901760
        %v2002 = vsub.f32 %v2000, %v2001
        %v2003 = vand.u32 %v2002, 4294901760
        %2004 = vmatprep.subr.mxu0 %v2003
        %v2005 = vand.u32 %v348, 4294901760
        %v2006 = vsub.f32 %v348, %v2005
        %v2007 = vand.u32 %v2006, 4294901760
        %v2008 = vsub.f32 %v2006, %v2007
        %v2009 = vand.u32 %v2008, 4294901760
        %2010 = vmatpush1.msra.mxu0 %v2009
        %v2011 = vand.u32 %v353, 4294901760
        %v2012 = vsub.f32 %v353, %v2011
        %v2013 = vand.u32 %v2012, 4294901760
        %v2014 = vsub.f32 %v2012, %v2013
        %v2015 = vand.u32 %v2014, 4294901760
        %2016 = vmatprep.subr.mxu0 %v2015
        %v2017 = vand.u32 %v352, 4294901760
        %v2018 = vsub.f32 %v352, %v2017
        %v2019 = vand.u32 %v2018, 4294901760
        %v2020 = vsub.f32 %v2018, %v2019
        %v2021 = vand.u32 %v2020, 4294901760
        %2022 = vmatpush1.msra.mxu0 %v2021
        %v2023 = vand.u32 %v357, 4294901760
        %v2024 = vsub.f32 %v357, %v2023
        %v2025 = vand.u32 %v2024, 4294901760
        %v2026 = vsub.f32 %v2024, %v2025
        %v2027 = vand.u32 %v2026, 4294901760
        %2028 = vmatprep.subr.mxu0 %v2027
        %v2029 = vand.u32 %v356, 4294901760
        %v2030 = vsub.f32 %v356, %v2029
        %v2031 = vand.u32 %v2030, 4294901760
        %v2032 = vsub.f32 %v2030, %v2031
        %v2033 = vand.u32 %v2032, 4294901760
        %2034 = vmatpush1.msra.mxu0 %v2033
        %v2035 = vand.u32 %v361, 4294901760
        %v2036 = vsub.f32 %v361, %v2035
        %v2037 = vand.u32 %v2036, 4294901760
        %v2038 = vsub.f32 %v2036, %v2037
        %v2039 = vand.u32 %v2038, 4294901760
        %2040 = vmatprep.subr.mxu0 %v2039
        %v2041 = vand.u32 %v360, 4294901760
        %v2042 = vsub.f32 %v360, %v2041
        %v2043 = vand.u32 %v2042, 4294901760
        %v2044 = vsub.f32 %v2042, %v2043
        %v2045 = vand.u32 %v2044, 4294901760
        %2046 = vmatpush1.msra.mxu0 %v2045
        %v2047 = vand.u32 %v365, 4294901760
        %v2048 = vsub.f32 %v365, %v2047
        %v2049 = vand.u32 %v2048, 4294901760
        %v2050 = vsub.f32 %v2048, %v2049
        %v2051 = vand.u32 %v2050, 4294901760
        %2052 = vmatprep.subr.mxu0 %v2051
        %v2053 = vand.u32 %v364, 4294901760
        %v2054 = vsub.f32 %v364, %v2053
        %v2055 = vand.u32 %v2054, 4294901760
        %v2056 = vsub.f32 %v2054, %v2055
        %v2057 = vand.u32 %v2056, 4294901760
        %2058 = vmatpush1.msra.mxu0 %v2057
        %v2059 = vand.u32 %v369, 4294901760
        %v2060 = vsub.f32 %v369, %v2059
        %v2061 = vand.u32 %v2060, 4294901760
        %v2062 = vsub.f32 %v2060, %v2061
        %v2063 = vand.u32 %v2062, 4294901760
        %2064 = vmatprep.subr.mxu0 %v2063
        %v2065 = vand.u32 %v368, 4294901760
        %v2066 = vsub.f32 %v368, %v2065
        %v2067 = vand.u32 %v2066, 4294901760
        %v2068 = vsub.f32 %v2066, %v2067
        %v2069 = vand.u32 %v2068, 4294901760
        %2070 = vmatpush1.msra.mxu0 %v2069
        %v2071 = vand.u32 %v373, 4294901760
        %v2072 = vsub.f32 %v373, %v2071
        %v2073 = vand.u32 %v2072, 4294901760
        %v2074 = vsub.f32 %v2072, %v2073
        %v2075 = vand.u32 %v2074, 4294901760
        %2076 = vmatprep.subr.mxu0 %v2075
        %v2077 = vand.u32 %v372, 4294901760
        %v2078 = vsub.f32 %v372, %v2077
        %v2079 = vand.u32 %v2078, 4294901760
        %v2080 = vsub.f32 %v2078, %v2079
        %v2081 = vand.u32 %v2080, 4294901760
        %2082 = vmatpush1.msra.mxu0 %v2081
        %v2083 = vand.u32 %v377, 4294901760
        %v2084 = vsub.f32 %v377, %v2083
        %v2085 = vand.u32 %v2084, 4294901760
        %v2086 = vsub.f32 %v2084, %v2085
        %v2087 = vand.u32 %v2086, 4294901760
        %2088 = vmatprep.subr.mxu0 %v2087
        %v2089 = vand.u32 %v376, 4294901760
        %v2090 = vsub.f32 %v376, %v2089
        %v2091 = vand.u32 %v2090, 4294901760
        %v2092 = vsub.f32 %v2090, %v2091
        %v2093 = vand.u32 %v2092, 4294901760
        %2094 = vmatpush1.msra.mxu0 %v2093
        %v2095 = vand.u32 %v381, 4294901760
        %v2096 = vsub.f32 %v381, %v2095
        %v2097 = vand.u32 %v2096, 4294901760
        %v2098 = vsub.f32 %v2096, %v2097
        %v2099 = vand.u32 %v2098, 4294901760
        %2100 = vmatprep.subr.mxu0 %v2099
        %v2101 = vand.u32 %v380, 4294901760
        %v2102 = vsub.f32 %v380, %v2101
        %v2103 = vand.u32 %v2102, 4294901760
        %v2104 = vsub.f32 %v2102, %v2103
        %v2105 = vand.u32 %v2104, 4294901760
        %2106 = vmatpush1.msra.mxu0 %v2105
        %v2107 = vand.u32 %v385, 4294901760
        %v2108 = vsub.f32 %v385, %v2107
        %v2109 = vand.u32 %v2108, 4294901760
        %v2110 = vsub.f32 %v2108, %v2109
        %v2111 = vand.u32 %v2110, 4294901760
        %2112 = vmatprep.subr.mxu0 %v2111
        %v2113 = vand.u32 %v384, 4294901760
        %v2114 = vsub.f32 %v384, %v2113
        %v2115 = vand.u32 %v2114, 4294901760
        %v2116 = vsub.f32 %v2114, %v2115
        %v2117 = vand.u32 %v2116, 4294901760
        %2118 = vmatpush1.msra.mxu0 %v2117
        %v2119 = vand.u32 %v389, 4294901760
        %v2120 = vsub.f32 %v389, %v2119
        %v2121 = vand.u32 %v2120, 4294901760
        %v2122 = vsub.f32 %v2120, %v2121
        %v2123 = vand.u32 %v2122, 4294901760
        %2124 = vmatprep.subr.mxu0 %v2123
        %v2125 = vand.u32 %v388, 4294901760
        %v2126 = vsub.f32 %v388, %v2125
        %v2127 = vand.u32 %v2126, 4294901760
        %v2128 = vsub.f32 %v2126, %v2127
        %v2129 = vand.u32 %v2128, 4294901760
        %2130 = vmatpush1.msra.mxu0 %v2129
        %v2131 = vand.u32 %v393, 4294901760
        %v2132 = vsub.f32 %v393, %v2131
        %v2133 = vand.u32 %v2132, 4294901760
        %v2134 = vsub.f32 %v2132, %v2133
        %v2135 = vand.u32 %v2134, 4294901760
        %2136 = vmatprep.subr.mxu0 %v2135
        %v2137 = vand.u32 %v392, 4294901760
        %v2138 = vsub.f32 %v392, %v2137
        %v2139 = vand.u32 %v2138, 4294901760
        %v2140 = vsub.f32 %v2138, %v2139
        %v2141 = vand.u32 %v2140, 4294901760
        %2142 = vmatpush1.msra.mxu0 %v2141
        %v2143 = vand.u32 %v397, 4294901760
        %v2144 = vsub.f32 %v397, %v2143
        %v2145 = vand.u32 %v2144, 4294901760
        %v2146 = vsub.f32 %v2144, %v2145
        %v2147 = vand.u32 %v2146, 4294901760
        %2148 = vmatprep.subr.mxu0 %v2147
        %v2149 = vand.u32 %v396, 4294901760
        %v2150 = vsub.f32 %v396, %v2149
        %v2151 = vand.u32 %v2150, 4294901760
        %v2152 = vsub.f32 %v2150, %v2151
        %v2153 = vand.u32 %v2152, 4294901760
        %2154 = vmatpush1.msra.mxu0 %v2153
        %v2155 = vand.u32 %v401, 4294901760
        %v2156 = vsub.f32 %v401, %v2155
        %v2157 = vand.u32 %v2156, 4294901760
        %v2158 = vsub.f32 %v2156, %v2157
        %v2159 = vand.u32 %v2158, 4294901760
        %2160 = vmatprep.subr.mxu0 %v2159
        %v2161 = vand.u32 %v400, 4294901760
        %v2162 = vsub.f32 %v400, %v2161
        %v2163 = vand.u32 %v2162, 4294901760
        %v2164 = vsub.f32 %v2162, %v2163
        %v2165 = vand.u32 %v2164, 4294901760
        %2166 = vmatpush1.msra.mxu0 %v2165
        %v2167 = vand.u32 %v405, 4294901760
        %v2168 = vsub.f32 %v405, %v2167
        %v2169 = vand.u32 %v2168, 4294901760
        %v2170 = vsub.f32 %v2168, %v2169
        %v2171 = vand.u32 %v2170, 4294901760
        %2172 = vmatprep.subr.mxu0 %v2171
        %v2173 = vand.u32 %v404, 4294901760
        %v2174 = vsub.f32 %v404, %v2173
        %v2175 = vand.u32 %v2174, 4294901760
        %v2176 = vsub.f32 %v2174, %v2175
        %v2177 = vand.u32 %v2176, 4294901760
        %2178 = vmatpush1.msra.mxu0 %v2177
        %v2179 = vand.u32 %v409, 4294901760
        %v2180 = vsub.f32 %v409, %v2179
        %v2181 = vand.u32 %v2180, 4294901760
        %v2182 = vsub.f32 %v2180, %v2181
        %v2183 = vand.u32 %v2182, 4294901760
        %2184 = vmatprep.subr.mxu0 %v2183
        %v2185 = vand.u32 %v408, 4294901760
        %v2186 = vsub.f32 %v408, %v2185
        %v2187 = vand.u32 %v2186, 4294901760
        %v2188 = vsub.f32 %v2186, %v2187
        %v2189 = vand.u32 %v2188, 4294901760
        %2190 = vmatpush1.msra.mxu0 %v2189
        %v2191 = vand.u32 %v413, 4294901760
        %v2192 = vsub.f32 %v413, %v2191
        %v2193 = vand.u32 %v2192, 4294901760
        %v2194 = vsub.f32 %v2192, %v2193
        %v2195 = vand.u32 %v2194, 4294901760
        %2196 = vmatprep.subr.mxu0 %v2195
        %v2197 = vand.u32 %v412, 4294901760
        %v2198 = vsub.f32 %v412, %v2197
        %v2199 = vand.u32 %v2198, 4294901760
        %v2200 = vsub.f32 %v2198, %v2199
        %v2201 = vand.u32 %v2200, 4294901760
        %2202 = vmatpush1.msra.mxu0 %v2201
        %v2203 = vand.u32 %v417, 4294901760
        %v2204 = vsub.f32 %v417, %v2203
        %v2205 = vand.u32 %v2204, 4294901760
        %v2206 = vsub.f32 %v2204, %v2205
        %v2207 = vand.u32 %v2206, 4294901760
        %2208 = vmatprep.subr.mxu0 %v2207
        %v2209 = vand.u32 %v416, 4294901760
        %v2210 = vsub.f32 %v416, %v2209
        %v2211 = vand.u32 %v2210, 4294901760
        %v2212 = vsub.f32 %v2210, %v2211
        %v2213 = vand.u32 %v2212, 4294901760
        %2214 = vmatpush1.msra.mxu0 %v2213
        %v2215 = vand.u32 %v421, 4294901760
        %v2216 = vsub.f32 %v421, %v2215
        %v2217 = vand.u32 %v2216, 4294901760
        %v2218 = vsub.f32 %v2216, %v2217
        %v2219 = vand.u32 %v2218, 4294901760
        %2220 = vmatprep.subr.mxu0 %v2219
        %v2221 = vand.u32 %v420, 4294901760
        %v2222 = vsub.f32 %v420, %v2221
        %v2223 = vand.u32 %v2222, 4294901760
        %v2224 = vsub.f32 %v2222, %v2223
        %v2225 = vand.u32 %v2224, 4294901760
        %2226 = vmatpush1.msra.mxu0 %v2225
        %v2227 = vand.u32 %v425, 4294901760
        %v2228 = vsub.f32 %v425, %v2227
        %v2229 = vand.u32 %v2228, 4294901760
        %v2230 = vsub.f32 %v2228, %v2229
        %v2231 = vand.u32 %v2230, 4294901760
        %2232 = vmatprep.subr.mxu0 %v2231
        %v2233 = vand.u32 %v424, 4294901760
        %v2234 = vsub.f32 %v424, %v2233
        %v2235 = vand.u32 %v2234, 4294901760
        %v2236 = vsub.f32 %v2234, %v2235
        %v2237 = vand.u32 %v2236, 4294901760
        %2238 = vmatpush1.msra.mxu0 %v2237
        %v2239 = vand.u32 %v429, 4294901760
        %v2240 = vsub.f32 %v429, %v2239
        %v2241 = vand.u32 %v2240, 4294901760
        %v2242 = vsub.f32 %v2240, %v2241
        %v2243 = vand.u32 %v2242, 4294901760
        %2244 = vmatprep.subr.mxu0 %v2243
        %v2245 = vand.u32 %v428, 4294901760
        %v2246 = vsub.f32 %v428, %v2245
        %v2247 = vand.u32 %v2246, 4294901760
        %v2248 = vsub.f32 %v2246, %v2247
        %v2249 = vand.u32 %v2248, 4294901760
        %2250 = vmatpush1.msra.mxu0 %v2249
        %v2251 = vand.u32 %v433, 4294901760
        %v2252 = vsub.f32 %v433, %v2251
        %v2253 = vand.u32 %v2252, 4294901760
        %v2254 = vsub.f32 %v2252, %v2253
        %v2255 = vand.u32 %v2254, 4294901760
        %2256 = vmatprep.subr.mxu0 %v2255
        %v2257 = vand.u32 %v432, 4294901760
        %v2258 = vsub.f32 %v432, %v2257
        %v2259 = vand.u32 %v2258, 4294901760
        %v2260 = vsub.f32 %v2258, %v2259
        %v2261 = vand.u32 %v2260, 4294901760
        %2262 = vmatpush1.msra.mxu0 %v2261
        %v2263 = vand.u32 %v437, 4294901760
        %v2264 = vsub.f32 %v437, %v2263
        %v2265 = vand.u32 %v2264, 4294901760
        %v2266 = vsub.f32 %v2264, %v2265
        %v2267 = vand.u32 %v2266, 4294901760
        %2268 = vmatprep.subr.mxu0 %v2267
        %v2269 = vand.u32 %v436, 4294901760
        %v2270 = vsub.f32 %v436, %v2269
        %v2271 = vand.u32 %v2270, 4294901760
        %v2272 = vsub.f32 %v2270, %v2271
        %v2273 = vand.u32 %v2272, 4294901760
        %2274 = vmatpush1.msra.mxu0 %v2273
        %v2275 = vand.u32 %v441, 4294901760
        %v2276 = vsub.f32 %v441, %v2275
        %v2277 = vand.u32 %v2276, 4294901760
        %v2278 = vsub.f32 %v2276, %v2277
        %v2279 = vand.u32 %v2278, 4294901760
        %2280 = vmatprep.subr.mxu0 %v2279
        %v2281 = vand.u32 %v440, 4294901760
        %v2282 = vsub.f32 %v440, %v2281
        %v2283 = vand.u32 %v2282, 4294901760
        %v2284 = vsub.f32 %v2282, %v2283
        %v2285 = vand.u32 %v2284, 4294901760
        %2286 = vmatpush1.msra.mxu0 %v2285
        %v2287 = vand.u32 %v445, 4294901760
        %v2288 = vsub.f32 %v445, %v2287
        %v2289 = vand.u32 %v2288, 4294901760
        %v2290 = vsub.f32 %v2288, %v2289
        %v2291 = vand.u32 %v2290, 4294901760
        %2292 = vmatprep.subr.mxu0 %v2291
        %v2293 = vand.u32 %v444, 4294901760
        %v2294 = vsub.f32 %v444, %v2293
        %v2295 = vand.u32 %v2294, 4294901760
        %v2296 = vsub.f32 %v2294, %v2295
        %v2297 = vand.u32 %v2296, 4294901760
        %2298 = vmatpush1.msra.mxu0 %v2297
        %v2299 = vand.u32 %v449, 4294901760
        %v2300 = vsub.f32 %v449, %v2299
        %v2301 = vand.u32 %v2300, 4294901760
        %v2302 = vsub.f32 %v2300, %v2301
        %v2303 = vand.u32 %v2302, 4294901760
        %2304 = vmatprep.subr.mxu0 %v2303
        %v2305 = vand.u32 %v448, 4294901760
        %v2306 = vsub.f32 %v448, %v2305
        %v2307 = vand.u32 %v2306, 4294901760
        %v2308 = vsub.f32 %v2306, %v2307
        %v2309 = vand.u32 %v2308, 4294901760
        %2310 = vmatpush1.msra.mxu0 %v2309
        %v2311 = vand.u32 %v453, 4294901760
        %v2312 = vsub.f32 %v453, %v2311
        %v2313 = vand.u32 %v2312, 4294901760
        %v2314 = vsub.f32 %v2312, %v2313
        %v2315 = vand.u32 %v2314, 4294901760
        %2316 = vmatprep.subr.mxu0 %v2315
        %v2317 = vand.u32 %v452, 4294901760
        %v2318 = vsub.f32 %v452, %v2317
        %v2319 = vand.u32 %v2318, 4294901760
        %v2320 = vsub.f32 %v2318, %v2319
        %v2321 = vand.u32 %v2320, 4294901760
        %2322 = vmatpush1.msra.mxu0 %v2321
        %v2323 = vand.u32 %v457, 4294901760
        %v2324 = vsub.f32 %v457, %v2323
        %v2325 = vand.u32 %v2324, 4294901760
        %v2326 = vsub.f32 %v2324, %v2325
        %v2327 = vand.u32 %v2326, 4294901760
        %2328 = vmatprep.subr.mxu0 %v2327
        %v2329 = vand.u32 %v456, 4294901760
        %v2330 = vsub.f32 %v456, %v2329
        %v2331 = vand.u32 %v2330, 4294901760
        %v2332 = vsub.f32 %v2330, %v2331
        %v2333 = vand.u32 %v2332, 4294901760
        %2334 = vmatpush1.msra.mxu0 %v2333
        %v2335 = vand.u32 %v461, 4294901760
        %v2336 = vsub.f32 %v461, %v2335
        %v2337 = vand.u32 %v2336, 4294901760
        %v2338 = vsub.f32 %v2336, %v2337
        %v2339 = vand.u32 %v2338, 4294901760
        %2340 = vmatprep.subr.mxu0 %v2339
        %v2341 = vand.u32 %v460, 4294901760
        %v2342 = vsub.f32 %v460, %v2341
        %v2343 = vand.u32 %v2342, 4294901760
        %v2344 = vsub.f32 %v2342, %v2343
        %v2345 = vand.u32 %v2344, 4294901760
        %2346 = vmatpush1.msra.mxu0 %v2345
        %v2347 = vand.u32 %v465, 4294901760
        %v2348 = vsub.f32 %v465, %v2347
        %v2349 = vand.u32 %v2348, 4294901760
        %v2350 = vsub.f32 %v2348, %v2349
        %v2351 = vand.u32 %v2350, 4294901760
        %2352 = vmatprep.subr.mxu0 %v2351
        %v2353 = vand.u32 %v464, 4294901760
        %v2354 = vsub.f32 %v464, %v2353
        %v2355 = vand.u32 %v2354, 4294901760
        %v2356 = vsub.f32 %v2354, %v2355
        %v2357 = vand.u32 %v2356, 4294901760
        %2358 = vmatpush1.msra.mxu0 %v2357
        %v2359 = vand.u32 %v207, 4294901760
        %2360 = vmatprep.mubr.f32.mxu0 %v2359
        %v2361 = vand.u32 %v206, 4294901760
        %2362 = vmatmul.mubr.f32.gmra.mrb[0].mxu0 %v2361
        %v2363 = vpop.f32.mrb[0].mxu0
        %v2364 = vadd.f32 %v1955, %v2363
        %v2365 = vpop.f32.mrb[0].mxu0
        %v2366 = vadd.f32 %v1957, %v2365
        %v2367 = vand.u32 %v211, 4294901760
        %2368 = vmatprep.mubr.f32.mxu0 %v2367
        %v2369 = vand.u32 %v210, 4294901760
        %2370 = vmatmul.mubr.f32.gmra.mrb[0].mxu0 %v2369
        %v2371 = vpop.f32.mrb[0].mxu0
        %v2372 = vadd.f32 %v1971, %v2371
        %v2373 = vpop.f32.mrb[0].mxu0
        %v2374 = vadd.f32 %v1973, %v2373
        %2375 = vdwg.mxu0
        %v2376 = vand.u32 %v341, 4294901760
        %v2377 = vsub.f32 %v341, %v2376
        %2378 = vmatprep.subr.mxu0 %v2377
        %v2379 = vand.u32 %v340, 4294901760
        %v2380 = vsub.f32 %v340, %v2379
        %2381 = vmatpush1.msra.mxu0 %v2380
        %v2382 = vand.u32 %v345, 4294901760
        %v2383 = vsub.f32 %v345, %v2382
        %2384 = vmatprep.subr.mxu0 %v2383
        %v2385 = vand.u32 %v344, 4294901760
        %v2386 = vsub.f32 %v344, %v2385
        %2387 = vmatpush1.msra.mxu0 %v2386
        %v2388 = vand.u32 %v349, 4294901760
        %v2389 = vsub.f32 %v349, %v2388
        %2390 = vmatprep.subr.mxu0 %v2389
        %v2391 = vand.u32 %v348, 4294901760
        %v2392 = vsub.f32 %v348, %v2391
        %2393 = vmatpush1.msra.mxu0 %v2392
        %v2394 = vand.u32 %v353, 4294901760
        %v2395 = vsub.f32 %v353, %v2394
        %2396 = vmatprep.subr.mxu0 %v2395
        %v2397 = vand.u32 %v352, 4294901760
        %v2398 = vsub.f32 %v352, %v2397
        %2399 = vmatpush1.msra.mxu0 %v2398
        %v2400 = vand.u32 %v357, 4294901760
        %v2401 = vsub.f32 %v357, %v2400
        %2402 = vmatprep.subr.mxu0 %v2401
        %v2403 = vand.u32 %v356, 4294901760
        %v2404 = vsub.f32 %v356, %v2403
        %2405 = vmatpush1.msra.mxu0 %v2404
        %v2406 = vand.u32 %v361, 4294901760
        %v2407 = vsub.f32 %v361, %v2406
        %2408 = vmatprep.subr.mxu0 %v2407
        %v2409 = vand.u32 %v360, 4294901760
        %v2410 = vsub.f32 %v360, %v2409
        %2411 = vmatpush1.msra.mxu0 %v2410
        %v2412 = vand.u32 %v365, 4294901760
        %v2413 = vsub.f32 %v365, %v2412
        %2414 = vmatprep.subr.mxu0 %v2413
        %v2415 = vand.u32 %v364, 4294901760
        %v2416 = vsub.f32 %v364, %v2415
        %2417 = vmatpush1.msra.mxu0 %v2416
        %v2418 = vand.u32 %v369, 4294901760
        %v2419 = vsub.f32 %v369, %v2418
        %2420 = vmatprep.subr.mxu0 %v2419
        %v2421 = vand.u32 %v368, 4294901760
        %v2422 = vsub.f32 %v368, %v2421
        %2423 = vmatpush1.msra.mxu0 %v2422
        %v2424 = vand.u32 %v373, 4294901760
        %v2425 = vsub.f32 %v373, %v2424
        %2426 = vmatprep.subr.mxu0 %v2425
        %v2427 = vand.u32 %v372, 4294901760
        %v2428 = vsub.f32 %v372, %v2427
        %2429 = vmatpush1.msra.mxu0 %v2428
        %v2430 = vand.u32 %v377, 4294901760
        %v2431 = vsub.f32 %v377, %v2430
        %2432 = vmatprep.subr.mxu0 %v2431
        %v2433 = vand.u32 %v376, 4294901760
        %v2434 = vsub.f32 %v376, %v2433
        %2435 = vmatpush1.msra.mxu0 %v2434
        %v2436 = vand.u32 %v381, 4294901760
        %v2437 = vsub.f32 %v381, %v2436
        %2438 = vmatprep.subr.mxu0 %v2437
        %v2439 = vand.u32 %v380, 4294901760
        %v2440 = vsub.f32 %v380, %v2439
        %2441 = vmatpush1.msra.mxu0 %v2440
        %v2442 = vand.u32 %v385, 4294901760
        %v2443 = vsub.f32 %v385, %v2442
        %2444 = vmatprep.subr.mxu0 %v2443
        %v2445 = vand.u32 %v384, 4294901760
        %v2446 = vsub.f32 %v384, %v2445
        %2447 = vmatpush1.msra.mxu0 %v2446
        %v2448 = vand.u32 %v389, 4294901760
        %v2449 = vsub.f32 %v389, %v2448
        %2450 = vmatprep.subr.mxu0 %v2449
        %v2451 = vand.u32 %v388, 4294901760
        %v2452 = vsub.f32 %v388, %v2451
        %2453 = vmatpush1.msra.mxu0 %v2452
        %v2454 = vand.u32 %v393, 4294901760
        %v2455 = vsub.f32 %v393, %v2454
        %2456 = vmatprep.subr.mxu0 %v2455
        %v2457 = vand.u32 %v392, 4294901760
        %v2458 = vsub.f32 %v392, %v2457
        %2459 = vmatpush1.msra.mxu0 %v2458
        %v2460 = vand.u32 %v397, 4294901760
        %v2461 = vsub.f32 %v397, %v2460
        %2462 = vmatprep.subr.mxu0 %v2461
        %v2463 = vand.u32 %v396, 4294901760
        %v2464 = vsub.f32 %v396, %v2463
        %2465 = vmatpush1.msra.mxu0 %v2464
        %v2466 = vand.u32 %v401, 4294901760
        %v2467 = vsub.f32 %v401, %v2466
        %2468 = vmatprep.subr.mxu0 %v2467
        %v2469 = vand.u32 %v400, 4294901760
        %v2470 = vsub.f32 %v400, %v2469
        %2471 = vmatpush1.msra.mxu0 %v2470
        %v2472 = vand.u32 %v405, 4294901760
        %v2473 = vsub.f32 %v405, %v2472
        %2474 = vmatprep.subr.mxu0 %v2473
        %v2475 = vand.u32 %v404, 4294901760
        %v2476 = vsub.f32 %v404, %v2475
        %2477 = vmatpush1.msra.mxu0 %v2476
        %v2478 = vand.u32 %v409, 4294901760
        %v2479 = vsub.f32 %v409, %v2478
        %2480 = vmatprep.subr.mxu0 %v2479
        %v2481 = vand.u32 %v408, 4294901760
        %v2482 = vsub.f32 %v408, %v2481
        %2483 = vmatpush1.msra.mxu0 %v2482
        %v2484 = vand.u32 %v413, 4294901760
        %v2485 = vsub.f32 %v413, %v2484
        %2486 = vmatprep.subr.mxu0 %v2485
        %v2487 = vand.u32 %v412, 4294901760
        %v2488 = vsub.f32 %v412, %v2487
        %2489 = vmatpush1.msra.mxu0 %v2488
        %v2490 = vand.u32 %v417, 4294901760
        %v2491 = vsub.f32 %v417, %v2490
        %2492 = vmatprep.subr.mxu0 %v2491
        %v2493 = vand.u32 %v416, 4294901760
        %v2494 = vsub.f32 %v416, %v2493
        %2495 = vmatpush1.msra.mxu0 %v2494
        %v2496 = vand.u32 %v421, 4294901760
        %v2497 = vsub.f32 %v421, %v2496
        %2498 = vmatprep.subr.mxu0 %v2497
        %v2499 = vand.u32 %v420, 4294901760
        %v2500 = vsub.f32 %v420, %v2499
        %2501 = vmatpush1.msra.mxu0 %v2500
        %v2502 = vand.u32 %v425, 4294901760
        %v2503 = vsub.f32 %v425, %v2502
        %2504 = vmatprep.subr.mxu0 %v2503
        %v2505 = vand.u32 %v424, 4294901760
        %v2506 = vsub.f32 %v424, %v2505
        %2507 = vmatpush1.msra.mxu0 %v2506
        %v2508 = vand.u32 %v429, 4294901760
        %v2509 = vsub.f32 %v429, %v2508
        %2510 = vmatprep.subr.mxu0 %v2509
        %v2511 = vand.u32 %v428, 4294901760
        %v2512 = vsub.f32 %v428, %v2511
        %2513 = vmatpush1.msra.mxu0 %v2512
        %v2514 = vand.u32 %v433, 4294901760
        %v2515 = vsub.f32 %v433, %v2514
        %2516 = vmatprep.subr.mxu0 %v2515
        %v2517 = vand.u32 %v432, 4294901760
        %v2518 = vsub.f32 %v432, %v2517
        %2519 = vmatpush1.msra.mxu0 %v2518
        %v2520 = vand.u32 %v437, 4294901760
        %v2521 = vsub.f32 %v437, %v2520
        %2522 = vmatprep.subr.mxu0 %v2521
        %v2523 = vand.u32 %v436, 4294901760
        %v2524 = vsub.f32 %v436, %v2523
        %2525 = vmatpush1.msra.mxu0 %v2524
        %v2526 = vand.u32 %v441, 4294901760
        %v2527 = vsub.f32 %v441, %v2526
        %2528 = vmatprep.subr.mxu0 %v2527
        %v2529 = vand.u32 %v440, 4294901760
        %v2530 = vsub.f32 %v440, %v2529
        %2531 = vmatpush1.msra.mxu0 %v2530
        %v2532 = vand.u32 %v445, 4294901760
        %v2533 = vsub.f32 %v445, %v2532
        %2534 = vmatprep.subr.mxu0 %v2533
        %v2535 = vand.u32 %v444, 4294901760
        %v2536 = vsub.f32 %v444, %v2535
        %2537 = vmatpush1.msra.mxu0 %v2536
        %v2538 = vand.u32 %v449, 4294901760
        %v2539 = vsub.f32 %v449, %v2538
        %2540 = vmatprep.subr.mxu0 %v2539
        %v2541 = vand.u32 %v448, 4294901760
        %v2542 = vsub.f32 %v448, %v2541
        %2543 = vmatpush1.msra.mxu0 %v2542
        %v2544 = vand.u32 %v453, 4294901760
        %v2545 = vsub.f32 %v453, %v2544
        %2546 = vmatprep.subr.mxu0 %v2545
        %v2547 = vand.u32 %v452, 4294901760
        %v2548 = vsub.f32 %v452, %v2547
        %2549 = vmatpush1.msra.mxu0 %v2548
        %v2550 = vand.u32 %v457, 4294901760
        %v2551 = vsub.f32 %v457, %v2550
        %2552 = vmatprep.subr.mxu0 %v2551
        %v2553 = vand.u32 %v456, 4294901760
        %v2554 = vsub.f32 %v456, %v2553
        %2555 = vmatpush1.msra.mxu0 %v2554
        %v2556 = vand.u32 %v461, 4294901760
        %v2557 = vsub.f32 %v461, %v2556
        %2558 = vmatprep.subr.mxu0 %v2557
        %v2559 = vand.u32 %v460, 4294901760
        %v2560 = vsub.f32 %v460, %v2559
        %2561 = vmatpush1.msra.mxu0 %v2560
        %v2562 = vand.u32 %v465, 4294901760
        %v2563 = vsub.f32 %v465, %v2562
        %2564 = vmatprep.subr.mxu0 %v2563
        %v2565 = vand.u32 %v464, 4294901760
        %v2566 = vsub.f32 %v464, %v2565
        %2567 = vmatpush1.msra.mxu0 %v2566
        %v2568 = vand.u32 %v207, 4294901760
        %v2569 = vsub.f32 %v207, %v2568
        %2570 = vmatprep.mubr.f32.mxu0 %v2569
        %v2571 = vand.u32 %v206, 4294901760
        %v2572 = vsub.f32 %v206, %v2571
        %2573 = vmatmul.mubr.f32.gmra.mrb[0].mxu0 %v2572
        %v2574 = vpop.f32.mrb[0].mxu0
        %v2575 = vadd.f32 %v2364, %v2574
        %v2576 = vpop.f32.mrb[0].mxu0
        %v2577 = vadd.f32 %v2366, %v2576
        %v2578 = vand.u32 %v211, 4294901760
        %v2579 = vsub.f32 %v211, %v2578
        %2580 = vmatprep.mubr.f32.mxu0 %v2579
        %v2581 = vand.u32 %v210, 4294901760
        %v2582 = vsub.f32 %v210, %v2581
        %2583 = vmatmul.mubr.f32.gmra.mrb[0].mxu0 %v2582
        %v2584 = vpop.f32.mrb[0].mxu0
        %v2585 = vadd.f32 %v2372, %v2584
        %v2586 = vpop.f32.mrb[0].mxu0
        %v2587 = vadd.f32 %v2374, %v2586
        %2588 = vdwg.mxu0
        %v2589 = vand.u32 %v341, 4294901760
        %2590 = vmatprep.subr.mxu0 %v2589
        %v2591 = vand.u32 %v340, 4294901760
        %2592 = vmatpush1.msra.mxu0 %v2591
        %v2593 = vand.u32 %v345, 4294901760
        %2594 = vmatprep.subr.mxu0 %v2593
        %v2595 = vand.u32 %v344, 4294901760
        %2596 = vmatpush1.msra.mxu0 %v2595
        %v2597 = vand.u32 %v349, 4294901760
        %2598 = vmatprep.subr.mxu0 %v2597
        %v2599 = vand.u32 %v348, 4294901760
        %2600 = vmatpush1.msra.mxu0 %v2599
        %v2601 = vand.u32 %v353, 4294901760
        %2602 = vmatprep.subr.mxu0 %v2601
        %v2603 = vand.u32 %v352, 4294901760
        %2604 = vmatpush1.msra.mxu0 %v2603
        %v2605 = vand.u32 %v357, 4294901760
        %2606 = vmatprep.subr.mxu0 %v2605
        %v2607 = vand.u32 %v356, 4294901760
        %2608 = vmatpush1.msra.mxu0 %v2607
        %v2609 = vand.u32 %v361, 4294901760
        %2610 = vmatprep.subr.mxu0 %v2609
        %v2611 = vand.u32 %v360, 4294901760
        %2612 = vmatpush1.msra.mxu0 %v2611
        %v2613 = vand.u32 %v365, 4294901760
        %2614 = vmatprep.subr.mxu0 %v2613
        %v2615 = vand.u32 %v364, 4294901760
        %2616 = vmatpush1.msra.mxu0 %v2615
        %v2617 = vand.u32 %v369, 4294901760
        %2618 = vmatprep.subr.mxu0 %v2617
        %v2619 = vand.u32 %v368, 4294901760
        %2620 = vmatpush1.msra.mxu0 %v2619
        %v2621 = vand.u32 %v373, 4294901760
        %2622 = vmatprep.subr.mxu0 %v2621
        %v2623 = vand.u32 %v372, 4294901760
        %2624 = vmatpush1.msra.mxu0 %v2623
        %v2625 = vand.u32 %v377, 4294901760
        %2626 = vmatprep.subr.mxu0 %v2625
        %v2627 = vand.u32 %v376, 4294901760
        %2628 = vmatpush1.msra.mxu0 %v2627
        %v2629 = vand.u32 %v381, 4294901760
        %2630 = vmatprep.subr.mxu0 %v2629
        %v2631 = vand.u32 %v380, 4294901760
        %2632 = vmatpush1.msra.mxu0 %v2631
        %v2633 = vand.u32 %v385, 4294901760
        %2634 = vmatprep.subr.mxu0 %v2633
        %v2635 = vand.u32 %v384, 4294901760
        %2636 = vmatpush1.msra.mxu0 %v2635
        %v2637 = vand.u32 %v389, 4294901760
        %2638 = vmatprep.subr.mxu0 %v2637
        %v2639 = vand.u32 %v388, 4294901760
        %2640 = vmatpush1.msra.mxu0 %v2639
        %v2641 = vand.u32 %v393, 4294901760
        %2642 = vmatprep.subr.mxu0 %v2641
        %v2643 = vand.u32 %v392, 4294901760
        %2644 = vmatpush1.msra.mxu0 %v2643
        %v2645 = vand.u32 %v397, 4294901760
        %2646 = vmatprep.subr.mxu0 %v2645
        %v2647 = vand.u32 %v396, 4294901760
        %2648 = vmatpush1.msra.mxu0 %v2647
        %v2649 = vand.u32 %v401, 4294901760
        %2650 = vmatprep.subr.mxu0 %v2649
        %v2651 = vand.u32 %v400, 4294901760
        %2652 = vmatpush1.msra.mxu0 %v2651
        %v2653 = vand.u32 %v405, 4294901760
        %2654 = vmatprep.subr.mxu0 %v2653
        %v2655 = vand.u32 %v404, 4294901760
        %2656 = vmatpush1.msra.mxu0 %v2655
        %v2657 = vand.u32 %v409, 4294901760
        %2658 = vmatprep.subr.mxu0 %v2657
        %v2659 = vand.u32 %v408, 4294901760
        %2660 = vmatpush1.msra.mxu0 %v2659
        %v2661 = vand.u32 %v413, 4294901760
        %2662 = vmatprep.subr.mxu0 %v2661
        %v2663 = vand.u32 %v412, 4294901760
        %2664 = vmatpush1.msra.mxu0 %v2663
        %v2665 = vand.u32 %v417, 4294901760
        %2666 = vmatprep.subr.mxu0 %v2665
        %v2667 = vand.u32 %v416, 4294901760
        %2668 = vmatpush1.msra.mxu0 %v2667
        %v2669 = vand.u32 %v421, 4294901760
        %2670 = vmatprep.subr.mxu0 %v2669
        %v2671 = vand.u32 %v420, 4294901760
        %2672 = vmatpush1.msra.mxu0 %v2671
        %v2673 = vand.u32 %v425, 4294901760
        %2674 = vmatprep.subr.mxu0 %v2673
        %v2675 = vand.u32 %v424, 4294901760
        %2676 = vmatpush1.msra.mxu0 %v2675
        %v2677 = vand.u32 %v429, 4294901760
        %2678 = vmatprep.subr.mxu0 %v2677
        %v2679 = vand.u32 %v428, 4294901760
        %2680 = vmatpush1.msra.mxu0 %v2679
        %v2681 = vand.u32 %v433, 4294901760
        %2682 = vmatprep.subr.mxu0 %v2681
        %v2683 = vand.u32 %v432, 4294901760
        %2684 = vmatpush1.msra.mxu0 %v2683
        %v2685 = vand.u32 %v437, 4294901760
        %2686 = vmatprep.subr.mxu0 %v2685
        %v2687 = vand.u32 %v436, 4294901760
        %2688 = vmatpush1.msra.mxu0 %v2687
        %v2689 = vand.u32 %v441, 4294901760
        %2690 = vmatprep.subr.mxu0 %v2689
        %v2691 = vand.u32 %v440, 4294901760
        %2692 = vmatpush1.msra.mxu0 %v2691
        %v2693 = vand.u32 %v445, 4294901760
        %2694 = vmatprep.subr.mxu0 %v2693
        %v2695 = vand.u32 %v444, 4294901760
        %2696 = vmatpush1.msra.mxu0 %v2695
        %v2697 = vand.u32 %v449, 4294901760
        %2698 = vmatprep.subr.mxu0 %v2697
        %v2699 = vand.u32 %v448, 4294901760
        %2700 = vmatpush1.msra.mxu0 %v2699
        %v2701 = vand.u32 %v453, 4294901760
        %2702 = vmatprep.subr.mxu0 %v2701
        %v2703 = vand.u32 %v452, 4294901760
        %2704 = vmatpush1.msra.mxu0 %v2703
        %v2705 = vand.u32 %v457, 4294901760
        %2706 = vmatprep.subr.mxu0 %v2705
        %v2707 = vand.u32 %v456, 4294901760
        %2708 = vmatpush1.msra.mxu0 %v2707
        %v2709 = vand.u32 %v461, 4294901760
        %2710 = vmatprep.subr.mxu0 %v2709
        %v2711 = vand.u32 %v460, 4294901760
        %2712 = vmatpush1.msra.mxu0 %v2711
        %v2713 = vand.u32 %v465, 4294901760
        %2714 = vmatprep.subr.mxu0 %v2713
        %v2715 = vand.u32 %v464, 4294901760
        %2716 = vmatpush1.msra.mxu0 %v2715
        %v2717 = vand.u32 %v207, 4294901760
        %v2718 = vsub.f32 %v207, %v2717
        %v2719 = vand.u32 %v2718, 4294901760
        %2720 = vmatprep.mubr.f32.mxu0 %v2719
        %v2721 = vand.u32 %v206, 4294901760
        %v2722 = vsub.f32 %v206, %v2721
        %v2723 = vand.u32 %v2722, 4294901760
        %2724 = vmatmul.mubr.f32.gmra.mrb[0].mxu0 %v2723
        %v2725 = vpop.f32.mrb[0].mxu0
        %v2726 = vadd.f32 %v2575, %v2725
        %v2727 = vpop.f32.mrb[0].mxu0
        %v2728 = vadd.f32 %v2577, %v2727
        %v2729 = vand.u32 %v211, 4294901760
        %v2730 = vsub.f32 %v211, %v2729
        %v2731 = vand.u32 %v2730, 4294901760
        %2732 = vmatprep.mubr.f32.mxu0 %v2731
        %v2733 = vand.u32 %v210, 4294901760
        %v2734 = vsub.f32 %v210, %v2733
        %v2735 = vand.u32 %v2734, 4294901760
        %2736 = vmatmul.mubr.f32.gmra.mrb[0].mxu0 %v2735
        %v2737 = vpop.f32.mrb[0].mxu0
        %v2738 = vadd.f32 %v2585, %v2737
        %v2739 = vpop.f32.mrb[0].mxu0
        %v2740 = vadd.f32 %v2587, %v2739
        %2741 = vdwg.mxu0
        %v2742 = vand.u32 %v341, 4294901760
        %v2743 = vsub.f32 %v341, %v2742
        %v2744 = vand.u32 %v2743, 4294901760
        %2745 = vmatprep.subr.mxu0 %v2744
        %v2746 = vand.u32 %v340, 4294901760
        %v2747 = vsub.f32 %v340, %v2746
        %v2748 = vand.u32 %v2747, 4294901760
        %2749 = vmatpush1.msra.mxu0 %v2748
        %v2750 = vand.u32 %v345, 4294901760
        %v2751 = vsub.f32 %v345, %v2750
        %v2752 = vand.u32 %v2751, 4294901760
        %2753 = vmatprep.subr.mxu0 %v2752
        %v2754 = vand.u32 %v344, 4294901760
        %v2755 = vsub.f32 %v344, %v2754
        %v2756 = vand.u32 %v2755, 4294901760
        %2757 = vmatpush1.msra.mxu0 %v2756
        %v2758 = vand.u32 %v349, 4294901760
        %v2759 = vsub.f32 %v349, %v2758
        %v2760 = vand.u32 %v2759, 4294901760
        %2761 = vmatprep.subr.mxu0 %v2760
        %v2762 = vand.u32 %v348, 4294901760
        %v2763 = vsub.f32 %v348, %v2762
        %v2764 = vand.u32 %v2763, 4294901760
        %2765 = vmatpush1.msra.mxu0 %v2764
        %v2766 = vand.u32 %v353, 4294901760
        %v2767 = vsub.f32 %v353, %v2766
        %v2768 = vand.u32 %v2767, 4294901760
        %2769 = vmatprep.subr.mxu0 %v2768
        %v2770 = vand.u32 %v352, 4294901760
        %v2771 = vsub.f32 %v352, %v2770
        %v2772 = vand.u32 %v2771, 4294901760
        %2773 = vmatpush1.msra.mxu0 %v2772
        %v2774 = vand.u32 %v357, 4294901760
        %v2775 = vsub.f32 %v357, %v2774
        %v2776 = vand.u32 %v2775, 4294901760
        %2777 = vmatprep.subr.mxu0 %v2776
        %v2778 = vand.u32 %v356, 4294901760
        %v2779 = vsub.f32 %v356, %v2778
        %v2780 = vand.u32 %v2779, 4294901760
        %2781 = vmatpush1.msra.mxu0 %v2780
        %v2782 = vand.u32 %v361, 4294901760
        %v2783 = vsub.f32 %v361, %v2782
        %v2784 = vand.u32 %v2783, 4294901760
        %2785 = vmatprep.subr.mxu0 %v2784
        %v2786 = vand.u32 %v360, 4294901760
        %v2787 = vsub.f32 %v360, %v2786
        %v2788 = vand.u32 %v2787, 4294901760
        %2789 = vmatpush1.msra.mxu0 %v2788
        %v2790 = vand.u32 %v365, 4294901760
        %v2791 = vsub.f32 %v365, %v2790
        %v2792 = vand.u32 %v2791, 4294901760
        %2793 = vmatprep.subr.mxu0 %v2792
        %v2794 = vand.u32 %v364, 4294901760
        %v2795 = vsub.f32 %v364, %v2794
        %v2796 = vand.u32 %v2795, 4294901760
        %2797 = vmatpush1.msra.mxu0 %v2796
        %v2798 = vand.u32 %v369, 4294901760
        %v2799 = vsub.f32 %v369, %v2798
        %v2800 = vand.u32 %v2799, 4294901760
        %2801 = vmatprep.subr.mxu0 %v2800
        %v2802 = vand.u32 %v368, 4294901760
        %v2803 = vsub.f32 %v368, %v2802
        %v2804 = vand.u32 %v2803, 4294901760
        %2805 = vmatpush1.msra.mxu0 %v2804
        %v2806 = vand.u32 %v373, 4294901760
        %v2807 = vsub.f32 %v373, %v2806
        %v2808 = vand.u32 %v2807, 4294901760
        %2809 = vmatprep.subr.mxu0 %v2808
        %v2810 = vand.u32 %v372, 4294901760
        %v2811 = vsub.f32 %v372, %v2810
        %v2812 = vand.u32 %v2811, 4294901760
        %2813 = vmatpush1.msra.mxu0 %v2812
        %v2814 = vand.u32 %v377, 4294901760
        %v2815 = vsub.f32 %v377, %v2814
        %v2816 = vand.u32 %v2815, 4294901760
        %2817 = vmatprep.subr.mxu0 %v2816
        %v2818 = vand.u32 %v376, 4294901760
        %v2819 = vsub.f32 %v376, %v2818
        %v2820 = vand.u32 %v2819, 4294901760
        %2821 = vmatpush1.msra.mxu0 %v2820
        %v2822 = vand.u32 %v381, 4294901760
        %v2823 = vsub.f32 %v381, %v2822
        %v2824 = vand.u32 %v2823, 4294901760
        %2825 = vmatprep.subr.mxu0 %v2824
        %v2826 = vand.u32 %v380, 4294901760
        %v2827 = vsub.f32 %v380, %v2826
        %v2828 = vand.u32 %v2827, 4294901760
        %2829 = vmatpush1.msra.mxu0 %v2828
        %v2830 = vand.u32 %v385, 4294901760
        %v2831 = vsub.f32 %v385, %v2830
        %v2832 = vand.u32 %v2831, 4294901760
        %2833 = vmatprep.subr.mxu0 %v2832
        %v2834 = vand.u32 %v384, 4294901760
        %v2835 = vsub.f32 %v384, %v2834
        %v2836 = vand.u32 %v2835, 4294901760
        %2837 = vmatpush1.msra.mxu0 %v2836
        %v2838 = vand.u32 %v389, 4294901760
        %v2839 = vsub.f32 %v389, %v2838
        %v2840 = vand.u32 %v2839, 4294901760
        %2841 = vmatprep.subr.mxu0 %v2840
        %v2842 = vand.u32 %v388, 4294901760
        %v2843 = vsub.f32 %v388, %v2842
        %v2844 = vand.u32 %v2843, 4294901760
        %2845 = vmatpush1.msra.mxu0 %v2844
        %v2846 = vand.u32 %v393, 4294901760
        %v2847 = vsub.f32 %v393, %v2846
        %v2848 = vand.u32 %v2847, 4294901760
        %2849 = vmatprep.subr.mxu0 %v2848
        %v2850 = vand.u32 %v392, 4294901760
        %v2851 = vsub.f32 %v392, %v2850
        %v2852 = vand.u32 %v2851, 4294901760
        %2853 = vmatpush1.msra.mxu0 %v2852
        %v2854 = vand.u32 %v397, 4294901760
        %v2855 = vsub.f32 %v397, %v2854
        %v2856 = vand.u32 %v2855, 4294901760
        %2857 = vmatprep.subr.mxu0 %v2856
        %v2858 = vand.u32 %v396, 4294901760
        %v2859 = vsub.f32 %v396, %v2858
        %v2860 = vand.u32 %v2859, 4294901760
        %2861 = vmatpush1.msra.mxu0 %v2860
        %v2862 = vand.u32 %v401, 4294901760
        %v2863 = vsub.f32 %v401, %v2862
        %v2864 = vand.u32 %v2863, 4294901760
        %2865 = vmatprep.subr.mxu0 %v2864
        %v2866 = vand.u32 %v400, 4294901760
        %v2867 = vsub.f32 %v400, %v2866
        %v2868 = vand.u32 %v2867, 4294901760
        %2869 = vmatpush1.msra.mxu0 %v2868
        %v2870 = vand.u32 %v405, 4294901760
        %v2871 = vsub.f32 %v405, %v2870
        %v2872 = vand.u32 %v2871, 4294901760
        %2873 = vmatprep.subr.mxu0 %v2872
        %v2874 = vand.u32 %v404, 4294901760
        %v2875 = vsub.f32 %v404, %v2874
        %v2876 = vand.u32 %v2875, 4294901760
        %2877 = vmatpush1.msra.mxu0 %v2876
        %v2878 = vand.u32 %v409, 4294901760
        %v2879 = vsub.f32 %v409, %v2878
        %v2880 = vand.u32 %v2879, 4294901760
        %2881 = vmatprep.subr.mxu0 %v2880
        %v2882 = vand.u32 %v408, 4294901760
        %v2883 = vsub.f32 %v408, %v2882
        %v2884 = vand.u32 %v2883, 4294901760
        %2885 = vmatpush1.msra.mxu0 %v2884
        %v2886 = vand.u32 %v413, 4294901760
        %v2887 = vsub.f32 %v413, %v2886
        %v2888 = vand.u32 %v2887, 4294901760
        %2889 = vmatprep.subr.mxu0 %v2888
        %v2890 = vand.u32 %v412, 4294901760
        %v2891 = vsub.f32 %v412, %v2890
        %v2892 = vand.u32 %v2891, 4294901760
        %2893 = vmatpush1.msra.mxu0 %v2892
        %v2894 = vand.u32 %v417, 4294901760
        %v2895 = vsub.f32 %v417, %v2894
        %v2896 = vand.u32 %v2895, 4294901760
        %2897 = vmatprep.subr.mxu0 %v2896
        %v2898 = vand.u32 %v416, 4294901760
        %v2899 = vsub.f32 %v416, %v2898
        %v2900 = vand.u32 %v2899, 4294901760
        %2901 = vmatpush1.msra.mxu0 %v2900
        %v2902 = vand.u32 %v421, 4294901760
        %v2903 = vsub.f32 %v421, %v2902
        %v2904 = vand.u32 %v2903, 4294901760
        %2905 = vmatprep.subr.mxu0 %v2904
        %v2906 = vand.u32 %v420, 4294901760
        %v2907 = vsub.f32 %v420, %v2906
        %v2908 = vand.u32 %v2907, 4294901760
        %2909 = vmatpush1.msra.mxu0 %v2908
        %v2910 = vand.u32 %v425, 4294901760
        %v2911 = vsub.f32 %v425, %v2910
        %v2912 = vand.u32 %v2911, 4294901760
        %2913 = vmatprep.subr.mxu0 %v2912
        %v2914 = vand.u32 %v424, 4294901760
        %v2915 = vsub.f32 %v424, %v2914
        %v2916 = vand.u32 %v2915, 4294901760
        %2917 = vmatpush1.msra.mxu0 %v2916
        %v2918 = vand.u32 %v429, 4294901760
        %v2919 = vsub.f32 %v429, %v2918
        %v2920 = vand.u32 %v2919, 4294901760
        %2921 = vmatprep.subr.mxu0 %v2920
        %v2922 = vand.u32 %v428, 4294901760
        %v2923 = vsub.f32 %v428, %v2922
        %v2924 = vand.u32 %v2923, 4294901760
        %2925 = vmatpush1.msra.mxu0 %v2924
        %v2926 = vand.u32 %v433, 4294901760
        %v2927 = vsub.f32 %v433, %v2926
        %v2928 = vand.u32 %v2927, 4294901760
        %2929 = vmatprep.subr.mxu0 %v2928
        %v2930 = vand.u32 %v432, 4294901760
        %v2931 = vsub.f32 %v432, %v2930
        %v2932 = vand.u32 %v2931, 4294901760
        %2933 = vmatpush1.msra.mxu0 %v2932
        %v2934 = vand.u32 %v437, 4294901760
        %v2935 = vsub.f32 %v437, %v2934
        %v2936 = vand.u32 %v2935, 4294901760
        %2937 = vmatprep.subr.mxu0 %v2936
        %v2938 = vand.u32 %v436, 4294901760
        %v2939 = vsub.f32 %v436, %v2938
        %v2940 = vand.u32 %v2939, 4294901760
        %2941 = vmatpush1.msra.mxu0 %v2940
        %v2942 = vand.u32 %v441, 4294901760
        %v2943 = vsub.f32 %v441, %v2942
        %v2944 = vand.u32 %v2943, 4294901760
        %2945 = vmatprep.subr.mxu0 %v2944
        %v2946 = vand.u32 %v440, 4294901760
        %v2947 = vsub.f32 %v440, %v2946
        %v2948 = vand.u32 %v2947, 4294901760
        %2949 = vmatpush1.msra.mxu0 %v2948
        %v2950 = vand.u32 %v445, 4294901760
        %v2951 = vsub.f32 %v445, %v2950
        %v2952 = vand.u32 %v2951, 4294901760
        %2953 = vmatprep.subr.mxu0 %v2952
        %v2954 = vand.u32 %v444, 4294901760
        %v2955 = vsub.f32 %v444, %v2954
        %v2956 = vand.u32 %v2955, 4294901760
        %2957 = vmatpush1.msra.mxu0 %v2956
        %v2958 = vand.u32 %v449, 4294901760
        %v2959 = vsub.f32 %v449, %v2958
        %v2960 = vand.u32 %v2959, 4294901760
        %2961 = vmatprep.subr.mxu0 %v2960
        %v2962 = vand.u32 %v448, 4294901760
        %v2963 = vsub.f32 %v448, %v2962
        %v2964 = vand.u32 %v2963, 4294901760
        %2965 = vmatpush1.msra.mxu0 %v2964
        %v2966 = vand.u32 %v453, 4294901760
        %v2967 = vsub.f32 %v453, %v2966
        %v2968 = vand.u32 %v2967, 4294901760
        %2969 = vmatprep.subr.mxu0 %v2968
        %v2970 = vand.u32 %v452, 4294901760
        %v2971 = vsub.f32 %v452, %v2970
        %v2972 = vand.u32 %v2971, 4294901760
        %2973 = vmatpush1.msra.mxu0 %v2972
        %v2974 = vand.u32 %v457, 4294901760
        %v2975 = vsub.f32 %v457, %v2974
        %v2976 = vand.u32 %v2975, 4294901760
        %2977 = vmatprep.subr.mxu0 %v2976
        %v2978 = vand.u32 %v456, 4294901760
        %v2979 = vsub.f32 %v456, %v2978
        %v2980 = vand.u32 %v2979, 4294901760
        %2981 = vmatpush1.msra.mxu0 %v2980
        %v2982 = vand.u32 %v461, 4294901760
        %v2983 = vsub.f32 %v461, %v2982
        %v2984 = vand.u32 %v2983, 4294901760
        %2985 = vmatprep.subr.mxu0 %v2984
        %v2986 = vand.u32 %v460, 4294901760
        %v2987 = vsub.f32 %v460, %v2986
        %v2988 = vand.u32 %v2987, 4294901760
        %2989 = vmatpush1.msra.mxu0 %v2988
        %v2990 = vand.u32 %v465, 4294901760
        %v2991 = vsub.f32 %v465, %v2990
        %v2992 = vand.u32 %v2991, 4294901760
        %2993 = vmatprep.subr.mxu0 %v2992
        %v2994 = vand.u32 %v464, 4294901760
        %v2995 = vsub.f32 %v464, %v2994
        %v2996 = vand.u32 %v2995, 4294901760
        %2997 = vmatpush1.msra.mxu0 %v2996
        %v2998 = vand.u32 %v207, 4294901760
        %2999 = vmatprep.mubr.f32.mxu0 %v2998
        %v3000 = vand.u32 %v206, 4294901760
        %3001 = vmatmul.mubr.f32.gmra.mrb[0].mxu0 %v3000
        %v3002 = vpop.f32.mrb[0].mxu0
        %v3003 = vadd.f32 %v2726, %v3002
        %v3004 = vpop.f32.mrb[0].mxu0
        %v3005 = vadd.f32 %v2728, %v3004
        %v3006 = vand.u32 %v211, 4294901760
        %3007 = vmatprep.mubr.f32.mxu0 %v3006
        %v3008 = vand.u32 %v210, 4294901760
        %3009 = vmatmul.mubr.f32.gmra.mrb[0].mxu0 %v3008
        %v3010 = vpop.f32.mrb[0].mxu0
        %v3011 = vadd.f32 %v2738, %v3010
        %v3012 = vpop.f32.mrb[0].mxu0
        %v3013 = vadd.f32 %v2740, %v3012
        %3014 = vdwg.mxu0
        %v3015 = vand.u32 %v341, 4294901760
        %3016 = vmatprep.subr.mxu0 %v3015
        %v3017 = vand.u32 %v340, 4294901760
        %3018 = vmatpush1.msra.mxu0 %v3017
        %v3019 = vand.u32 %v345, 4294901760
        %3020 = vmatprep.subr.mxu0 %v3019
        %v3021 = vand.u32 %v344, 4294901760
        %3022 = vmatpush1.msra.mxu0 %v3021
        %v3023 = vand.u32 %v349, 4294901760
        %3024 = vmatprep.subr.mxu0 %v3023
        %v3025 = vand.u32 %v348, 4294901760
        %3026 = vmatpush1.msra.mxu0 %v3025
        %v3027 = vand.u32 %v353, 4294901760
        %3028 = vmatprep.subr.mxu0 %v3027
        %v3029 = vand.u32 %v352, 4294901760
        %3030 = vmatpush1.msra.mxu0 %v3029
        %v3031 = vand.u32 %v357, 4294901760
        %3032 = vmatprep.subr.mxu0 %v3031
        %v3033 = vand.u32 %v356, 4294901760
        %3034 = vmatpush1.msra.mxu0 %v3033
        %v3035 = vand.u32 %v361, 4294901760
        %3036 = vmatprep.subr.mxu0 %v3035
        %v3037 = vand.u32 %v360, 4294901760
        %3038 = vmatpush1.msra.mxu0 %v3037
        %v3039 = vand.u32 %v365, 4294901760
        %3040 = vmatprep.subr.mxu0 %v3039
        %v3041 = vand.u32 %v364, 4294901760
        %3042 = vmatpush1.msra.mxu0 %v3041
        %v3043 = vand.u32 %v369, 4294901760
        %3044 = vmatprep.subr.mxu0 %v3043
        %v3045 = vand.u32 %v368, 4294901760
        %3046 = vmatpush1.msra.mxu0 %v3045
        %v3047 = vand.u32 %v373, 4294901760
        %3048 = vmatprep.subr.mxu0 %v3047
        %v3049 = vand.u32 %v372, 4294901760
        %3050 = vmatpush1.msra.mxu0 %v3049
        %v3051 = vand.u32 %v377, 4294901760
        %3052 = vmatprep.subr.mxu0 %v3051
        %v3053 = vand.u32 %v376, 4294901760
        %3054 = vmatpush1.msra.mxu0 %v3053
        %v3055 = vand.u32 %v381, 4294901760
        %3056 = vmatprep.subr.mxu0 %v3055
        %v3057 = vand.u32 %v380, 4294901760
        %3058 = vmatpush1.msra.mxu0 %v3057
        %v3059 = vand.u32 %v385, 4294901760
        %3060 = vmatprep.subr.mxu0 %v3059
        %v3061 = vand.u32 %v384, 4294901760
        %3062 = vmatpush1.msra.mxu0 %v3061
        %v3063 = vand.u32 %v389, 4294901760
        %3064 = vmatprep.subr.mxu0 %v3063
        %v3065 = vand.u32 %v388, 4294901760
        %3066 = vmatpush1.msra.mxu0 %v3065
        %v3067 = vand.u32 %v393, 4294901760
        %3068 = vmatprep.subr.mxu0 %v3067
        %v3069 = vand.u32 %v392, 4294901760
        %3070 = vmatpush1.msra.mxu0 %v3069
        %v3071 = vand.u32 %v397, 4294901760
        %3072 = vmatprep.subr.mxu0 %v3071
        %v3073 = vand.u32 %v396, 4294901760
        %3074 = vmatpush1.msra.mxu0 %v3073
        %v3075 = vand.u32 %v401, 4294901760
        %3076 = vmatprep.subr.mxu0 %v3075
        %v3077 = vand.u32 %v400, 4294901760
        %3078 = vmatpush1.msra.mxu0 %v3077
        %v3079 = vand.u32 %v405, 4294901760
        %3080 = vmatprep.subr.mxu0 %v3079
        %v3081 = vand.u32 %v404, 4294901760
        %3082 = vmatpush1.msra.mxu0 %v3081
        %v3083 = vand.u32 %v409, 4294901760
        %3084 = vmatprep.subr.mxu0 %v3083
        %v3085 = vand.u32 %v408, 4294901760
        %3086 = vmatpush1.msra.mxu0 %v3085
        %v3087 = vand.u32 %v413, 4294901760
        %3088 = vmatprep.subr.mxu0 %v3087
        %v3089 = vand.u32 %v412, 4294901760
        %3090 = vmatpush1.msra.mxu0 %v3089
        %v3091 = vand.u32 %v417, 4294901760
        %3092 = vmatprep.subr.mxu0 %v3091
        %v3093 = vand.u32 %v416, 4294901760
        %3094 = vmatpush1.msra.mxu0 %v3093
        %v3095 = vand.u32 %v421, 4294901760
        %3096 = vmatprep.subr.mxu0 %v3095
        %v3097 = vand.u32 %v420, 4294901760
        %3098 = vmatpush1.msra.mxu0 %v3097
        %v3099 = vand.u32 %v425, 4294901760
        %3100 = vmatprep.subr.mxu0 %v3099
        %v3101 = vand.u32 %v424, 4294901760
        %3102 = vmatpush1.msra.mxu0 %v3101
        %v3103 = vand.u32 %v429, 4294901760
        %3104 = vmatprep.subr.mxu0 %v3103
        %v3105 = vand.u32 %v428, 4294901760
        %3106 = vmatpush1.msra.mxu0 %v3105
        %v3107 = vand.u32 %v433, 4294901760
        %3108 = vmatprep.subr.mxu0 %v3107
        %v3109 = vand.u32 %v432, 4294901760
        %3110 = vmatpush1.msra.mxu0 %v3109
        %v3111 = vand.u32 %v437, 4294901760
        %3112 = vmatprep.subr.mxu0 %v3111
        %v3113 = vand.u32 %v436, 4294901760
        %3114 = vmatpush1.msra.mxu0 %v3113
        %v3115 = vand.u32 %v441, 4294901760
        %3116 = vmatprep.subr.mxu0 %v3115
        %v3117 = vand.u32 %v440, 4294901760
        %3118 = vmatpush1.msra.mxu0 %v3117
        %v3119 = vand.u32 %v445, 4294901760
        %3120 = vmatprep.subr.mxu0 %v3119
        %v3121 = vand.u32 %v444, 4294901760
        %3122 = vmatpush1.msra.mxu0 %v3121
        %v3123 = vand.u32 %v449, 4294901760
        %3124 = vmatprep.subr.mxu0 %v3123
        %v3125 = vand.u32 %v448, 4294901760
        %3126 = vmatpush1.msra.mxu0 %v3125
        %v3127 = vand.u32 %v453, 4294901760
        %3128 = vmatprep.subr.mxu0 %v3127
        %v3129 = vand.u32 %v452, 4294901760
        %3130 = vmatpush1.msra.mxu0 %v3129
        %v3131 = vand.u32 %v457, 4294901760
        %3132 = vmatprep.subr.mxu0 %v3131
        %v3133 = vand.u32 %v456, 4294901760
        %3134 = vmatpush1.msra.mxu0 %v3133
        %v3135 = vand.u32 %v461, 4294901760
        %3136 = vmatprep.subr.mxu0 %v3135
        %v3137 = vand.u32 %v460, 4294901760
        %3138 = vmatpush1.msra.mxu0 %v3137
        %v3139 = vand.u32 %v465, 4294901760
        %3140 = vmatprep.subr.mxu0 %v3139
        %v3141 = vand.u32 %v464, 4294901760
        %3142 = vmatpush1.msra.mxu0 %v3141
        %v3143 = vand.u32 %v207, 4294901760
        %3144 = vmatprep.mubr.f32.mxu0 %v3143
        %v3145 = vand.u32 %v206, 4294901760
        %3146 = vmatmul.mubr.f32.gmra.mrb[0].mxu0 %v3145
        %v3147 = vpop.f32.mrb[0].mxu0
        %v3148 = vadd.f32 %v3003, %v3147
        %v3149 = vpop.f32.mrb[0].mxu0
        %v3150 = vadd.f32 %v3005, %v3149
        %v3151 = vand.u32 %v211, 4294901760
        %3152 = vmatprep.mubr.f32.mxu0 %v3151
        %v3153 = vand.u32 %v210, 4294901760
        %3154 = vmatmul.mubr.f32.gmra.mrb[0].mxu0 %v3153
        %v3155 = vpop.f32.mrb[0].mxu0
        %v3156 = vadd.f32 %v3011, %v3155
        %v3157 = vpop.f32.mrb[0].mxu0
        %v3158 = vadd.f32 %v3013, %v3157
        %3159 = vdwg.mxu0
        %v3160 = vand.u32 %v215, 4294901760
        %3161 = vmatprep.subr.mxu0 %v3160
        %v3162 = vand.u32 %v214, 4294901760
        %3163 = vmatpush1.msra.mxu0 %v3162
        %v3164 = vand.u32 %v219, 4294901760
        %3165 = vmatprep.subr.mxu0 %v3164
        %v3166 = vand.u32 %v218, 4294901760
        %3167 = vmatpush1.msra.mxu0 %v3166
        %v3168 = vand.u32 %v223, 4294901760
        %3169 = vmatprep.subr.mxu0 %v3168
        %v3170 = vand.u32 %v222, 4294901760
        %3171 = vmatpush1.msra.mxu0 %v3170
        %v3172 = vand.u32 %v227, 4294901760
        %3173 = vmatprep.subr.mxu0 %v3172
        %v3174 = vand.u32 %v226, 4294901760
        %3175 = vmatpush1.msra.mxu0 %v3174
        %v3176 = vand.u32 %v231, 4294901760
        %3177 = vmatprep.subr.mxu0 %v3176
        %v3178 = vand.u32 %v230, 4294901760
        %3179 = vmatpush1.msra.mxu0 %v3178
        %v3180 = vand.u32 %v235, 4294901760
        %3181 = vmatprep.subr.mxu0 %v3180
        %v3182 = vand.u32 %v234, 4294901760
        %3183 = vmatpush1.msra.mxu0 %v3182
        %v3184 = vand.u32 %v239, 4294901760
        %3185 = vmatprep.subr.mxu0 %v3184
        %v3186 = vand.u32 %v238, 4294901760
        %3187 = vmatpush1.msra.mxu0 %v3186
        %v3188 = vand.u32 %v243, 4294901760
        %3189 = vmatprep.subr.mxu0 %v3188
        %v3190 = vand.u32 %v242, 4294901760
        %3191 = vmatpush1.msra.mxu0 %v3190
        %v3192 = vand.u32 %v247, 4294901760
        %3193 = vmatprep.subr.mxu0 %v3192
        %v3194 = vand.u32 %v246, 4294901760
        %3195 = vmatpush1.msra.mxu0 %v3194
        %v3196 = vand.u32 %v251, 4294901760
        %3197 = vmatprep.subr.mxu0 %v3196
        %v3198 = vand.u32 %v250, 4294901760
        %3199 = vmatpush1.msra.mxu0 %v3198
        %v3200 = vand.u32 %v255, 4294901760
        %3201 = vmatprep.subr.mxu0 %v3200
        %v3202 = vand.u32 %v254, 4294901760
        %3203 = vmatpush1.msra.mxu0 %v3202
        %v3204 = vand.u32 %v259, 4294901760
        %3205 = vmatprep.subr.mxu0 %v3204
        %v3206 = vand.u32 %v258, 4294901760
        %3207 = vmatpush1.msra.mxu0 %v3206
        %v3208 = vand.u32 %v263, 4294901760
        %3209 = vmatprep.subr.mxu0 %v3208
        %v3210 = vand.u32 %v262, 4294901760
        %3211 = vmatpush1.msra.mxu0 %v3210
        %v3212 = vand.u32 %v267, 4294901760
        %3213 = vmatprep.subr.mxu0 %v3212
        %v3214 = vand.u32 %v266, 4294901760
        %3215 = vmatpush1.msra.mxu0 %v3214
        %v3216 = vand.u32 %v271, 4294901760
        %3217 = vmatprep.subr.mxu0 %v3216
        %v3218 = vand.u32 %v270, 4294901760
        %3219 = vmatpush1.msra.mxu0 %v3218
        %v3220 = vand.u32 %v275, 4294901760
        %3221 = vmatprep.subr.mxu0 %v3220
        %v3222 = vand.u32 %v274, 4294901760
        %3223 = vmatpush1.msra.mxu0 %v3222
        %v3224 = vand.u32 %v279, 4294901760
        %3225 = vmatprep.subr.mxu0 %v3224
        %v3226 = vand.u32 %v278, 4294901760
        %3227 = vmatpush1.msra.mxu0 %v3226
        %v3228 = vand.u32 %v283, 4294901760
        %3229 = vmatprep.subr.mxu0 %v3228
        %v3230 = vand.u32 %v282, 4294901760
        %3231 = vmatpush1.msra.mxu0 %v3230
        %v3232 = vand.u32 %v287, 4294901760
        %3233 = vmatprep.subr.mxu0 %v3232
        %v3234 = vand.u32 %v286, 4294901760
        %3235 = vmatpush1.msra.mxu0 %v3234
        %v3236 = vand.u32 %v291, 4294901760
        %3237 = vmatprep.subr.mxu0 %v3236
        %v3238 = vand.u32 %v290, 4294901760
        %3239 = vmatpush1.msra.mxu0 %v3238
        %v3240 = vand.u32 %v295, 4294901760
        %3241 = vmatprep.subr.mxu0 %v3240
        %v3242 = vand.u32 %v294, 4294901760
        %3243 = vmatpush1.msra.mxu0 %v3242
        %v3244 = vand.u32 %v299, 4294901760
        %3245 = vmatprep.subr.mxu0 %v3244
        %v3246 = vand.u32 %v298, 4294901760
        %3247 = vmatpush1.msra.mxu0 %v3246
        %v3248 = vand.u32 %v303, 4294901760
        %3249 = vmatprep.subr.mxu0 %v3248
        %v3250 = vand.u32 %v302, 4294901760
        %3251 = vmatpush1.msra.mxu0 %v3250
        %v3252 = vand.u32 %v307, 4294901760
        %3253 = vmatprep.subr.mxu0 %v3252
        %v3254 = vand.u32 %v306, 4294901760
        %3255 = vmatpush1.msra.mxu0 %v3254
        %v3256 = vand.u32 %v311, 4294901760
        %3257 = vmatprep.subr.mxu0 %v3256
        %v3258 = vand.u32 %v310, 4294901760
        %3259 = vmatpush1.msra.mxu0 %v3258
        %v3260 = vand.u32 %v315, 4294901760
        %3261 = vmatprep.subr.mxu0 %v3260
        %v3262 = vand.u32 %v314, 4294901760
        %3263 = vmatpush1.msra.mxu0 %v3262
        %v3264 = vand.u32 %v319, 4294901760
        %3265 = vmatprep.subr.mxu0 %v3264
        %v3266 = vand.u32 %v318, 4294901760
        %3267 = vmatpush1.msra.mxu0 %v3266
        %v3268 = vand.u32 %v323, 4294901760
        %3269 = vmatprep.subr.mxu0 %v3268
        %v3270 = vand.u32 %v322, 4294901760
        %3271 = vmatpush1.msra.mxu0 %v3270
        %v3272 = vand.u32 %v327, 4294901760
        %3273 = vmatprep.subr.mxu0 %v3272
        %v3274 = vand.u32 %v326, 4294901760
        %3275 = vmatpush1.msra.mxu0 %v3274
        %v3276 = vand.u32 %v331, 4294901760
        %3277 = vmatprep.subr.mxu0 %v3276
        %v3278 = vand.u32 %v330, 4294901760
        %3279 = vmatpush1.msra.mxu0 %v3278
        %v3280 = vand.u32 %v335, 4294901760
        %3281 = vmatprep.subr.mxu0 %v3280
        %v3282 = vand.u32 %v334, 4294901760
        %3283 = vmatpush1.msra.mxu0 %v3282
        %v3284 = vand.u32 %v339, 4294901760
        %3285 = vmatprep.subr.mxu0 %v3284
        %v3286 = vand.u32 %v338, 4294901760
        %3287 = vmatpush1.msra.mxu0 %v3286
        %v3288 = vand.u32 %v205, 4294901760
        %v3289 = vsub.f32 %v205, %v3288
        %v3290 = vand.u32 %v3289, 4294901760
        %v3291 = vsub.f32 %v3289, %v3290
        %v3292 = vand.u32 %v3291, 4294901760
        %3293 = vmatprep.mubr.f32.mxu0 %v3292
        %v3294 = vand.u32 %v204, 4294901760
        %v3295 = vsub.f32 %v204, %v3294
        %v3296 = vand.u32 %v3295, 4294901760
        %v3297 = vsub.f32 %v3295, %v3296
        %v3298 = vand.u32 %v3297, 4294901760
        %3299 = vmatmul.mubr.f32.gmra.mrb[0].mxu0 %v3298
        %v3300 = vpop.f32.mrb[0].mxu0
        %v3301 = vadd.f32 0.0, %v3300
        %v3302 = vpop.f32.mrb[0].mxu0
        %v3303 = vadd.f32 0.0, %v3302
        %v3304 = vand.u32 %v209, 4294901760
        %v3305 = vsub.f32 %v209, %v3304
        %v3306 = vand.u32 %v3305, 4294901760
        %v3307 = vsub.f32 %v3305, %v3306
        %v3308 = vand.u32 %v3307, 4294901760
        %3309 = vmatprep.mubr.f32.mxu0 %v3308
        %v3310 = vand.u32 %v208, 4294901760
        %v3311 = vsub.f32 %v208, %v3310
        %v3312 = vand.u32 %v3311, 4294901760
        %v3313 = vsub.f32 %v3311, %v3312
        %v3314 = vand.u32 %v3313, 4294901760
        %3315 = vmatmul.mubr.f32.gmra.mrb[0].mxu0 %v3314
        %v3316 = vpop.f32.mrb[0].mxu0
        %v3317 = vadd.f32 0.0, %v3316
        %v3318 = vpop.f32.mrb[0].mxu0
        %v3319 = vadd.f32 0.0, %v3318
        %3320 = vdwg.mxu0
        %v3321 = vand.u32 %v215, 4294901760
        %v3322 = vsub.f32 %v215, %v3321
        %v3323 = vand.u32 %v3322, 4294901760
        %v3324 = vsub.f32 %v3322, %v3323
        %v3325 = vand.u32 %v3324, 4294901760
        %3326 = vmatprep.subr.mxu0 %v3325
        %v3327 = vand.u32 %v214, 4294901760
        %v3328 = vsub.f32 %v214, %v3327
        %v3329 = vand.u32 %v3328, 4294901760
        %v3330 = vsub.f32 %v3328, %v3329
        %v3331 = vand.u32 %v3330, 4294901760
        %3332 = vmatpush1.msra.mxu0 %v3331
        %v3333 = vand.u32 %v219, 4294901760
        %v3334 = vsub.f32 %v219, %v3333
        %v3335 = vand.u32 %v3334, 4294901760
        %v3336 = vsub.f32 %v3334, %v3335
        %v3337 = vand.u32 %v3336, 4294901760
        %3338 = vmatprep.subr.mxu0 %v3337
        %v3339 = vand.u32 %v218, 4294901760
        %v3340 = vsub.f32 %v218, %v3339
        %v3341 = vand.u32 %v3340, 4294901760
        %v3342 = vsub.f32 %v3340, %v3341
        %v3343 = vand.u32 %v3342, 4294901760
        %3344 = vmatpush1.msra.mxu0 %v3343
        %v3345 = vand.u32 %v223, 4294901760
        %v3346 = vsub.f32 %v223, %v3345
        %v3347 = vand.u32 %v3346, 4294901760
        %v3348 = vsub.f32 %v3346, %v3347
        %v3349 = vand.u32 %v3348, 4294901760
        %3350 = vmatprep.subr.mxu0 %v3349
        %v3351 = vand.u32 %v222, 4294901760
        %v3352 = vsub.f32 %v222, %v3351
        %v3353 = vand.u32 %v3352, 4294901760
        %v3354 = vsub.f32 %v3352, %v3353
        %v3355 = vand.u32 %v3354, 4294901760
        %3356 = vmatpush1.msra.mxu0 %v3355
        %v3357 = vand.u32 %v227, 4294901760
        %v3358 = vsub.f32 %v227, %v3357
        %v3359 = vand.u32 %v3358, 4294901760
        %v3360 = vsub.f32 %v3358, %v3359
        %v3361 = vand.u32 %v3360, 4294901760
        %3362 = vmatprep.subr.mxu0 %v3361
        %v3363 = vand.u32 %v226, 4294901760
        %v3364 = vsub.f32 %v226, %v3363
        %v3365 = vand.u32 %v3364, 4294901760
        %v3366 = vsub.f32 %v3364, %v3365
        %v3367 = vand.u32 %v3366, 4294901760
        %3368 = vmatpush1.msra.mxu0 %v3367
        %v3369 = vand.u32 %v231, 4294901760
        %v3370 = vsub.f32 %v231, %v3369
        %v3371 = vand.u32 %v3370, 4294901760
        %v3372 = vsub.f32 %v3370, %v3371
        %v3373 = vand.u32 %v3372, 4294901760
        %3374 = vmatprep.subr.mxu0 %v3373
        %v3375 = vand.u32 %v230, 4294901760
        %v3376 = vsub.f32 %v230, %v3375
        %v3377 = vand.u32 %v3376, 4294901760
        %v3378 = vsub.f32 %v3376, %v3377
        %v3379 = vand.u32 %v3378, 4294901760
        %3380 = vmatpush1.msra.mxu0 %v3379
        %v3381 = vand.u32 %v235, 4294901760
        %v3382 = vsub.f32 %v235, %v3381
        %v3383 = vand.u32 %v3382, 4294901760
        %v3384 = vsub.f32 %v3382, %v3383
        %v3385 = vand.u32 %v3384, 4294901760
        %3386 = vmatprep.subr.mxu0 %v3385
        %v3387 = vand.u32 %v234, 4294901760
        %v3388 = vsub.f32 %v234, %v3387
        %v3389 = vand.u32 %v3388, 4294901760
        %v3390 = vsub.f32 %v3388, %v3389
        %v3391 = vand.u32 %v3390, 4294901760
        %3392 = vmatpush1.msra.mxu0 %v3391
        %v3393 = vand.u32 %v239, 4294901760
        %v3394 = vsub.f32 %v239, %v3393
        %v3395 = vand.u32 %v3394, 4294901760
        %v3396 = vsub.f32 %v3394, %v3395
        %v3397 = vand.u32 %v3396, 4294901760
        %3398 = vmatprep.subr.mxu0 %v3397
        %v3399 = vand.u32 %v238, 4294901760
        %v3400 = vsub.f32 %v238, %v3399
        %v3401 = vand.u32 %v3400, 4294901760
        %v3402 = vsub.f32 %v3400, %v3401
        %v3403 = vand.u32 %v3402, 4294901760
        %3404 = vmatpush1.msra.mxu0 %v3403
        %v3405 = vand.u32 %v243, 4294901760
        %v3406 = vsub.f32 %v243, %v3405
        %v3407 = vand.u32 %v3406, 4294901760
        %v3408 = vsub.f32 %v3406, %v3407
        %v3409 = vand.u32 %v3408, 4294901760
        %3410 = vmatprep.subr.mxu0 %v3409
        %v3411 = vand.u32 %v242, 4294901760
        %v3412 = vsub.f32 %v242, %v3411
        %v3413 = vand.u32 %v3412, 4294901760
        %v3414 = vsub.f32 %v3412, %v3413
        %v3415 = vand.u32 %v3414, 4294901760
        %3416 = vmatpush1.msra.mxu0 %v3415
        %v3417 = vand.u32 %v247, 4294901760
        %v3418 = vsub.f32 %v247, %v3417
        %v3419 = vand.u32 %v3418, 4294901760
        %v3420 = vsub.f32 %v3418, %v3419
        %v3421 = vand.u32 %v3420, 4294901760
        %3422 = vmatprep.subr.mxu0 %v3421
        %v3423 = vand.u32 %v246, 4294901760
        %v3424 = vsub.f32 %v246, %v3423
        %v3425 = vand.u32 %v3424, 4294901760
        %v3426 = vsub.f32 %v3424, %v3425
        %v3427 = vand.u32 %v3426, 4294901760
        %3428 = vmatpush1.msra.mxu0 %v3427
        %v3429 = vand.u32 %v251, 4294901760
        %v3430 = vsub.f32 %v251, %v3429
        %v3431 = vand.u32 %v3430, 4294901760
        %v3432 = vsub.f32 %v3430, %v3431
        %v3433 = vand.u32 %v3432, 4294901760
        %3434 = vmatprep.subr.mxu0 %v3433
        %v3435 = vand.u32 %v250, 4294901760
        %v3436 = vsub.f32 %v250, %v3435
        %v3437 = vand.u32 %v3436, 4294901760
        %v3438 = vsub.f32 %v3436, %v3437
        %v3439 = vand.u32 %v3438, 4294901760
        %3440 = vmatpush1.msra.mxu0 %v3439
        %v3441 = vand.u32 %v255, 4294901760
        %v3442 = vsub.f32 %v255, %v3441
        %v3443 = vand.u32 %v3442, 4294901760
        %v3444 = vsub.f32 %v3442, %v3443
        %v3445 = vand.u32 %v3444, 4294901760
        %3446 = vmatprep.subr.mxu0 %v3445
        %v3447 = vand.u32 %v254, 4294901760
        %v3448 = vsub.f32 %v254, %v3447
        %v3449 = vand.u32 %v3448, 4294901760
        %v3450 = vsub.f32 %v3448, %v3449
        %v3451 = vand.u32 %v3450, 4294901760
        %3452 = vmatpush1.msra.mxu0 %v3451
        %v3453 = vand.u32 %v259, 4294901760
        %v3454 = vsub.f32 %v259, %v3453
        %v3455 = vand.u32 %v3454, 4294901760
        %v3456 = vsub.f32 %v3454, %v3455
        %v3457 = vand.u32 %v3456, 4294901760
        %3458 = vmatprep.subr.mxu0 %v3457
        %v3459 = vand.u32 %v258, 4294901760
        %v3460 = vsub.f32 %v258, %v3459
        %v3461 = vand.u32 %v3460, 4294901760
        %v3462 = vsub.f32 %v3460, %v3461
        %v3463 = vand.u32 %v3462, 4294901760
        %3464 = vmatpush1.msra.mxu0 %v3463
        %v3465 = vand.u32 %v263, 4294901760
        %v3466 = vsub.f32 %v263, %v3465
        %v3467 = vand.u32 %v3466, 4294901760
        %v3468 = vsub.f32 %v3466, %v3467
        %v3469 = vand.u32 %v3468, 4294901760
        %3470 = vmatprep.subr.mxu0 %v3469
        %v3471 = vand.u32 %v262, 4294901760
        %v3472 = vsub.f32 %v262, %v3471
        %v3473 = vand.u32 %v3472, 4294901760
        %v3474 = vsub.f32 %v3472, %v3473
        %v3475 = vand.u32 %v3474, 4294901760
        %3476 = vmatpush1.msra.mxu0 %v3475
        %v3477 = vand.u32 %v267, 4294901760
        %v3478 = vsub.f32 %v267, %v3477
        %v3479 = vand.u32 %v3478, 4294901760
        %v3480 = vsub.f32 %v3478, %v3479
        %v3481 = vand.u32 %v3480, 4294901760
        %3482 = vmatprep.subr.mxu0 %v3481
        %v3483 = vand.u32 %v266, 4294901760
        %v3484 = vsub.f32 %v266, %v3483
        %v3485 = vand.u32 %v3484, 4294901760
        %v3486 = vsub.f32 %v3484, %v3485
        %v3487 = vand.u32 %v3486, 4294901760
        %3488 = vmatpush1.msra.mxu0 %v3487
        %v3489 = vand.u32 %v271, 4294901760
        %v3490 = vsub.f32 %v271, %v3489
        %v3491 = vand.u32 %v3490, 4294901760
        %v3492 = vsub.f32 %v3490, %v3491
        %v3493 = vand.u32 %v3492, 4294901760
        %3494 = vmatprep.subr.mxu0 %v3493
        %v3495 = vand.u32 %v270, 4294901760
        %v3496 = vsub.f32 %v270, %v3495
        %v3497 = vand.u32 %v3496, 4294901760
        %v3498 = vsub.f32 %v3496, %v3497
        %v3499 = vand.u32 %v3498, 4294901760
        %3500 = vmatpush1.msra.mxu0 %v3499
        %v3501 = vand.u32 %v275, 4294901760
        %v3502 = vsub.f32 %v275, %v3501
        %v3503 = vand.u32 %v3502, 4294901760
        %v3504 = vsub.f32 %v3502, %v3503
        %v3505 = vand.u32 %v3504, 4294901760
        %3506 = vmatprep.subr.mxu0 %v3505
        %v3507 = vand.u32 %v274, 4294901760
        %v3508 = vsub.f32 %v274, %v3507
        %v3509 = vand.u32 %v3508, 4294901760
        %v3510 = vsub.f32 %v3508, %v3509
        %v3511 = vand.u32 %v3510, 4294901760
        %3512 = vmatpush1.msra.mxu0 %v3511
        %v3513 = vand.u32 %v279, 4294901760
        %v3514 = vsub.f32 %v279, %v3513
        %v3515 = vand.u32 %v3514, 4294901760
        %v3516 = vsub.f32 %v3514, %v3515
        %v3517 = vand.u32 %v3516, 4294901760
        %3518 = vmatprep.subr.mxu0 %v3517
        %v3519 = vand.u32 %v278, 4294901760
        %v3520 = vsub.f32 %v278, %v3519
        %v3521 = vand.u32 %v3520, 4294901760
        %v3522 = vsub.f32 %v3520, %v3521
        %v3523 = vand.u32 %v3522, 4294901760
        %3524 = vmatpush1.msra.mxu0 %v3523
        %v3525 = vand.u32 %v283, 4294901760
        %v3526 = vsub.f32 %v283, %v3525
        %v3527 = vand.u32 %v3526, 4294901760
        %v3528 = vsub.f32 %v3526, %v3527
        %v3529 = vand.u32 %v3528, 4294901760
        %3530 = vmatprep.subr.mxu0 %v3529
        %v3531 = vand.u32 %v282, 4294901760
        %v3532 = vsub.f32 %v282, %v3531
        %v3533 = vand.u32 %v3532, 4294901760
        %v3534 = vsub.f32 %v3532, %v3533
        %v3535 = vand.u32 %v3534, 4294901760
        %3536 = vmatpush1.msra.mxu0 %v3535
        %v3537 = vand.u32 %v287, 4294901760
        %v3538 = vsub.f32 %v287, %v3537
        %v3539 = vand.u32 %v3538, 4294901760
        %v3540 = vsub.f32 %v3538, %v3539
        %v3541 = vand.u32 %v3540, 4294901760
        %3542 = vmatprep.subr.mxu0 %v3541
        %v3543 = vand.u32 %v286, 4294901760
        %v3544 = vsub.f32 %v286, %v3543
        %v3545 = vand.u32 %v3544, 4294901760
        %v3546 = vsub.f32 %v3544, %v3545
        %v3547 = vand.u32 %v3546, 4294901760
        %3548 = vmatpush1.msra.mxu0 %v3547
        %v3549 = vand.u32 %v291, 4294901760
        %v3550 = vsub.f32 %v291, %v3549
        %v3551 = vand.u32 %v3550, 4294901760
        %v3552 = vsub.f32 %v3550, %v3551
        %v3553 = vand.u32 %v3552, 4294901760
        %3554 = vmatprep.subr.mxu0 %v3553
        %v3555 = vand.u32 %v290, 4294901760
        %v3556 = vsub.f32 %v290, %v3555
        %v3557 = vand.u32 %v3556, 4294901760
        %v3558 = vsub.f32 %v3556, %v3557
        %v3559 = vand.u32 %v3558, 4294901760
        %3560 = vmatpush1.msra.mxu0 %v3559
        %v3561 = vand.u32 %v295, 4294901760
        %v3562 = vsub.f32 %v295, %v3561
        %v3563 = vand.u32 %v3562, 4294901760
        %v3564 = vsub.f32 %v3562, %v3563
        %v3565 = vand.u32 %v3564, 4294901760
        %3566 = vmatprep.subr.mxu0 %v3565
        %v3567 = vand.u32 %v294, 4294901760
        %v3568 = vsub.f32 %v294, %v3567
        %v3569 = vand.u32 %v3568, 4294901760
        %v3570 = vsub.f32 %v3568, %v3569
        %v3571 = vand.u32 %v3570, 4294901760
        %3572 = vmatpush1.msra.mxu0 %v3571
        %v3573 = vand.u32 %v299, 4294901760
        %v3574 = vsub.f32 %v299, %v3573
        %v3575 = vand.u32 %v3574, 4294901760
        %v3576 = vsub.f32 %v3574, %v3575
        %v3577 = vand.u32 %v3576, 4294901760
        %3578 = vmatprep.subr.mxu0 %v3577
        %v3579 = vand.u32 %v298, 4294901760
        %v3580 = vsub.f32 %v298, %v3579
        %v3581 = vand.u32 %v3580, 4294901760
        %v3582 = vsub.f32 %v3580, %v3581
        %v3583 = vand.u32 %v3582, 4294901760
        %3584 = vmatpush1.msra.mxu0 %v3583
        %v3585 = vand.u32 %v303, 4294901760
        %v3586 = vsub.f32 %v303, %v3585
        %v3587 = vand.u32 %v3586, 4294901760
        %v3588 = vsub.f32 %v3586, %v3587
        %v3589 = vand.u32 %v3588, 4294901760
        %3590 = vmatprep.subr.mxu0 %v3589
        %v3591 = vand.u32 %v302, 4294901760
        %v3592 = vsub.f32 %v302, %v3591
        %v3593 = vand.u32 %v3592, 4294901760
        %v3594 = vsub.f32 %v3592, %v3593
        %v3595 = vand.u32 %v3594, 4294901760
        %3596 = vmatpush1.msra.mxu0 %v3595
        %v3597 = vand.u32 %v307, 4294901760
        %v3598 = vsub.f32 %v307, %v3597
        %v3599 = vand.u32 %v3598, 4294901760
        %v3600 = vsub.f32 %v3598, %v3599
        %v3601 = vand.u32 %v3600, 4294901760
        %3602 = vmatprep.subr.mxu0 %v3601
        %v3603 = vand.u32 %v306, 4294901760
        %v3604 = vsub.f32 %v306, %v3603
        %v3605 = vand.u32 %v3604, 4294901760
        %v3606 = vsub.f32 %v3604, %v3605
        %v3607 = vand.u32 %v3606, 4294901760
        %3608 = vmatpush1.msra.mxu0 %v3607
        %v3609 = vand.u32 %v311, 4294901760
        %v3610 = vsub.f32 %v311, %v3609
        %v3611 = vand.u32 %v3610, 4294901760
        %v3612 = vsub.f32 %v3610, %v3611
        %v3613 = vand.u32 %v3612, 4294901760
        %3614 = vmatprep.subr.mxu0 %v3613
        %v3615 = vand.u32 %v310, 4294901760
        %v3616 = vsub.f32 %v310, %v3615
        %v3617 = vand.u32 %v3616, 4294901760
        %v3618 = vsub.f32 %v3616, %v3617
        %v3619 = vand.u32 %v3618, 4294901760
        %3620 = vmatpush1.msra.mxu0 %v3619
        %v3621 = vand.u32 %v315, 4294901760
        %v3622 = vsub.f32 %v315, %v3621
        %v3623 = vand.u32 %v3622, 4294901760
        %v3624 = vsub.f32 %v3622, %v3623
        %v3625 = vand.u32 %v3624, 4294901760
        %3626 = vmatprep.subr.mxu0 %v3625
        %v3627 = vand.u32 %v314, 4294901760
        %v3628 = vsub.f32 %v314, %v3627
        %v3629 = vand.u32 %v3628, 4294901760
        %v3630 = vsub.f32 %v3628, %v3629
        %v3631 = vand.u32 %v3630, 4294901760
        %3632 = vmatpush1.msra.mxu0 %v3631
        %v3633 = vand.u32 %v319, 4294901760
        %v3634 = vsub.f32 %v319, %v3633
        %v3635 = vand.u32 %v3634, 4294901760
        %v3636 = vsub.f32 %v3634, %v3635
        %v3637 = vand.u32 %v3636, 4294901760
        %3638 = vmatprep.subr.mxu0 %v3637
        %v3639 = vand.u32 %v318, 4294901760
        %v3640 = vsub.f32 %v318, %v3639
        %v3641 = vand.u32 %v3640, 4294901760
        %v3642 = vsub.f32 %v3640, %v3641
        %v3643 = vand.u32 %v3642, 4294901760
        %3644 = vmatpush1.msra.mxu0 %v3643
        %v3645 = vand.u32 %v323, 4294901760
        %v3646 = vsub.f32 %v323, %v3645
        %v3647 = vand.u32 %v3646, 4294901760
        %v3648 = vsub.f32 %v3646, %v3647
        %v3649 = vand.u32 %v3648, 4294901760
        %3650 = vmatprep.subr.mxu0 %v3649
        %v3651 = vand.u32 %v322, 4294901760
        %v3652 = vsub.f32 %v322, %v3651
        %v3653 = vand.u32 %v3652, 4294901760
        %v3654 = vsub.f32 %v3652, %v3653
        %v3655 = vand.u32 %v3654, 4294901760
        %3656 = vmatpush1.msra.mxu0 %v3655
        %v3657 = vand.u32 %v327, 4294901760
        %v3658 = vsub.f32 %v327, %v3657
        %v3659 = vand.u32 %v3658, 4294901760
        %v3660 = vsub.f32 %v3658, %v3659
        %v3661 = vand.u32 %v3660, 4294901760
        %3662 = vmatprep.subr.mxu0 %v3661
        %v3663 = vand.u32 %v326, 4294901760
        %v3664 = vsub.f32 %v326, %v3663
        %v3665 = vand.u32 %v3664, 4294901760
        %v3666 = vsub.f32 %v3664, %v3665
        %v3667 = vand.u32 %v3666, 4294901760
        %3668 = vmatpush1.msra.mxu0 %v3667
        %v3669 = vand.u32 %v331, 4294901760
        %v3670 = vsub.f32 %v331, %v3669
        %v3671 = vand.u32 %v3670, 4294901760
        %v3672 = vsub.f32 %v3670, %v3671
        %v3673 = vand.u32 %v3672, 4294901760
        %3674 = vmatprep.subr.mxu0 %v3673
        %v3675 = vand.u32 %v330, 4294901760
        %v3676 = vsub.f32 %v330, %v3675
        %v3677 = vand.u32 %v3676, 4294901760
        %v3678 = vsub.f32 %v3676, %v3677
        %v3679 = vand.u32 %v3678, 4294901760
        %3680 = vmatpush1.msra.mxu0 %v3679
        %v3681 = vand.u32 %v335, 4294901760
        %v3682 = vsub.f32 %v335, %v3681
        %v3683 = vand.u32 %v3682, 4294901760
        %v3684 = vsub.f32 %v3682, %v3683
        %v3685 = vand.u32 %v3684, 4294901760
        %3686 = vmatprep.subr.mxu0 %v3685
        %v3687 = vand.u32 %v334, 4294901760
        %v3688 = vsub.f32 %v334, %v3687
        %v3689 = vand.u32 %v3688, 4294901760
        %v3690 = vsub.f32 %v3688, %v3689
        %v3691 = vand.u32 %v3690, 4294901760
        %3692 = vmatpush1.msra.mxu0 %v3691
        %v3693 = vand.u32 %v339, 4294901760
        %v3694 = vsub.f32 %v339, %v3693
        %v3695 = vand.u32 %v3694, 4294901760
        %v3696 = vsub.f32 %v3694, %v3695
        %v3697 = vand.u32 %v3696, 4294901760
        %3698 = vmatprep.subr.mxu0 %v3697
        %v3699 = vand.u32 %v338, 4294901760
        %v3700 = vsub.f32 %v338, %v3699
        %v3701 = vand.u32 %v3700, 4294901760
        %v3702 = vsub.f32 %v3700, %v3701
        %v3703 = vand.u32 %v3702, 4294901760
        %3704 = vmatpush1.msra.mxu0 %v3703
        %v3705 = vand.u32 %v205, 4294901760
        %3706 = vmatprep.mubr.f32.mxu0 %v3705
        %v3707 = vand.u32 %v204, 4294901760
        %3708 = vmatmul.mubr.f32.gmra.mrb[0].mxu0 %v3707
        %v3709 = vpop.f32.mrb[0].mxu0
        %v3710 = vadd.f32 %v3301, %v3709
        %v3711 = vpop.f32.mrb[0].mxu0
        %v3712 = vadd.f32 %v3303, %v3711
        %v3713 = vand.u32 %v209, 4294901760
        %3714 = vmatprep.mubr.f32.mxu0 %v3713
        %v3715 = vand.u32 %v208, 4294901760
        %3716 = vmatmul.mubr.f32.gmra.mrb[0].mxu0 %v3715
        %v3717 = vpop.f32.mrb[0].mxu0
        %v3718 = vadd.f32 %v3317, %v3717
        %v3719 = vpop.f32.mrb[0].mxu0
        %v3720 = vadd.f32 %v3319, %v3719
        %3721 = vdwg.mxu0
        %v3722 = vand.u32 %v215, 4294901760
        %v3723 = vsub.f32 %v215, %v3722
        %3724 = vmatprep.subr.mxu0 %v3723
        %v3725 = vand.u32 %v214, 4294901760
        %v3726 = vsub.f32 %v214, %v3725
        %3727 = vmatpush1.msra.mxu0 %v3726
        %v3728 = vand.u32 %v219, 4294901760
        %v3729 = vsub.f32 %v219, %v3728
        %3730 = vmatprep.subr.mxu0 %v3729
        %v3731 = vand.u32 %v218, 4294901760
        %v3732 = vsub.f32 %v218, %v3731
        %3733 = vmatpush1.msra.mxu0 %v3732
        %v3734 = vand.u32 %v223, 4294901760
        %v3735 = vsub.f32 %v223, %v3734
        %3736 = vmatprep.subr.mxu0 %v3735
        %v3737 = vand.u32 %v222, 4294901760
        %v3738 = vsub.f32 %v222, %v3737
        %3739 = vmatpush1.msra.mxu0 %v3738
        %v3740 = vand.u32 %v227, 4294901760
        %v3741 = vsub.f32 %v227, %v3740
        %3742 = vmatprep.subr.mxu0 %v3741
        %v3743 = vand.u32 %v226, 4294901760
        %v3744 = vsub.f32 %v226, %v3743
        %3745 = vmatpush1.msra.mxu0 %v3744
        %v3746 = vand.u32 %v231, 4294901760
        %v3747 = vsub.f32 %v231, %v3746
        %3748 = vmatprep.subr.mxu0 %v3747
        %v3749 = vand.u32 %v230, 4294901760
        %v3750 = vsub.f32 %v230, %v3749
        %3751 = vmatpush1.msra.mxu0 %v3750
        %v3752 = vand.u32 %v235, 4294901760
        %v3753 = vsub.f32 %v235, %v3752
        %3754 = vmatprep.subr.mxu0 %v3753
        %v3755 = vand.u32 %v234, 4294901760
        %v3756 = vsub.f32 %v234, %v3755
        %3757 = vmatpush1.msra.mxu0 %v3756
        %v3758 = vand.u32 %v239, 4294901760
        %v3759 = vsub.f32 %v239, %v3758
        %3760 = vmatprep.subr.mxu0 %v3759
        %v3761 = vand.u32 %v238, 4294901760
        %v3762 = vsub.f32 %v238, %v3761
        %3763 = vmatpush1.msra.mxu0 %v3762
        %v3764 = vand.u32 %v243, 4294901760
        %v3765 = vsub.f32 %v243, %v3764
        %3766 = vmatprep.subr.mxu0 %v3765
        %v3767 = vand.u32 %v242, 4294901760
        %v3768 = vsub.f32 %v242, %v3767
        %3769 = vmatpush1.msra.mxu0 %v3768
        %v3770 = vand.u32 %v247, 4294901760
        %v3771 = vsub.f32 %v247, %v3770
        %3772 = vmatprep.subr.mxu0 %v3771
        %v3773 = vand.u32 %v246, 4294901760
        %v3774 = vsub.f32 %v246, %v3773
        %3775 = vmatpush1.msra.mxu0 %v3774
        %v3776 = vand.u32 %v251, 4294901760
        %v3777 = vsub.f32 %v251, %v3776
        %3778 = vmatprep.subr.mxu0 %v3777
        %v3779 = vand.u32 %v250, 4294901760
        %v3780 = vsub.f32 %v250, %v3779
        %3781 = vmatpush1.msra.mxu0 %v3780
        %v3782 = vand.u32 %v255, 4294901760
        %v3783 = vsub.f32 %v255, %v3782
        %3784 = vmatprep.subr.mxu0 %v3783
        %v3785 = vand.u32 %v254, 4294901760
        %v3786 = vsub.f32 %v254, %v3785
        %3787 = vmatpush1.msra.mxu0 %v3786
        %v3788 = vand.u32 %v259, 4294901760
        %v3789 = vsub.f32 %v259, %v3788
        %3790 = vmatprep.subr.mxu0 %v3789
        %v3791 = vand.u32 %v258, 4294901760
        %v3792 = vsub.f32 %v258, %v3791
        %3793 = vmatpush1.msra.mxu0 %v3792
        %v3794 = vand.u32 %v263, 4294901760
        %v3795 = vsub.f32 %v263, %v3794
        %3796 = vmatprep.subr.mxu0 %v3795
        %v3797 = vand.u32 %v262, 4294901760
        %v3798 = vsub.f32 %v262, %v3797
        %3799 = vmatpush1.msra.mxu0 %v3798
        %v3800 = vand.u32 %v267, 4294901760
        %v3801 = vsub.f32 %v267, %v3800
        %3802 = vmatprep.subr.mxu0 %v3801
        %v3803 = vand.u32 %v266, 4294901760
        %v3804 = vsub.f32 %v266, %v3803
        %3805 = vmatpush1.msra.mxu0 %v3804
        %v3806 = vand.u32 %v271, 4294901760
        %v3807 = vsub.f32 %v271, %v3806
        %3808 = vmatprep.subr.mxu0 %v3807
        %v3809 = vand.u32 %v270, 4294901760
        %v3810 = vsub.f32 %v270, %v3809
        %3811 = vmatpush1.msra.mxu0 %v3810
        %v3812 = vand.u32 %v275, 4294901760
        %v3813 = vsub.f32 %v275, %v3812
        %3814 = vmatprep.subr.mxu0 %v3813
        %v3815 = vand.u32 %v274, 4294901760
        %v3816 = vsub.f32 %v274, %v3815
        %3817 = vmatpush1.msra.mxu0 %v3816
        %v3818 = vand.u32 %v279, 4294901760
        %v3819 = vsub.f32 %v279, %v3818
        %3820 = vmatprep.subr.mxu0 %v3819
        %v3821 = vand.u32 %v278, 4294901760
        %v3822 = vsub.f32 %v278, %v3821
        %3823 = vmatpush1.msra.mxu0 %v3822
        %v3824 = vand.u32 %v283, 4294901760
        %v3825 = vsub.f32 %v283, %v3824
        %3826 = vmatprep.subr.mxu0 %v3825
        %v3827 = vand.u32 %v282, 4294901760
        %v3828 = vsub.f32 %v282, %v3827
        %3829 = vmatpush1.msra.mxu0 %v3828
        %v3830 = vand.u32 %v287, 4294901760
        %v3831 = vsub.f32 %v287, %v3830
        %3832 = vmatprep.subr.mxu0 %v3831
        %v3833 = vand.u32 %v286, 4294901760
        %v3834 = vsub.f32 %v286, %v3833
        %3835 = vmatpush1.msra.mxu0 %v3834
        %v3836 = vand.u32 %v291, 4294901760
        %v3837 = vsub.f32 %v291, %v3836
        %3838 = vmatprep.subr.mxu0 %v3837
        %v3839 = vand.u32 %v290, 4294901760
        %v3840 = vsub.f32 %v290, %v3839
        %3841 = vmatpush1.msra.mxu0 %v3840
        %v3842 = vand.u32 %v295, 4294901760
        %v3843 = vsub.f32 %v295, %v3842
        %3844 = vmatprep.subr.mxu0 %v3843
        %v3845 = vand.u32 %v294, 4294901760
        %v3846 = vsub.f32 %v294, %v3845
        %3847 = vmatpush1.msra.mxu0 %v3846
        %v3848 = vand.u32 %v299, 4294901760
        %v3849 = vsub.f32 %v299, %v3848
        %3850 = vmatprep.subr.mxu0 %v3849
        %v3851 = vand.u32 %v298, 4294901760
        %v3852 = vsub.f32 %v298, %v3851
        %3853 = vmatpush1.msra.mxu0 %v3852
        %v3854 = vand.u32 %v303, 4294901760
        %v3855 = vsub.f32 %v303, %v3854
        %3856 = vmatprep.subr.mxu0 %v3855
        %v3857 = vand.u32 %v302, 4294901760
        %v3858 = vsub.f32 %v302, %v3857
        %3859 = vmatpush1.msra.mxu0 %v3858
        %v3860 = vand.u32 %v307, 4294901760
        %v3861 = vsub.f32 %v307, %v3860
        %3862 = vmatprep.subr.mxu0 %v3861
        %v3863 = vand.u32 %v306, 4294901760
        %v3864 = vsub.f32 %v306, %v3863
        %3865 = vmatpush1.msra.mxu0 %v3864
        %v3866 = vand.u32 %v311, 4294901760
        %v3867 = vsub.f32 %v311, %v3866
        %3868 = vmatprep.subr.mxu0 %v3867
        %v3869 = vand.u32 %v310, 4294901760
        %v3870 = vsub.f32 %v310, %v3869
        %3871 = vmatpush1.msra.mxu0 %v3870
        %v3872 = vand.u32 %v315, 4294901760
        %v3873 = vsub.f32 %v315, %v3872
        %3874 = vmatprep.subr.mxu0 %v3873
        %v3875 = vand.u32 %v314, 4294901760
        %v3876 = vsub.f32 %v314, %v3875
        %3877 = vmatpush1.msra.mxu0 %v3876
        %v3878 = vand.u32 %v319, 4294901760
        %v3879 = vsub.f32 %v319, %v3878
        %3880 = vmatprep.subr.mxu0 %v3879
        %v3881 = vand.u32 %v318, 4294901760
        %v3882 = vsub.f32 %v318, %v3881
        %3883 = vmatpush1.msra.mxu0 %v3882
        %v3884 = vand.u32 %v323, 4294901760
        %v3885 = vsub.f32 %v323, %v3884
        %3886 = vmatprep.subr.mxu0 %v3885
        %v3887 = vand.u32 %v322, 4294901760
        %v3888 = vsub.f32 %v322, %v3887
        %3889 = vmatpush1.msra.mxu0 %v3888
        %v3890 = vand.u32 %v327, 4294901760
        %v3891 = vsub.f32 %v327, %v3890
        %3892 = vmatprep.subr.mxu0 %v3891
        %v3893 = vand.u32 %v326, 4294901760
        %v3894 = vsub.f32 %v326, %v3893
        %3895 = vmatpush1.msra.mxu0 %v3894
        %v3896 = vand.u32 %v331, 4294901760
        %v3897 = vsub.f32 %v331, %v3896
        %3898 = vmatprep.subr.mxu0 %v3897
        %v3899 = vand.u32 %v330, 4294901760
        %v3900 = vsub.f32 %v330, %v3899
        %3901 = vmatpush1.msra.mxu0 %v3900
        %v3902 = vand.u32 %v335, 4294901760
        %v3903 = vsub.f32 %v335, %v3902
        %3904 = vmatprep.subr.mxu0 %v3903
        %v3905 = vand.u32 %v334, 4294901760
        %v3906 = vsub.f32 %v334, %v3905
        %3907 = vmatpush1.msra.mxu0 %v3906
        %v3908 = vand.u32 %v339, 4294901760
        %v3909 = vsub.f32 %v339, %v3908
        %3910 = vmatprep.subr.mxu0 %v3909
        %v3911 = vand.u32 %v338, 4294901760
        %v3912 = vsub.f32 %v338, %v3911
        %3913 = vmatpush1.msra.mxu0 %v3912
        %v3914 = vand.u32 %v205, 4294901760
        %v3915 = vsub.f32 %v205, %v3914
        %3916 = vmatprep.mubr.f32.mxu0 %v3915
        %v3917 = vand.u32 %v204, 4294901760
        %v3918 = vsub.f32 %v204, %v3917
        %3919 = vmatmul.mubr.f32.gmra.mrb[0].mxu0 %v3918
        %v3920 = vpop.f32.mrb[0].mxu0
        %v3921 = vadd.f32 %v3710, %v3920
        %v3922 = vpop.f32.mrb[0].mxu0
        %v3923 = vadd.f32 %v3712, %v3922
        %v3924 = vand.u32 %v209, 4294901760
        %v3925 = vsub.f32 %v209, %v3924
        %3926 = vmatprep.mubr.f32.mxu0 %v3925
        %v3927 = vand.u32 %v208, 4294901760
        %v3928 = vsub.f32 %v208, %v3927
        %3929 = vmatmul.mubr.f32.gmra.mrb[0].mxu0 %v3928
        %v3930 = vpop.f32.mrb[0].mxu0
        %v3931 = vadd.f32 %v3718, %v3930
        %v3932 = vpop.f32.mrb[0].mxu0
        %v3933 = vadd.f32 %v3720, %v3932
        %3934 = vdwg.mxu0
        %v3935 = vand.u32 %v215, 4294901760
        %3936 = vmatprep.subr.mxu0 %v3935
        %v3937 = vand.u32 %v214, 4294901760
        %3938 = vmatpush1.msra.mxu0 %v3937
        %v3939 = vand.u32 %v219, 4294901760
        %3940 = vmatprep.subr.mxu0 %v3939
        %v3941 = vand.u32 %v218, 4294901760
        %3942 = vmatpush1.msra.mxu0 %v3941
        %v3943 = vand.u32 %v223, 4294901760
        %3944 = vmatprep.subr.mxu0 %v3943
        %v3945 = vand.u32 %v222, 4294901760
        %3946 = vmatpush1.msra.mxu0 %v3945
        %v3947 = vand.u32 %v227, 4294901760
        %3948 = vmatprep.subr.mxu0 %v3947
        %v3949 = vand.u32 %v226, 4294901760
        %3950 = vmatpush1.msra.mxu0 %v3949
        %v3951 = vand.u32 %v231, 4294901760
        %3952 = vmatprep.subr.mxu0 %v3951
        %v3953 = vand.u32 %v230, 4294901760
        %3954 = vmatpush1.msra.mxu0 %v3953
        %v3955 = vand.u32 %v235, 4294901760
        %3956 = vmatprep.subr.mxu0 %v3955
        %v3957 = vand.u32 %v234, 4294901760
        %3958 = vmatpush1.msra.mxu0 %v3957
        %v3959 = vand.u32 %v239, 4294901760
        %3960 = vmatprep.subr.mxu0 %v3959
        %v3961 = vand.u32 %v238, 4294901760
        %3962 = vmatpush1.msra.mxu0 %v3961
        %v3963 = vand.u32 %v243, 4294901760
        %3964 = vmatprep.subr.mxu0 %v3963
        %v3965 = vand.u32 %v242, 4294901760
        %3966 = vmatpush1.msra.mxu0 %v3965
        %v3967 = vand.u32 %v247, 4294901760
        %3968 = vmatprep.subr.mxu0 %v3967
        %v3969 = vand.u32 %v246, 4294901760
        %3970 = vmatpush1.msra.mxu0 %v3969
        %v3971 = vand.u32 %v251, 4294901760
        %3972 = vmatprep.subr.mxu0 %v3971
        %v3973 = vand.u32 %v250, 4294901760
        %3974 = vmatpush1.msra.mxu0 %v3973
        %v3975 = vand.u32 %v255, 4294901760
        %3976 = vmatprep.subr.mxu0 %v3975
        %v3977 = vand.u32 %v254, 4294901760
        %3978 = vmatpush1.msra.mxu0 %v3977
        %v3979 = vand.u32 %v259, 4294901760
        %3980 = vmatprep.subr.mxu0 %v3979
        %v3981 = vand.u32 %v258, 4294901760
        %3982 = vmatpush1.msra.mxu0 %v3981
        %v3983 = vand.u32 %v263, 4294901760
        %3984 = vmatprep.subr.mxu0 %v3983
        %v3985 = vand.u32 %v262, 4294901760
        %3986 = vmatpush1.msra.mxu0 %v3985
        %v3987 = vand.u32 %v267, 4294901760
        %3988 = vmatprep.subr.mxu0 %v3987
        %v3989 = vand.u32 %v266, 4294901760
        %3990 = vmatpush1.msra.mxu0 %v3989
        %v3991 = vand.u32 %v271, 4294901760
        %3992 = vmatprep.subr.mxu0 %v3991
        %v3993 = vand.u32 %v270, 4294901760
        %3994 = vmatpush1.msra.mxu0 %v3993
        %v3995 = vand.u32 %v275, 4294901760
        %3996 = vmatprep.subr.mxu0 %v3995
        %v3997 = vand.u32 %v274, 4294901760
        %3998 = vmatpush1.msra.mxu0 %v3997
        %v3999 = vand.u32 %v279, 4294901760
        %4000 = vmatprep.subr.mxu0 %v3999
        %v4001 = vand.u32 %v278, 4294901760
        %4002 = vmatpush1.msra.mxu0 %v4001
        %v4003 = vand.u32 %v283, 4294901760
        %4004 = vmatprep.subr.mxu0 %v4003
        %v4005 = vand.u32 %v282, 4294901760
        %4006 = vmatpush1.msra.mxu0 %v4005
        %v4007 = vand.u32 %v287, 4294901760
        %4008 = vmatprep.subr.mxu0 %v4007
        %v4009 = vand.u32 %v286, 4294901760
        %4010 = vmatpush1.msra.mxu0 %v4009
        %v4011 = vand.u32 %v291, 4294901760
        %4012 = vmatprep.subr.mxu0 %v4011
        %v4013 = vand.u32 %v290, 4294901760
        %4014 = vmatpush1.msra.mxu0 %v4013
        %v4015 = vand.u32 %v295, 4294901760
        %4016 = vmatprep.subr.mxu0 %v4015
        %v4017 = vand.u32 %v294, 4294901760
        %4018 = vmatpush1.msra.mxu0 %v4017
        %v4019 = vand.u32 %v299, 4294901760
        %4020 = vmatprep.subr.mxu0 %v4019
        %v4021 = vand.u32 %v298, 4294901760
        %4022 = vmatpush1.msra.mxu0 %v4021
        %v4023 = vand.u32 %v303, 4294901760
        %4024 = vmatprep.subr.mxu0 %v4023
        %v4025 = vand.u32 %v302, 4294901760
        %4026 = vmatpush1.msra.mxu0 %v4025
        %v4027 = vand.u32 %v307, 4294901760
        %4028 = vmatprep.subr.mxu0 %v4027
        %v4029 = vand.u32 %v306, 4294901760
        %4030 = vmatpush1.msra.mxu0 %v4029
        %v4031 = vand.u32 %v311, 4294901760
        %4032 = vmatprep.subr.mxu0 %v4031
        %v4033 = vand.u32 %v310, 4294901760
        %4034 = vmatpush1.msra.mxu0 %v4033
        %v4035 = vand.u32 %v315, 4294901760
        %4036 = vmatprep.subr.mxu0 %v4035
        %v4037 = vand.u32 %v314, 4294901760
        %4038 = vmatpush1.msra.mxu0 %v4037
        %v4039 = vand.u32 %v319, 4294901760
        %4040 = vmatprep.subr.mxu0 %v4039
        %v4041 = vand.u32 %v318, 4294901760
        %4042 = vmatpush1.msra.mxu0 %v4041
        %v4043 = vand.u32 %v323, 4294901760
        %4044 = vmatprep.subr.mxu0 %v4043
        %v4045 = vand.u32 %v322, 4294901760
        %4046 = vmatpush1.msra.mxu0 %v4045
        %v4047 = vand.u32 %v327, 4294901760
        %4048 = vmatprep.subr.mxu0 %v4047
        %v4049 = vand.u32 %v326, 4294901760
        %4050 = vmatpush1.msra.mxu0 %v4049
        %v4051 = vand.u32 %v331, 4294901760
        %4052 = vmatprep.subr.mxu0 %v4051
        %v4053 = vand.u32 %v330, 4294901760
        %4054 = vmatpush1.msra.mxu0 %v4053
        %v4055 = vand.u32 %v335, 4294901760
        %4056 = vmatprep.subr.mxu0 %v4055
        %v4057 = vand.u32 %v334, 4294901760
        %4058 = vmatpush1.msra.mxu0 %v4057
        %v4059 = vand.u32 %v339, 4294901760
        %4060 = vmatprep.subr.mxu0 %v4059
        %v4061 = vand.u32 %v338, 4294901760
        %4062 = vmatpush1.msra.mxu0 %v4061
        %v4063 = vand.u32 %v205, 4294901760
        %v4064 = vsub.f32 %v205, %v4063
        %v4065 = vand.u32 %v4064, 4294901760
        %4066 = vmatprep.mubr.f32.mxu0 %v4065
        %v4067 = vand.u32 %v204, 4294901760
        %v4068 = vsub.f32 %v204, %v4067
        %v4069 = vand.u32 %v4068, 4294901760
        %4070 = vmatmul.mubr.f32.gmra.mrb[0].mxu0 %v4069
        %v4071 = vpop.f32.mrb[0].mxu0
        %v4072 = vadd.f32 %v3921, %v4071
        %v4073 = vpop.f32.mrb[0].mxu0
        %v4074 = vadd.f32 %v3923, %v4073
        %v4075 = vand.u32 %v209, 4294901760
        %v4076 = vsub.f32 %v209, %v4075
        %v4077 = vand.u32 %v4076, 4294901760
        %4078 = vmatprep.mubr.f32.mxu0 %v4077
        %v4079 = vand.u32 %v208, 4294901760
        %v4080 = vsub.f32 %v208, %v4079
        %v4081 = vand.u32 %v4080, 4294901760
        %4082 = vmatmul.mubr.f32.gmra.mrb[0].mxu0 %v4081
        %v4083 = vpop.f32.mrb[0].mxu0
        %v4084 = vadd.f32 %v3931, %v4083
        %v4085 = vpop.f32.mrb[0].mxu0
        %v4086 = vadd.f32 %v3933, %v4085
        %4087 = vdwg.mxu0
        %v4088 = vand.u32 %v215, 4294901760
        %v4089 = vsub.f32 %v215, %v4088
        %v4090 = vand.u32 %v4089, 4294901760
        %4091 = vmatprep.subr.mxu0 %v4090
        %v4092 = vand.u32 %v214, 4294901760
        %v4093 = vsub.f32 %v214, %v4092
        %v4094 = vand.u32 %v4093, 4294901760
        %4095 = vmatpush1.msra.mxu0 %v4094
        %v4096 = vand.u32 %v219, 4294901760
        %v4097 = vsub.f32 %v219, %v4096
        %v4098 = vand.u32 %v4097, 4294901760
        %4099 = vmatprep.subr.mxu0 %v4098
        %v4100 = vand.u32 %v218, 4294901760
        %v4101 = vsub.f32 %v218, %v4100
        %v4102 = vand.u32 %v4101, 4294901760
        %4103 = vmatpush1.msra.mxu0 %v4102
        %v4104 = vand.u32 %v223, 4294901760
        %v4105 = vsub.f32 %v223, %v4104
        %v4106 = vand.u32 %v4105, 4294901760
        %4107 = vmatprep.subr.mxu0 %v4106
        %v4108 = vand.u32 %v222, 4294901760
        %v4109 = vsub.f32 %v222, %v4108
        %v4110 = vand.u32 %v4109, 4294901760
        %4111 = vmatpush1.msra.mxu0 %v4110
        %v4112 = vand.u32 %v227, 4294901760
        %v4113 = vsub.f32 %v227, %v4112
        %v4114 = vand.u32 %v4113, 4294901760
        %4115 = vmatprep.subr.mxu0 %v4114
        %v4116 = vand.u32 %v226, 4294901760
        %v4117 = vsub.f32 %v226, %v4116
        %v4118 = vand.u32 %v4117, 4294901760
        %4119 = vmatpush1.msra.mxu0 %v4118
        %v4120 = vand.u32 %v231, 4294901760
        %v4121 = vsub.f32 %v231, %v4120
        %v4122 = vand.u32 %v4121, 4294901760
        %4123 = vmatprep.subr.mxu0 %v4122
        %v4124 = vand.u32 %v230, 4294901760
        %v4125 = vsub.f32 %v230, %v4124
        %v4126 = vand.u32 %v4125, 4294901760
        %4127 = vmatpush1.msra.mxu0 %v4126
        %v4128 = vand.u32 %v235, 4294901760
        %v4129 = vsub.f32 %v235, %v4128
        %v4130 = vand.u32 %v4129, 4294901760
        %4131 = vmatprep.subr.mxu0 %v4130
        %v4132 = vand.u32 %v234, 4294901760
        %v4133 = vsub.f32 %v234, %v4132
        %v4134 = vand.u32 %v4133, 4294901760
        %4135 = vmatpush1.msra.mxu0 %v4134
        %v4136 = vand.u32 %v239, 4294901760
        %v4137 = vsub.f32 %v239, %v4136
        %v4138 = vand.u32 %v4137, 4294901760
        %4139 = vmatprep.subr.mxu0 %v4138
        %v4140 = vand.u32 %v238, 4294901760
        %v4141 = vsub.f32 %v238, %v4140
        %v4142 = vand.u32 %v4141, 4294901760
        %4143 = vmatpush1.msra.mxu0 %v4142
        %v4144 = vand.u32 %v243, 4294901760
        %v4145 = vsub.f32 %v243, %v4144
        %v4146 = vand.u32 %v4145, 4294901760
        %4147 = vmatprep.subr.mxu0 %v4146
        %v4148 = vand.u32 %v242, 4294901760
        %v4149 = vsub.f32 %v242, %v4148
        %v4150 = vand.u32 %v4149, 4294901760
        %4151 = vmatpush1.msra.mxu0 %v4150
        %v4152 = vand.u32 %v247, 4294901760
        %v4153 = vsub.f32 %v247, %v4152
        %v4154 = vand.u32 %v4153, 4294901760
        %4155 = vmatprep.subr.mxu0 %v4154
        %v4156 = vand.u32 %v246, 4294901760
        %v4157 = vsub.f32 %v246, %v4156
        %v4158 = vand.u32 %v4157, 4294901760
        %4159 = vmatpush1.msra.mxu0 %v4158
        %v4160 = vand.u32 %v251, 4294901760
        %v4161 = vsub.f32 %v251, %v4160
        %v4162 = vand.u32 %v4161, 4294901760
        %4163 = vmatprep.subr.mxu0 %v4162
        %v4164 = vand.u32 %v250, 4294901760
        %v4165 = vsub.f32 %v250, %v4164
        %v4166 = vand.u32 %v4165, 4294901760
        %4167 = vmatpush1.msra.mxu0 %v4166
        %v4168 = vand.u32 %v255, 4294901760
        %v4169 = vsub.f32 %v255, %v4168
        %v4170 = vand.u32 %v4169, 4294901760
        %4171 = vmatprep.subr.mxu0 %v4170
        %v4172 = vand.u32 %v254, 4294901760
        %v4173 = vsub.f32 %v254, %v4172
        %v4174 = vand.u32 %v4173, 4294901760
        %4175 = vmatpush1.msra.mxu0 %v4174
        %v4176 = vand.u32 %v259, 4294901760
        %v4177 = vsub.f32 %v259, %v4176
        %v4178 = vand.u32 %v4177, 4294901760
        %4179 = vmatprep.subr.mxu0 %v4178
        %v4180 = vand.u32 %v258, 4294901760
        %v4181 = vsub.f32 %v258, %v4180
        %v4182 = vand.u32 %v4181, 4294901760
        %4183 = vmatpush1.msra.mxu0 %v4182
        %v4184 = vand.u32 %v263, 4294901760
        %v4185 = vsub.f32 %v263, %v4184
        %v4186 = vand.u32 %v4185, 4294901760
        %4187 = vmatprep.subr.mxu0 %v4186
        %v4188 = vand.u32 %v262, 4294901760
        %v4189 = vsub.f32 %v262, %v4188
        %v4190 = vand.u32 %v4189, 4294901760
        %4191 = vmatpush1.msra.mxu0 %v4190
        %v4192 = vand.u32 %v267, 4294901760
        %v4193 = vsub.f32 %v267, %v4192
        %v4194 = vand.u32 %v4193, 4294901760
        %4195 = vmatprep.subr.mxu0 %v4194
        %v4196 = vand.u32 %v266, 4294901760
        %v4197 = vsub.f32 %v266, %v4196
        %v4198 = vand.u32 %v4197, 4294901760
        %4199 = vmatpush1.msra.mxu0 %v4198
        %v4200 = vand.u32 %v271, 4294901760
        %v4201 = vsub.f32 %v271, %v4200
        %v4202 = vand.u32 %v4201, 4294901760
        %4203 = vmatprep.subr.mxu0 %v4202
        %v4204 = vand.u32 %v270, 4294901760
        %v4205 = vsub.f32 %v270, %v4204
        %v4206 = vand.u32 %v4205, 4294901760
        %4207 = vmatpush1.msra.mxu0 %v4206
        %v4208 = vand.u32 %v275, 4294901760
        %v4209 = vsub.f32 %v275, %v4208
        %v4210 = vand.u32 %v4209, 4294901760
        %4211 = vmatprep.subr.mxu0 %v4210
        %v4212 = vand.u32 %v274, 4294901760
        %v4213 = vsub.f32 %v274, %v4212
        %v4214 = vand.u32 %v4213, 4294901760
        %4215 = vmatpush1.msra.mxu0 %v4214
        %v4216 = vand.u32 %v279, 4294901760
        %v4217 = vsub.f32 %v279, %v4216
        %v4218 = vand.u32 %v4217, 4294901760
        %4219 = vmatprep.subr.mxu0 %v4218
        %v4220 = vand.u32 %v278, 4294901760
        %v4221 = vsub.f32 %v278, %v4220
        %v4222 = vand.u32 %v4221, 4294901760
        %4223 = vmatpush1.msra.mxu0 %v4222
        %v4224 = vand.u32 %v283, 4294901760
        %v4225 = vsub.f32 %v283, %v4224
        %v4226 = vand.u32 %v4225, 4294901760
        %4227 = vmatprep.subr.mxu0 %v4226
        %v4228 = vand.u32 %v282, 4294901760
        %v4229 = vsub.f32 %v282, %v4228
        %v4230 = vand.u32 %v4229, 4294901760
        %4231 = vmatpush1.msra.mxu0 %v4230
        %v4232 = vand.u32 %v287, 4294901760
        %v4233 = vsub.f32 %v287, %v4232
        %v4234 = vand.u32 %v4233, 4294901760
        %4235 = vmatprep.subr.mxu0 %v4234
        %v4236 = vand.u32 %v286, 4294901760
        %v4237 = vsub.f32 %v286, %v4236
        %v4238 = vand.u32 %v4237, 4294901760
        %4239 = vmatpush1.msra.mxu0 %v4238
        %v4240 = vand.u32 %v291, 4294901760
        %v4241 = vsub.f32 %v291, %v4240
        %v4242 = vand.u32 %v4241, 4294901760
        %4243 = vmatprep.subr.mxu0 %v4242
        %v4244 = vand.u32 %v290, 4294901760
        %v4245 = vsub.f32 %v290, %v4244
        %v4246 = vand.u32 %v4245, 4294901760
        %4247 = vmatpush1.msra.mxu0 %v4246
        %v4248 = vand.u32 %v295, 4294901760
        %v4249 = vsub.f32 %v295, %v4248
        %v4250 = vand.u32 %v4249, 4294901760
        %4251 = vmatprep.subr.mxu0 %v4250
        %v4252 = vand.u32 %v294, 4294901760
        %v4253 = vsub.f32 %v294, %v4252
        %v4254 = vand.u32 %v4253, 4294901760
        %4255 = vmatpush1.msra.mxu0 %v4254
        %v4256 = vand.u32 %v299, 4294901760
        %v4257 = vsub.f32 %v299, %v4256
        %v4258 = vand.u32 %v4257, 4294901760
        %4259 = vmatprep.subr.mxu0 %v4258
        %v4260 = vand.u32 %v298, 4294901760
        %v4261 = vsub.f32 %v298, %v4260
        %v4262 = vand.u32 %v4261, 4294901760
        %4263 = vmatpush1.msra.mxu0 %v4262
        %v4264 = vand.u32 %v303, 4294901760
        %v4265 = vsub.f32 %v303, %v4264
        %v4266 = vand.u32 %v4265, 4294901760
        %4267 = vmatprep.subr.mxu0 %v4266
        %v4268 = vand.u32 %v302, 4294901760
        %v4269 = vsub.f32 %v302, %v4268
        %v4270 = vand.u32 %v4269, 4294901760
        %4271 = vmatpush1.msra.mxu0 %v4270
        %v4272 = vand.u32 %v307, 4294901760
        %v4273 = vsub.f32 %v307, %v4272
        %v4274 = vand.u32 %v4273, 4294901760
        %4275 = vmatprep.subr.mxu0 %v4274
        %v4276 = vand.u32 %v306, 4294901760
        %v4277 = vsub.f32 %v306, %v4276
        %v4278 = vand.u32 %v4277, 4294901760
        %4279 = vmatpush1.msra.mxu0 %v4278
        %v4280 = vand.u32 %v311, 4294901760
        %v4281 = vsub.f32 %v311, %v4280
        %v4282 = vand.u32 %v4281, 4294901760
        %4283 = vmatprep.subr.mxu0 %v4282
        %v4284 = vand.u32 %v310, 4294901760
        %v4285 = vsub.f32 %v310, %v4284
        %v4286 = vand.u32 %v4285, 4294901760
        %4287 = vmatpush1.msra.mxu0 %v4286
        %v4288 = vand.u32 %v315, 4294901760
        %v4289 = vsub.f32 %v315, %v4288
        %v4290 = vand.u32 %v4289, 4294901760
        %4291 = vmatprep.subr.mxu0 %v4290
        %v4292 = vand.u32 %v314, 4294901760
        %v4293 = vsub.f32 %v314, %v4292
        %v4294 = vand.u32 %v4293, 4294901760
        %4295 = vmatpush1.msra.mxu0 %v4294
        %v4296 = vand.u32 %v319, 4294901760
        %v4297 = vsub.f32 %v319, %v4296
        %v4298 = vand.u32 %v4297, 4294901760
        %4299 = vmatprep.subr.mxu0 %v4298
        %v4300 = vand.u32 %v318, 4294901760
        %v4301 = vsub.f32 %v318, %v4300
        %v4302 = vand.u32 %v4301, 4294901760
        %4303 = vmatpush1.msra.mxu0 %v4302
        %v4304 = vand.u32 %v323, 4294901760
        %v4305 = vsub.f32 %v323, %v4304
        %v4306 = vand.u32 %v4305, 4294901760
        %4307 = vmatprep.subr.mxu0 %v4306
        %v4308 = vand.u32 %v322, 4294901760
        %v4309 = vsub.f32 %v322, %v4308
        %v4310 = vand.u32 %v4309, 4294901760
        %4311 = vmatpush1.msra.mxu0 %v4310
        %v4312 = vand.u32 %v327, 4294901760
        %v4313 = vsub.f32 %v327, %v4312
        %v4314 = vand.u32 %v4313, 4294901760
        %4315 = vmatprep.subr.mxu0 %v4314
        %v4316 = vand.u32 %v326, 4294901760
        %v4317 = vsub.f32 %v326, %v4316
        %v4318 = vand.u32 %v4317, 4294901760
        %4319 = vmatpush1.msra.mxu0 %v4318
        %v4320 = vand.u32 %v331, 4294901760
        %v4321 = vsub.f32 %v331, %v4320
        %v4322 = vand.u32 %v4321, 4294901760
        %4323 = vmatprep.subr.mxu0 %v4322
        %v4324 = vand.u32 %v330, 4294901760
        %v4325 = vsub.f32 %v330, %v4324
        %v4326 = vand.u32 %v4325, 4294901760
        %4327 = vmatpush1.msra.mxu0 %v4326
        %v4328 = vand.u32 %v335, 4294901760
        %v4329 = vsub.f32 %v335, %v4328
        %v4330 = vand.u32 %v4329, 4294901760
        %4331 = vmatprep.subr.mxu0 %v4330
        %v4332 = vand.u32 %v334, 4294901760
        %v4333 = vsub.f32 %v334, %v4332
        %v4334 = vand.u32 %v4333, 4294901760
        %4335 = vmatpush1.msra.mxu0 %v4334
        %v4336 = vand.u32 %v339, 4294901760
        %v4337 = vsub.f32 %v339, %v4336
        %v4338 = vand.u32 %v4337, 4294901760
        %4339 = vmatprep.subr.mxu0 %v4338
        %v4340 = vand.u32 %v338, 4294901760
        %v4341 = vsub.f32 %v338, %v4340
        %v4342 = vand.u32 %v4341, 4294901760
        %4343 = vmatpush1.msra.mxu0 %v4342
        %v4344 = vand.u32 %v205, 4294901760
        %4345 = vmatprep.mubr.f32.mxu0 %v4344
        %v4346 = vand.u32 %v204, 4294901760
        %4347 = vmatmul.mubr.f32.gmra.mrb[0].mxu0 %v4346
        %v4348 = vpop.f32.mrb[0].mxu0
        %v4349 = vadd.f32 %v4072, %v4348
        %v4350 = vpop.f32.mrb[0].mxu0
        %v4351 = vadd.f32 %v4074, %v4350
        %v4352 = vand.u32 %v209, 4294901760
        %4353 = vmatprep.mubr.f32.mxu0 %v4352
        %v4354 = vand.u32 %v208, 4294901760
        %4355 = vmatmul.mubr.f32.gmra.mrb[0].mxu0 %v4354
        %v4356 = vpop.f32.mrb[0].mxu0
        %v4357 = vadd.f32 %v4084, %v4356
        %v4358 = vpop.f32.mrb[0].mxu0
        %v4359 = vadd.f32 %v4086, %v4358
        %4360 = vdwg.mxu0
        %v4361 = vand.u32 %v215, 4294901760
        %4362 = vmatprep.subr.mxu0 %v4361
        %v4363 = vand.u32 %v214, 4294901760
        %4364 = vmatpush1.msra.mxu0 %v4363
        %v4365 = vand.u32 %v219, 4294901760
        %4366 = vmatprep.subr.mxu0 %v4365
        %v4367 = vand.u32 %v218, 4294901760
        %4368 = vmatpush1.msra.mxu0 %v4367
        %v4369 = vand.u32 %v223, 4294901760
        %4370 = vmatprep.subr.mxu0 %v4369
        %v4371 = vand.u32 %v222, 4294901760
        %4372 = vmatpush1.msra.mxu0 %v4371
        %v4373 = vand.u32 %v227, 4294901760
        %4374 = vmatprep.subr.mxu0 %v4373
        %v4375 = vand.u32 %v226, 4294901760
        %4376 = vmatpush1.msra.mxu0 %v4375
        %v4377 = vand.u32 %v231, 4294901760
        %4378 = vmatprep.subr.mxu0 %v4377
        %v4379 = vand.u32 %v230, 4294901760
        %4380 = vmatpush1.msra.mxu0 %v4379
        %v4381 = vand.u32 %v235, 4294901760
        %4382 = vmatprep.subr.mxu0 %v4381
        %v4383 = vand.u32 %v234, 4294901760
        %4384 = vmatpush1.msra.mxu0 %v4383
        %v4385 = vand.u32 %v239, 4294901760
        %4386 = vmatprep.subr.mxu0 %v4385
        %v4387 = vand.u32 %v238, 4294901760
        %4388 = vmatpush1.msra.mxu0 %v4387
        %v4389 = vand.u32 %v243, 4294901760
        %4390 = vmatprep.subr.mxu0 %v4389
        %v4391 = vand.u32 %v242, 4294901760
        %4392 = vmatpush1.msra.mxu0 %v4391
        %v4393 = vand.u32 %v247, 4294901760
        %4394 = vmatprep.subr.mxu0 %v4393
        %v4395 = vand.u32 %v246, 4294901760
        %4396 = vmatpush1.msra.mxu0 %v4395
        %v4397 = vand.u32 %v251, 4294901760
        %4398 = vmatprep.subr.mxu0 %v4397
        %v4399 = vand.u32 %v250, 4294901760
        %4400 = vmatpush1.msra.mxu0 %v4399
        %v4401 = vand.u32 %v255, 4294901760
        %4402 = vmatprep.subr.mxu0 %v4401
        %v4403 = vand.u32 %v254, 4294901760
        %4404 = vmatpush1.msra.mxu0 %v4403
        %v4405 = vand.u32 %v259, 4294901760
        %4406 = vmatprep.subr.mxu0 %v4405
        %v4407 = vand.u32 %v258, 4294901760
        %4408 = vmatpush1.msra.mxu0 %v4407
        %v4409 = vand.u32 %v263, 4294901760
        %4410 = vmatprep.subr.mxu0 %v4409
        %v4411 = vand.u32 %v262, 4294901760
        %4412 = vmatpush1.msra.mxu0 %v4411
        %v4413 = vand.u32 %v267, 4294901760
        %4414 = vmatprep.subr.mxu0 %v4413
        %v4415 = vand.u32 %v266, 4294901760
        %4416 = vmatpush1.msra.mxu0 %v4415
        %v4417 = vand.u32 %v271, 4294901760
        %4418 = vmatprep.subr.mxu0 %v4417
        %v4419 = vand.u32 %v270, 4294901760
        %4420 = vmatpush1.msra.mxu0 %v4419
        %v4421 = vand.u32 %v275, 4294901760
        %4422 = vmatprep.subr.mxu0 %v4421
        %v4423 = vand.u32 %v274, 4294901760
        %4424 = vmatpush1.msra.mxu0 %v4423
        %v4425 = vand.u32 %v279, 4294901760
        %4426 = vmatprep.subr.mxu0 %v4425
        %v4427 = vand.u32 %v278, 4294901760
        %4428 = vmatpush1.msra.mxu0 %v4427
        %v4429 = vand.u32 %v283, 4294901760
        %4430 = vmatprep.subr.mxu0 %v4429
        %v4431 = vand.u32 %v282, 4294901760
        %4432 = vmatpush1.msra.mxu0 %v4431
        %v4433 = vand.u32 %v287, 4294901760
        %4434 = vmatprep.subr.mxu0 %v4433
        %v4435 = vand.u32 %v286, 4294901760
        %4436 = vmatpush1.msra.mxu0 %v4435
        %v4437 = vand.u32 %v291, 4294901760
        %4438 = vmatprep.subr.mxu0 %v4437
        %v4439 = vand.u32 %v290, 4294901760
        %4440 = vmatpush1.msra.mxu0 %v4439
        %v4441 = vand.u32 %v295, 4294901760
        %4442 = vmatprep.subr.mxu0 %v4441
        %v4443 = vand.u32 %v294, 4294901760
        %4444 = vmatpush1.msra.mxu0 %v4443
        %v4445 = vand.u32 %v299, 4294901760
        %4446 = vmatprep.subr.mxu0 %v4445
        %v4447 = vand.u32 %v298, 4294901760
        %4448 = vmatpush1.msra.mxu0 %v4447
        %v4449 = vand.u32 %v303, 4294901760
        %4450 = vmatprep.subr.mxu0 %v4449
        %v4451 = vand.u32 %v302, 4294901760
        %4452 = vmatpush1.msra.mxu0 %v4451
        %v4453 = vand.u32 %v307, 4294901760
        %4454 = vmatprep.subr.mxu0 %v4453
        %v4455 = vand.u32 %v306, 4294901760
        %4456 = vmatpush1.msra.mxu0 %v4455
        %v4457 = vand.u32 %v311, 4294901760
        %4458 = vmatprep.subr.mxu0 %v4457
        %v4459 = vand.u32 %v310, 4294901760
        %4460 = vmatpush1.msra.mxu0 %v4459
        %v4461 = vand.u32 %v315, 4294901760
        %4462 = vmatprep.subr.mxu0 %v4461
        %v4463 = vand.u32 %v314, 4294901760
        %4464 = vmatpush1.msra.mxu0 %v4463
        %v4465 = vand.u32 %v319, 4294901760
        %4466 = vmatprep.subr.mxu0 %v4465
        %v4467 = vand.u32 %v318, 4294901760
        %4468 = vmatpush1.msra.mxu0 %v4467
        %v4469 = vand.u32 %v323, 4294901760
        %4470 = vmatprep.subr.mxu0 %v4469
        %v4471 = vand.u32 %v322, 4294901760
        %4472 = vmatpush1.msra.mxu0 %v4471
        %v4473 = vand.u32 %v327, 4294901760
        %4474 = vmatprep.subr.mxu0 %v4473
        %v4475 = vand.u32 %v326, 4294901760
        %4476 = vmatpush1.msra.mxu0 %v4475
        %v4477 = vand.u32 %v331, 4294901760
        %4478 = vmatprep.subr.mxu0 %v4477
        %v4479 = vand.u32 %v330, 4294901760
        %4480 = vmatpush1.msra.mxu0 %v4479
        %v4481 = vand.u32 %v335, 4294901760
        %4482 = vmatprep.subr.mxu0 %v4481
        %v4483 = vand.u32 %v334, 4294901760
        %4484 = vmatpush1.msra.mxu0 %v4483
        %v4485 = vand.u32 %v339, 4294901760
        %4486 = vmatprep.subr.mxu0 %v4485
        %v4487 = vand.u32 %v338, 4294901760
        %4488 = vmatpush1.msra.mxu0 %v4487
        %v4489 = vand.u32 %v205, 4294901760
        %4490 = vmatprep.mubr.f32.mxu0 %v4489
        %v4491 = vand.u32 %v204, 4294901760
        %4492 = vmatmul.mubr.f32.gmra.mrb[0].mxu0 %v4491
        %v4493 = vpop.f32.mrb[0].mxu0
        %v4494 = vadd.f32 %v4349, %v4493
        %v4495 = vpop.f32.mrb[0].mxu0
        %v4496 = vadd.f32 %v4351, %v4495
        %v4497 = vand.u32 %v209, 4294901760
        %4498 = vmatprep.mubr.f32.mxu0 %v4497
        %v4499 = vand.u32 %v208, 4294901760
        %4500 = vmatmul.mubr.f32.gmra.mrb[0].mxu0 %v4499
        %v4501 = vpop.f32.mrb[0].mxu0
        %v4502 = vadd.f32 %v4357, %v4501
        %v4503 = vpop.f32.mrb[0].mxu0
        %v4504 = vadd.f32 %v4359, %v4503
        %4505 = vdwg.mxu0
        %v4506 = vand.u32 %v343, 4294901760
        %4507 = vmatprep.subr.mxu0 %v4506
        %v4508 = vand.u32 %v342, 4294901760
        %4509 = vmatpush1.msra.mxu0 %v4508
        %v4510 = vand.u32 %v347, 4294901760
        %4511 = vmatprep.subr.mxu0 %v4510
        %v4512 = vand.u32 %v346, 4294901760
        %4513 = vmatpush1.msra.mxu0 %v4512
        %v4514 = vand.u32 %v351, 4294901760
        %4515 = vmatprep.subr.mxu0 %v4514
        %v4516 = vand.u32 %v350, 4294901760
        %4517 = vmatpush1.msra.mxu0 %v4516
        %v4518 = vand.u32 %v355, 4294901760
        %4519 = vmatprep.subr.mxu0 %v4518
        %v4520 = vand.u32 %v354, 4294901760
        %4521 = vmatpush1.msra.mxu0 %v4520
        %v4522 = vand.u32 %v359, 4294901760
        %4523 = vmatprep.subr.mxu0 %v4522
        %v4524 = vand.u32 %v358, 4294901760
        %4525 = vmatpush1.msra.mxu0 %v4524
        %v4526 = vand.u32 %v363, 4294901760
        %4527 = vmatprep.subr.mxu0 %v4526
        %v4528 = vand.u32 %v362, 4294901760
        %4529 = vmatpush1.msra.mxu0 %v4528
        %v4530 = vand.u32 %v367, 4294901760
        %4531 = vmatprep.subr.mxu0 %v4530
        %v4532 = vand.u32 %v366, 4294901760
        %4533 = vmatpush1.msra.mxu0 %v4532
        %v4534 = vand.u32 %v371, 4294901760
        %4535 = vmatprep.subr.mxu0 %v4534
        %v4536 = vand.u32 %v370, 4294901760
        %4537 = vmatpush1.msra.mxu0 %v4536
        %v4538 = vand.u32 %v375, 4294901760
        %4539 = vmatprep.subr.mxu0 %v4538
        %v4540 = vand.u32 %v374, 4294901760
        %4541 = vmatpush1.msra.mxu0 %v4540
        %v4542 = vand.u32 %v379, 4294901760
        %4543 = vmatprep.subr.mxu0 %v4542
        %v4544 = vand.u32 %v378, 4294901760
        %4545 = vmatpush1.msra.mxu0 %v4544
        %v4546 = vand.u32 %v383, 4294901760
        %4547 = vmatprep.subr.mxu0 %v4546
        %v4548 = vand.u32 %v382, 4294901760
        %4549 = vmatpush1.msra.mxu0 %v4548
        %v4550 = vand.u32 %v387, 4294901760
        %4551 = vmatprep.subr.mxu0 %v4550
        %v4552 = vand.u32 %v386, 4294901760
        %4553 = vmatpush1.msra.mxu0 %v4552
        %v4554 = vand.u32 %v391, 4294901760
        %4555 = vmatprep.subr.mxu0 %v4554
        %v4556 = vand.u32 %v390, 4294901760
        %4557 = vmatpush1.msra.mxu0 %v4556
        %v4558 = vand.u32 %v395, 4294901760
        %4559 = vmatprep.subr.mxu0 %v4558
        %v4560 = vand.u32 %v394, 4294901760
        %4561 = vmatpush1.msra.mxu0 %v4560
        %v4562 = vand.u32 %v399, 4294901760
        %4563 = vmatprep.subr.mxu0 %v4562
        %v4564 = vand.u32 %v398, 4294901760
        %4565 = vmatpush1.msra.mxu0 %v4564
        %v4566 = vand.u32 %v403, 4294901760
        %4567 = vmatprep.subr.mxu0 %v4566
        %v4568 = vand.u32 %v402, 4294901760
        %4569 = vmatpush1.msra.mxu0 %v4568
        %v4570 = vand.u32 %v407, 4294901760
        %4571 = vmatprep.subr.mxu0 %v4570
        %v4572 = vand.u32 %v406, 4294901760
        %4573 = vmatpush1.msra.mxu0 %v4572
        %v4574 = vand.u32 %v411, 4294901760
        %4575 = vmatprep.subr.mxu0 %v4574
        %v4576 = vand.u32 %v410, 4294901760
        %4577 = vmatpush1.msra.mxu0 %v4576
        %v4578 = vand.u32 %v415, 4294901760
        %4579 = vmatprep.subr.mxu0 %v4578
        %v4580 = vand.u32 %v414, 4294901760
        %4581 = vmatpush1.msra.mxu0 %v4580
        %v4582 = vand.u32 %v419, 4294901760
        %4583 = vmatprep.subr.mxu0 %v4582
        %v4584 = vand.u32 %v418, 4294901760
        %4585 = vmatpush1.msra.mxu0 %v4584
        %v4586 = vand.u32 %v423, 4294901760
        %4587 = vmatprep.subr.mxu0 %v4586
        %v4588 = vand.u32 %v422, 4294901760
        %4589 = vmatpush1.msra.mxu0 %v4588
        %v4590 = vand.u32 %v427, 4294901760
        %4591 = vmatprep.subr.mxu0 %v4590
        %v4592 = vand.u32 %v426, 4294901760
        %4593 = vmatpush1.msra.mxu0 %v4592
        %v4594 = vand.u32 %v431, 4294901760
        %4595 = vmatprep.subr.mxu0 %v4594
        %v4596 = vand.u32 %v430, 4294901760
        %4597 = vmatpush1.msra.mxu0 %v4596
        %v4598 = vand.u32 %v435, 4294901760
        %4599 = vmatprep.subr.mxu0 %v4598
        %v4600 = vand.u32 %v434, 4294901760
        %4601 = vmatpush1.msra.mxu0 %v4600
        %v4602 = vand.u32 %v439, 4294901760
        %4603 = vmatprep.subr.mxu0 %v4602
        %v4604 = vand.u32 %v438, 4294901760
        %4605 = vmatpush1.msra.mxu0 %v4604
        %v4606 = vand.u32 %v443, 4294901760
        %4607 = vmatprep.subr.mxu0 %v4606
        %v4608 = vand.u32 %v442, 4294901760
        %4609 = vmatpush1.msra.mxu0 %v4608
        %v4610 = vand.u32 %v447, 4294901760
        %4611 = vmatprep.subr.mxu0 %v4610
        %v4612 = vand.u32 %v446, 4294901760
        %4613 = vmatpush1.msra.mxu0 %v4612
        %v4614 = vand.u32 %v451, 4294901760
        %4615 = vmatprep.subr.mxu0 %v4614
        %v4616 = vand.u32 %v450, 4294901760
        %4617 = vmatpush1.msra.mxu0 %v4616
        %v4618 = vand.u32 %v455, 4294901760
        %4619 = vmatprep.subr.mxu0 %v4618
        %v4620 = vand.u32 %v454, 4294901760
        %4621 = vmatpush1.msra.mxu0 %v4620
        %v4622 = vand.u32 %v459, 4294901760
        %4623 = vmatprep.subr.mxu0 %v4622
        %v4624 = vand.u32 %v458, 4294901760
        %4625 = vmatpush1.msra.mxu0 %v4624
        %v4626 = vand.u32 %v463, 4294901760
        %4627 = vmatprep.subr.mxu0 %v4626
        %v4628 = vand.u32 %v462, 4294901760
        %4629 = vmatpush1.msra.mxu0 %v4628
        %v4630 = vand.u32 %v467, 4294901760
        %4631 = vmatprep.subr.mxu0 %v4630
        %v4632 = vand.u32 %v466, 4294901760
        %4633 = vmatpush1.msra.mxu0 %v4632
        %v4634 = vand.u32 %v207, 4294901760
        %v4635 = vsub.f32 %v207, %v4634
        %v4636 = vand.u32 %v4635, 4294901760
        %v4637 = vsub.f32 %v4635, %v4636
        %v4638 = vand.u32 %v4637, 4294901760
        %4639 = vmatprep.mubr.f32.mxu0 %v4638
        %v4640 = vand.u32 %v206, 4294901760
        %v4641 = vsub.f32 %v206, %v4640
        %v4642 = vand.u32 %v4641, 4294901760
        %v4643 = vsub.f32 %v4641, %v4642
        %v4644 = vand.u32 %v4643, 4294901760
        %4645 = vmatmul.mubr.f32.gmra.mrb[0].mxu0 %v4644
        %v4646 = vpop.f32.mrb[0].mxu0
        %v4647 = vadd.f32 %v4494, %v4646
        %v4648 = vpop.f32.mrb[0].mxu0
        %v4649 = vadd.f32 %v4496, %v4648
        %v4650 = vand.u32 %v211, 4294901760
        %v4651 = vsub.f32 %v211, %v4650
        %v4652 = vand.u32 %v4651, 4294901760
        %v4653 = vsub.f32 %v4651, %v4652
        %v4654 = vand.u32 %v4653, 4294901760
        %4655 = vmatprep.mubr.f32.mxu0 %v4654
        %v4656 = vand.u32 %v210, 4294901760
        %v4657 = vsub.f32 %v210, %v4656
        %v4658 = vand.u32 %v4657, 4294901760
        %v4659 = vsub.f32 %v4657, %v4658
        %v4660 = vand.u32 %v4659, 4294901760
        %4661 = vmatmul.mubr.f32.gmra.mrb[0].mxu0 %v4660
        %v4662 = vpop.f32.mrb[0].mxu0
        %v4663 = vadd.f32 %v4502, %v4662
        %v4664 = vpop.f32.mrb[0].mxu0
        %v4665 = vadd.f32 %v4504, %v4664
        %4666 = vdwg.mxu0
        %v4667 = vand.u32 %v343, 4294901760
        %v4668 = vsub.f32 %v343, %v4667
        %v4669 = vand.u32 %v4668, 4294901760
        %v4670 = vsub.f32 %v4668, %v4669
        %v4671 = vand.u32 %v4670, 4294901760
        %4672 = vmatprep.subr.mxu0 %v4671
        %v4673 = vand.u32 %v342, 4294901760
        %v4674 = vsub.f32 %v342, %v4673
        %v4675 = vand.u32 %v4674, 4294901760
        %v4676 = vsub.f32 %v4674, %v4675
        %v4677 = vand.u32 %v4676, 4294901760
        %4678 = vmatpush1.msra.mxu0 %v4677
        %v4679 = vand.u32 %v347, 4294901760
        %v4680 = vsub.f32 %v347, %v4679
        %v4681 = vand.u32 %v4680, 4294901760
        %v4682 = vsub.f32 %v4680, %v4681
        %v4683 = vand.u32 %v4682, 4294901760
        %4684 = vmatprep.subr.mxu0 %v4683
        %v4685 = vand.u32 %v346, 4294901760
        %v4686 = vsub.f32 %v346, %v4685
        %v4687 = vand.u32 %v4686, 4294901760
        %v4688 = vsub.f32 %v4686, %v4687
        %v4689 = vand.u32 %v4688, 4294901760
        %4690 = vmatpush1.msra.mxu0 %v4689
        %v4691 = vand.u32 %v351, 4294901760
        %v4692 = vsub.f32 %v351, %v4691
        %v4693 = vand.u32 %v4692, 4294901760
        %v4694 = vsub.f32 %v4692, %v4693
        %v4695 = vand.u32 %v4694, 4294901760
        %4696 = vmatprep.subr.mxu0 %v4695
        %v4697 = vand.u32 %v350, 4294901760
        %v4698 = vsub.f32 %v350, %v4697
        %v4699 = vand.u32 %v4698, 4294901760
        %v4700 = vsub.f32 %v4698, %v4699
        %v4701 = vand.u32 %v4700, 4294901760
        %4702 = vmatpush1.msra.mxu0 %v4701
        %v4703 = vand.u32 %v355, 4294901760
        %v4704 = vsub.f32 %v355, %v4703
        %v4705 = vand.u32 %v4704, 4294901760
        %v4706 = vsub.f32 %v4704, %v4705
        %v4707 = vand.u32 %v4706, 4294901760
        %4708 = vmatprep.subr.mxu0 %v4707
        %v4709 = vand.u32 %v354, 4294901760
        %v4710 = vsub.f32 %v354, %v4709
        %v4711 = vand.u32 %v4710, 4294901760
        %v4712 = vsub.f32 %v4710, %v4711
        %v4713 = vand.u32 %v4712, 4294901760
        %4714 = vmatpush1.msra.mxu0 %v4713
        %v4715 = vand.u32 %v359, 4294901760
        %v4716 = vsub.f32 %v359, %v4715
        %v4717 = vand.u32 %v4716, 4294901760
        %v4718 = vsub.f32 %v4716, %v4717
        %v4719 = vand.u32 %v4718, 4294901760
        %4720 = vmatprep.subr.mxu0 %v4719
        %v4721 = vand.u32 %v358, 4294901760
        %v4722 = vsub.f32 %v358, %v4721
        %v4723 = vand.u32 %v4722, 4294901760
        %v4724 = vsub.f32 %v4722, %v4723
        %v4725 = vand.u32 %v4724, 4294901760
        %4726 = vmatpush1.msra.mxu0 %v4725
        %v4727 = vand.u32 %v363, 4294901760
        %v4728 = vsub.f32 %v363, %v4727
        %v4729 = vand.u32 %v4728, 4294901760
        %v4730 = vsub.f32 %v4728, %v4729
        %v4731 = vand.u32 %v4730, 4294901760
        %4732 = vmatprep.subr.mxu0 %v4731
        %v4733 = vand.u32 %v362, 4294901760
        %v4734 = vsub.f32 %v362, %v4733
        %v4735 = vand.u32 %v4734, 4294901760
        %v4736 = vsub.f32 %v4734, %v4735
        %v4737 = vand.u32 %v4736, 4294901760
        %4738 = vmatpush1.msra.mxu0 %v4737
        %v4739 = vand.u32 %v367, 4294901760
        %v4740 = vsub.f32 %v367, %v4739
        %v4741 = vand.u32 %v4740, 4294901760
        %v4742 = vsub.f32 %v4740, %v4741
        %v4743 = vand.u32 %v4742, 4294901760
        %4744 = vmatprep.subr.mxu0 %v4743
        %v4745 = vand.u32 %v366, 4294901760
        %v4746 = vsub.f32 %v366, %v4745
        %v4747 = vand.u32 %v4746, 4294901760
        %v4748 = vsub.f32 %v4746, %v4747
        %v4749 = vand.u32 %v4748, 4294901760
        %4750 = vmatpush1.msra.mxu0 %v4749
        %v4751 = vand.u32 %v371, 4294901760
        %v4752 = vsub.f32 %v371, %v4751
        %v4753 = vand.u32 %v4752, 4294901760
        %v4754 = vsub.f32 %v4752, %v4753
        %v4755 = vand.u32 %v4754, 4294901760
        %4756 = vmatprep.subr.mxu0 %v4755
        %v4757 = vand.u32 %v370, 4294901760
        %v4758 = vsub.f32 %v370, %v4757
        %v4759 = vand.u32 %v4758, 4294901760
        %v4760 = vsub.f32 %v4758, %v4759
        %v4761 = vand.u32 %v4760, 4294901760
        %4762 = vmatpush1.msra.mxu0 %v4761
        %v4763 = vand.u32 %v375, 4294901760
        %v4764 = vsub.f32 %v375, %v4763
        %v4765 = vand.u32 %v4764, 4294901760
        %v4766 = vsub.f32 %v4764, %v4765
        %v4767 = vand.u32 %v4766, 4294901760
        %4768 = vmatprep.subr.mxu0 %v4767
        %v4769 = vand.u32 %v374, 4294901760
        %v4770 = vsub.f32 %v374, %v4769
        %v4771 = vand.u32 %v4770, 4294901760
        %v4772 = vsub.f32 %v4770, %v4771
        %v4773 = vand.u32 %v4772, 4294901760
        %4774 = vmatpush1.msra.mxu0 %v4773
        %v4775 = vand.u32 %v379, 4294901760
        %v4776 = vsub.f32 %v379, %v4775
        %v4777 = vand.u32 %v4776, 4294901760
        %v4778 = vsub.f32 %v4776, %v4777
        %v4779 = vand.u32 %v4778, 4294901760
        %4780 = vmatprep.subr.mxu0 %v4779
        %v4781 = vand.u32 %v378, 4294901760
        %v4782 = vsub.f32 %v378, %v4781
        %v4783 = vand.u32 %v4782, 4294901760
        %v4784 = vsub.f32 %v4782, %v4783
        %v4785 = vand.u32 %v4784, 4294901760
        %4786 = vmatpush1.msra.mxu0 %v4785
        %v4787 = vand.u32 %v383, 4294901760
        %v4788 = vsub.f32 %v383, %v4787
        %v4789 = vand.u32 %v4788, 4294901760
        %v4790 = vsub.f32 %v4788, %v4789
        %v4791 = vand.u32 %v4790, 4294901760
        %4792 = vmatprep.subr.mxu0 %v4791
        %v4793 = vand.u32 %v382, 4294901760
        %v4794 = vsub.f32 %v382, %v4793
        %v4795 = vand.u32 %v4794, 4294901760
        %v4796 = vsub.f32 %v4794, %v4795
        %v4797 = vand.u32 %v4796, 4294901760
        %4798 = vmatpush1.msra.mxu0 %v4797
        %v4799 = vand.u32 %v387, 4294901760
        %v4800 = vsub.f32 %v387, %v4799
        %v4801 = vand.u32 %v4800, 4294901760
        %v4802 = vsub.f32 %v4800, %v4801
        %v4803 = vand.u32 %v4802, 4294901760
        %4804 = vmatprep.subr.mxu0 %v4803
        %v4805 = vand.u32 %v386, 4294901760
        %v4806 = vsub.f32 %v386, %v4805
        %v4807 = vand.u32 %v4806, 4294901760
        %v4808 = vsub.f32 %v4806, %v4807
        %v4809 = vand.u32 %v4808, 4294901760
        %4810 = vmatpush1.msra.mxu0 %v4809
        %v4811 = vand.u32 %v391, 4294901760
        %v4812 = vsub.f32 %v391, %v4811
        %v4813 = vand.u32 %v4812, 4294901760
        %v4814 = vsub.f32 %v4812, %v4813
        %v4815 = vand.u32 %v4814, 4294901760
        %4816 = vmatprep.subr.mxu0 %v4815
        %v4817 = vand.u32 %v390, 4294901760
        %v4818 = vsub.f32 %v390, %v4817
        %v4819 = vand.u32 %v4818, 4294901760
        %v4820 = vsub.f32 %v4818, %v4819
        %v4821 = vand.u32 %v4820, 4294901760
        %4822 = vmatpush1.msra.mxu0 %v4821
        %v4823 = vand.u32 %v395, 4294901760
        %v4824 = vsub.f32 %v395, %v4823
        %v4825 = vand.u32 %v4824, 4294901760
        %v4826 = vsub.f32 %v4824, %v4825
        %v4827 = vand.u32 %v4826, 4294901760
        %4828 = vmatprep.subr.mxu0 %v4827
        %v4829 = vand.u32 %v394, 4294901760
        %v4830 = vsub.f32 %v394, %v4829
        %v4831 = vand.u32 %v4830, 4294901760
        %v4832 = vsub.f32 %v4830, %v4831
        %v4833 = vand.u32 %v4832, 4294901760
        %4834 = vmatpush1.msra.mxu0 %v4833
        %v4835 = vand.u32 %v399, 4294901760
        %v4836 = vsub.f32 %v399, %v4835
        %v4837 = vand.u32 %v4836, 4294901760
        %v4838 = vsub.f32 %v4836, %v4837
        %v4839 = vand.u32 %v4838, 4294901760
        %4840 = vmatprep.subr.mxu0 %v4839
        %v4841 = vand.u32 %v398, 4294901760
        %v4842 = vsub.f32 %v398, %v4841
        %v4843 = vand.u32 %v4842, 4294901760
        %v4844 = vsub.f32 %v4842, %v4843
        %v4845 = vand.u32 %v4844, 4294901760
        %4846 = vmatpush1.msra.mxu0 %v4845
        %v4847 = vand.u32 %v403, 4294901760
        %v4848 = vsub.f32 %v403, %v4847
        %v4849 = vand.u32 %v4848, 4294901760
        %v4850 = vsub.f32 %v4848, %v4849
        %v4851 = vand.u32 %v4850, 4294901760
        %4852 = vmatprep.subr.mxu0 %v4851
        %v4853 = vand.u32 %v402, 4294901760
        %v4854 = vsub.f32 %v402, %v4853
        %v4855 = vand.u32 %v4854, 4294901760
        %v4856 = vsub.f32 %v4854, %v4855
        %v4857 = vand.u32 %v4856, 4294901760
        %4858 = vmatpush1.msra.mxu0 %v4857
        %v4859 = vand.u32 %v407, 4294901760
        %v4860 = vsub.f32 %v407, %v4859
        %v4861 = vand.u32 %v4860, 4294901760
        %v4862 = vsub.f32 %v4860, %v4861
        %v4863 = vand.u32 %v4862, 4294901760
        %4864 = vmatprep.subr.mxu0 %v4863
        %v4865 = vand.u32 %v406, 4294901760
        %v4866 = vsub.f32 %v406, %v4865
        %v4867 = vand.u32 %v4866, 4294901760
        %v4868 = vsub.f32 %v4866, %v4867
        %v4869 = vand.u32 %v4868, 4294901760
        %4870 = vmatpush1.msra.mxu0 %v4869
        %v4871 = vand.u32 %v411, 4294901760
        %v4872 = vsub.f32 %v411, %v4871
        %v4873 = vand.u32 %v4872, 4294901760
        %v4874 = vsub.f32 %v4872, %v4873
        %v4875 = vand.u32 %v4874, 4294901760
        %4876 = vmatprep.subr.mxu0 %v4875
        %v4877 = vand.u32 %v410, 4294901760
        %v4878 = vsub.f32 %v410, %v4877
        %v4879 = vand.u32 %v4878, 4294901760
        %v4880 = vsub.f32 %v4878, %v4879
        %v4881 = vand.u32 %v4880, 4294901760
        %4882 = vmatpush1.msra.mxu0 %v4881
        %v4883 = vand.u32 %v415, 4294901760
        %v4884 = vsub.f32 %v415, %v4883
        %v4885 = vand.u32 %v4884, 4294901760
        %v4886 = vsub.f32 %v4884, %v4885
        %v4887 = vand.u32 %v4886, 4294901760
        %4888 = vmatprep.subr.mxu0 %v4887
        %v4889 = vand.u32 %v414, 4294901760
        %v4890 = vsub.f32 %v414, %v4889
        %v4891 = vand.u32 %v4890, 4294901760
        %v4892 = vsub.f32 %v4890, %v4891
        %v4893 = vand.u32 %v4892, 4294901760
        %4894 = vmatpush1.msra.mxu0 %v4893
        %v4895 = vand.u32 %v419, 4294901760
        %v4896 = vsub.f32 %v419, %v4895
        %v4897 = vand.u32 %v4896, 4294901760
        %v4898 = vsub.f32 %v4896, %v4897
        %v4899 = vand.u32 %v4898, 4294901760
        %4900 = vmatprep.subr.mxu0 %v4899
        %v4901 = vand.u32 %v418, 4294901760
        %v4902 = vsub.f32 %v418, %v4901
        %v4903 = vand.u32 %v4902, 4294901760
        %v4904 = vsub.f32 %v4902, %v4903
        %v4905 = vand.u32 %v4904, 4294901760
        %4906 = vmatpush1.msra.mxu0 %v4905
        %v4907 = vand.u32 %v423, 4294901760
        %v4908 = vsub.f32 %v423, %v4907
        %v4909 = vand.u32 %v4908, 4294901760
        %v4910 = vsub.f32 %v4908, %v4909
        %v4911 = vand.u32 %v4910, 4294901760
        %4912 = vmatprep.subr.mxu0 %v4911
        %v4913 = vand.u32 %v422, 4294901760
        %v4914 = vsub.f32 %v422, %v4913
        %v4915 = vand.u32 %v4914, 4294901760
        %v4916 = vsub.f32 %v4914, %v4915
        %v4917 = vand.u32 %v4916, 4294901760
        %4918 = vmatpush1.msra.mxu0 %v4917
        %v4919 = vand.u32 %v427, 4294901760
        %v4920 = vsub.f32 %v427, %v4919
        %v4921 = vand.u32 %v4920, 4294901760
        %v4922 = vsub.f32 %v4920, %v4921
        %v4923 = vand.u32 %v4922, 4294901760
        %4924 = vmatprep.subr.mxu0 %v4923
        %v4925 = vand.u32 %v426, 4294901760
        %v4926 = vsub.f32 %v426, %v4925
        %v4927 = vand.u32 %v4926, 4294901760
        %v4928 = vsub.f32 %v4926, %v4927
        %v4929 = vand.u32 %v4928, 4294901760
        %4930 = vmatpush1.msra.mxu0 %v4929
        %v4931 = vand.u32 %v431, 4294901760
        %v4932 = vsub.f32 %v431, %v4931
        %v4933 = vand.u32 %v4932, 4294901760
        %v4934 = vsub.f32 %v4932, %v4933
        %v4935 = vand.u32 %v4934, 4294901760
        %4936 = vmatprep.subr.mxu0 %v4935
        %v4937 = vand.u32 %v430, 4294901760
        %v4938 = vsub.f32 %v430, %v4937
        %v4939 = vand.u32 %v4938, 4294901760
        %v4940 = vsub.f32 %v4938, %v4939
        %v4941 = vand.u32 %v4940, 4294901760
        %4942 = vmatpush1.msra.mxu0 %v4941
        %v4943 = vand.u32 %v435, 4294901760
        %v4944 = vsub.f32 %v435, %v4943
        %v4945 = vand.u32 %v4944, 4294901760
        %v4946 = vsub.f32 %v4944, %v4945
        %v4947 = vand.u32 %v4946, 4294901760
        %4948 = vmatprep.subr.mxu0 %v4947
        %v4949 = vand.u32 %v434, 4294901760
        %v4950 = vsub.f32 %v434, %v4949
        %v4951 = vand.u32 %v4950, 4294901760
        %v4952 = vsub.f32 %v4950, %v4951
        %v4953 = vand.u32 %v4952, 4294901760
        %4954 = vmatpush1.msra.mxu0 %v4953
        %v4955 = vand.u32 %v439, 4294901760
        %v4956 = vsub.f32 %v439, %v4955
        %v4957 = vand.u32 %v4956, 4294901760
        %v4958 = vsub.f32 %v4956, %v4957
        %v4959 = vand.u32 %v4958, 4294901760
        %4960 = vmatprep.subr.mxu0 %v4959
        %v4961 = vand.u32 %v438, 4294901760
        %v4962 = vsub.f32 %v438, %v4961
        %v4963 = vand.u32 %v4962, 4294901760
        %v4964 = vsub.f32 %v4962, %v4963
        %v4965 = vand.u32 %v4964, 4294901760
        %4966 = vmatpush1.msra.mxu0 %v4965
        %v4967 = vand.u32 %v443, 4294901760
        %v4968 = vsub.f32 %v443, %v4967
        %v4969 = vand.u32 %v4968, 4294901760
        %v4970 = vsub.f32 %v4968, %v4969
        %v4971 = vand.u32 %v4970, 4294901760
        %4972 = vmatprep.subr.mxu0 %v4971
        %v4973 = vand.u32 %v442, 4294901760
        %v4974 = vsub.f32 %v442, %v4973
        %v4975 = vand.u32 %v4974, 4294901760
        %v4976 = vsub.f32 %v4974, %v4975
        %v4977 = vand.u32 %v4976, 4294901760
        %4978 = vmatpush1.msra.mxu0 %v4977
        %v4979 = vand.u32 %v447, 4294901760
        %v4980 = vsub.f32 %v447, %v4979
        %v4981 = vand.u32 %v4980, 4294901760
        %v4982 = vsub.f32 %v4980, %v4981
        %v4983 = vand.u32 %v4982, 4294901760
        %4984 = vmatprep.subr.mxu0 %v4983
        %v4985 = vand.u32 %v446, 4294901760
        %v4986 = vsub.f32 %v446, %v4985
        %v4987 = vand.u32 %v4986, 4294901760
        %v4988 = vsub.f32 %v4986, %v4987
        %v4989 = vand.u32 %v4988, 4294901760
        %4990 = vmatpush1.msra.mxu0 %v4989
        %v4991 = vand.u32 %v451, 4294901760
        %v4992 = vsub.f32 %v451, %v4991
        %v4993 = vand.u32 %v4992, 4294901760
        %v4994 = vsub.f32 %v4992, %v4993
        %v4995 = vand.u32 %v4994, 4294901760
        %4996 = vmatprep.subr.mxu0 %v4995
        %v4997 = vand.u32 %v450, 4294901760
        %v4998 = vsub.f32 %v450, %v4997
        %v4999 = vand.u32 %v4998, 4294901760
        %v5000 = vsub.f32 %v4998, %v4999
        %v5001 = vand.u32 %v5000, 4294901760
        %5002 = vmatpush1.msra.mxu0 %v5001
        %v5003 = vand.u32 %v455, 4294901760
        %v5004 = vsub.f32 %v455, %v5003
        %v5005 = vand.u32 %v5004, 4294901760
        %v5006 = vsub.f32 %v5004, %v5005
        %v5007 = vand.u32 %v5006, 4294901760
        %5008 = vmatprep.subr.mxu0 %v5007
        %v5009 = vand.u32 %v454, 4294901760
        %v5010 = vsub.f32 %v454, %v5009
        %v5011 = vand.u32 %v5010, 4294901760
        %v5012 = vsub.f32 %v5010, %v5011
        %v5013 = vand.u32 %v5012, 4294901760
        %5014 = vmatpush1.msra.mxu0 %v5013
        %v5015 = vand.u32 %v459, 4294901760
        %v5016 = vsub.f32 %v459, %v5015
        %v5017 = vand.u32 %v5016, 4294901760
        %v5018 = vsub.f32 %v5016, %v5017
        %v5019 = vand.u32 %v5018, 4294901760
        %5020 = vmatprep.subr.mxu0 %v5019
        %v5021 = vand.u32 %v458, 4294901760
        %v5022 = vsub.f32 %v458, %v5021
        %v5023 = vand.u32 %v5022, 4294901760
        %v5024 = vsub.f32 %v5022, %v5023
        %v5025 = vand.u32 %v5024, 4294901760
        %5026 = vmatpush1.msra.mxu0 %v5025
        %v5027 = vand.u32 %v463, 4294901760
        %v5028 = vsub.f32 %v463, %v5027
        %v5029 = vand.u32 %v5028, 4294901760
        %v5030 = vsub.f32 %v5028, %v5029
        %v5031 = vand.u32 %v5030, 4294901760
        %5032 = vmatprep.subr.mxu0 %v5031
        %v5033 = vand.u32 %v462, 4294901760
        %v5034 = vsub.f32 %v462, %v5033
        %v5035 = vand.u32 %v5034, 4294901760
        %v5036 = vsub.f32 %v5034, %v5035
        %v5037 = vand.u32 %v5036, 4294901760
        %5038 = vmatpush1.msra.mxu0 %v5037
        %v5039 = vand.u32 %v467, 4294901760
        %v5040 = vsub.f32 %v467, %v5039
        %v5041 = vand.u32 %v5040, 4294901760
        %v5042 = vsub.f32 %v5040, %v5041
        %v5043 = vand.u32 %v5042, 4294901760
        %5044 = vmatprep.subr.mxu0 %v5043
        %v5045 = vand.u32 %v466, 4294901760
        %v5046 = vsub.f32 %v466, %v5045
        %v5047 = vand.u32 %v5046, 4294901760
        %v5048 = vsub.f32 %v5046, %v5047
        %v5049 = vand.u32 %v5048, 4294901760
        %5050 = vmatpush1.msra.mxu0 %v5049
        %v5051 = vand.u32 %v207, 4294901760
        %5052 = vmatprep.mubr.f32.mxu0 %v5051
        %v5053 = vand.u32 %v206, 4294901760
        %5054 = vmatmul.mubr.f32.gmra.mrb[0].mxu0 %v5053
        %v5055 = vpop.f32.mrb[0].mxu0
        %v5056 = vadd.f32 %v4647, %v5055
        %v5057 = vpop.f32.mrb[0].mxu0
        %v5058 = vadd.f32 %v4649, %v5057
        %v5059 = vand.u32 %v211, 4294901760
        %5060 = vmatprep.mubr.f32.mxu0 %v5059
        %v5061 = vand.u32 %v210, 4294901760
        %5062 = vmatmul.mubr.f32.gmra.mrb[0].mxu0 %v5061
        %v5063 = vpop.f32.mrb[0].mxu0
        %v5064 = vadd.f32 %v4663, %v5063
        %v5065 = vpop.f32.mrb[0].mxu0
        %v5066 = vadd.f32 %v4665, %v5065
        %5067 = vdwg.mxu0
        %v5068 = vand.u32 %v343, 4294901760
        %v5069 = vsub.f32 %v343, %v5068
        %5070 = vmatprep.subr.mxu0 %v5069
        %v5071 = vand.u32 %v342, 4294901760
        %v5072 = vsub.f32 %v342, %v5071
        %5073 = vmatpush1.msra.mxu0 %v5072
        %v5074 = vand.u32 %v347, 4294901760
        %v5075 = vsub.f32 %v347, %v5074
        %5076 = vmatprep.subr.mxu0 %v5075
        %v5077 = vand.u32 %v346, 4294901760
        %v5078 = vsub.f32 %v346, %v5077
        %5079 = vmatpush1.msra.mxu0 %v5078
        %v5080 = vand.u32 %v351, 4294901760
        %v5081 = vsub.f32 %v351, %v5080
        %5082 = vmatprep.subr.mxu0 %v5081
        %v5083 = vand.u32 %v350, 4294901760
        %v5084 = vsub.f32 %v350, %v5083
        %5085 = vmatpush1.msra.mxu0 %v5084
        %v5086 = vand.u32 %v355, 4294901760
        %v5087 = vsub.f32 %v355, %v5086
        %5088 = vmatprep.subr.mxu0 %v5087
        %v5089 = vand.u32 %v354, 4294901760
        %v5090 = vsub.f32 %v354, %v5089
        %5091 = vmatpush1.msra.mxu0 %v5090
        %v5092 = vand.u32 %v359, 4294901760
        %v5093 = vsub.f32 %v359, %v5092
        %5094 = vmatprep.subr.mxu0 %v5093
        %v5095 = vand.u32 %v358, 4294901760
        %v5096 = vsub.f32 %v358, %v5095
        %5097 = vmatpush1.msra.mxu0 %v5096
        %v5098 = vand.u32 %v363, 4294901760
        %v5099 = vsub.f32 %v363, %v5098
        %5100 = vmatprep.subr.mxu0 %v5099
        %v5101 = vand.u32 %v362, 4294901760
        %v5102 = vsub.f32 %v362, %v5101
        %5103 = vmatpush1.msra.mxu0 %v5102
        %v5104 = vand.u32 %v367, 4294901760
        %v5105 = vsub.f32 %v367, %v5104
        %5106 = vmatprep.subr.mxu0 %v5105
        %v5107 = vand.u32 %v366, 4294901760
        %v5108 = vsub.f32 %v366, %v5107
        %5109 = vmatpush1.msra.mxu0 %v5108
        %v5110 = vand.u32 %v371, 4294901760
        %v5111 = vsub.f32 %v371, %v5110
        %5112 = vmatprep.subr.mxu0 %v5111
        %v5113 = vand.u32 %v370, 4294901760
        %v5114 = vsub.f32 %v370, %v5113
        %5115 = vmatpush1.msra.mxu0 %v5114
        %v5116 = vand.u32 %v375, 4294901760
        %v5117 = vsub.f32 %v375, %v5116
        %5118 = vmatprep.subr.mxu0 %v5117
        %v5119 = vand.u32 %v374, 4294901760
        %v5120 = vsub.f32 %v374, %v5119
        %5121 = vmatpush1.msra.mxu0 %v5120
        %v5122 = vand.u32 %v379, 4294901760
        %v5123 = vsub.f32 %v379, %v5122
        %5124 = vmatprep.subr.mxu0 %v5123
        %v5125 = vand.u32 %v378, 4294901760
        %v5126 = vsub.f32 %v378, %v5125
        %5127 = vmatpush1.msra.mxu0 %v5126
        %v5128 = vand.u32 %v383, 4294901760
        %v5129 = vsub.f32 %v383, %v5128
        %5130 = vmatprep.subr.mxu0 %v5129
        %v5131 = vand.u32 %v382, 4294901760
        %v5132 = vsub.f32 %v382, %v5131
        %5133 = vmatpush1.msra.mxu0 %v5132
        %v5134 = vand.u32 %v387, 4294901760
        %v5135 = vsub.f32 %v387, %v5134
        %5136 = vmatprep.subr.mxu0 %v5135
        %v5137 = vand.u32 %v386, 4294901760
        %v5138 = vsub.f32 %v386, %v5137
        %5139 = vmatpush1.msra.mxu0 %v5138
        %v5140 = vand.u32 %v391, 4294901760
        %v5141 = vsub.f32 %v391, %v5140
        %5142 = vmatprep.subr.mxu0 %v5141
        %v5143 = vand.u32 %v390, 4294901760
        %v5144 = vsub.f32 %v390, %v5143
        %5145 = vmatpush1.msra.mxu0 %v5144
        %v5146 = vand.u32 %v395, 4294901760
        %v5147 = vsub.f32 %v395, %v5146
        %5148 = vmatprep.subr.mxu0 %v5147
        %v5149 = vand.u32 %v394, 4294901760
        %v5150 = vsub.f32 %v394, %v5149
        %5151 = vmatpush1.msra.mxu0 %v5150
        %v5152 = vand.u32 %v399, 4294901760
        %v5153 = vsub.f32 %v399, %v5152
        %5154 = vmatprep.subr.mxu0 %v5153
        %v5155 = vand.u32 %v398, 4294901760
        %v5156 = vsub.f32 %v398, %v5155
        %5157 = vmatpush1.msra.mxu0 %v5156
        %v5158 = vand.u32 %v403, 4294901760
        %v5159 = vsub.f32 %v403, %v5158
        %5160 = vmatprep.subr.mxu0 %v5159
        %v5161 = vand.u32 %v402, 4294901760
        %v5162 = vsub.f32 %v402, %v5161
        %5163 = vmatpush1.msra.mxu0 %v5162
        %v5164 = vand.u32 %v407, 4294901760
        %v5165 = vsub.f32 %v407, %v5164
        %5166 = vmatprep.subr.mxu0 %v5165
        %v5167 = vand.u32 %v406, 4294901760
        %v5168 = vsub.f32 %v406, %v5167
        %5169 = vmatpush1.msra.mxu0 %v5168
        %v5170 = vand.u32 %v411, 4294901760
        %v5171 = vsub.f32 %v411, %v5170
        %5172 = vmatprep.subr.mxu0 %v5171
        %v5173 = vand.u32 %v410, 4294901760
        %v5174 = vsub.f32 %v410, %v5173
        %5175 = vmatpush1.msra.mxu0 %v5174
        %v5176 = vand.u32 %v415, 4294901760
        %v5177 = vsub.f32 %v415, %v5176
        %5178 = vmatprep.subr.mxu0 %v5177
        %v5179 = vand.u32 %v414, 4294901760
        %v5180 = vsub.f32 %v414, %v5179
        %5181 = vmatpush1.msra.mxu0 %v5180
        %v5182 = vand.u32 %v419, 4294901760
        %v5183 = vsub.f32 %v419, %v5182
        %5184 = vmatprep.subr.mxu0 %v5183
        %v5185 = vand.u32 %v418, 4294901760
        %v5186 = vsub.f32 %v418, %v5185
        %5187 = vmatpush1.msra.mxu0 %v5186
        %v5188 = vand.u32 %v423, 4294901760
        %v5189 = vsub.f32 %v423, %v5188
        %5190 = vmatprep.subr.mxu0 %v5189
        %v5191 = vand.u32 %v422, 4294901760
        %v5192 = vsub.f32 %v422, %v5191
        %5193 = vmatpush1.msra.mxu0 %v5192
        %v5194 = vand.u32 %v427, 4294901760
        %v5195 = vsub.f32 %v427, %v5194
        %5196 = vmatprep.subr.mxu0 %v5195
        %v5197 = vand.u32 %v426, 4294901760
        %v5198 = vsub.f32 %v426, %v5197
        %5199 = vmatpush1.msra.mxu0 %v5198
        %v5200 = vand.u32 %v431, 4294901760
        %v5201 = vsub.f32 %v431, %v5200
        %5202 = vmatprep.subr.mxu0 %v5201
        %v5203 = vand.u32 %v430, 4294901760
        %v5204 = vsub.f32 %v430, %v5203
        %5205 = vmatpush1.msra.mxu0 %v5204
        %v5206 = vand.u32 %v435, 4294901760
        %v5207 = vsub.f32 %v435, %v5206
        %5208 = vmatprep.subr.mxu0 %v5207
        %v5209 = vand.u32 %v434, 4294901760
        %v5210 = vsub.f32 %v434, %v5209
        %5211 = vmatpush1.msra.mxu0 %v5210
        %v5212 = vand.u32 %v439, 4294901760
        %v5213 = vsub.f32 %v439, %v5212
        %5214 = vmatprep.subr.mxu0 %v5213
        %v5215 = vand.u32 %v438, 4294901760
        %v5216 = vsub.f32 %v438, %v5215
        %5217 = vmatpush1.msra.mxu0 %v5216
        %v5218 = vand.u32 %v443, 4294901760
        %v5219 = vsub.f32 %v443, %v5218
        %5220 = vmatprep.subr.mxu0 %v5219
        %v5221 = vand.u32 %v442, 4294901760
        %v5222 = vsub.f32 %v442, %v5221
        %5223 = vmatpush1.msra.mxu0 %v5222
        %v5224 = vand.u32 %v447, 4294901760
        %v5225 = vsub.f32 %v447, %v5224
        %5226 = vmatprep.subr.mxu0 %v5225
        %v5227 = vand.u32 %v446, 4294901760
        %v5228 = vsub.f32 %v446, %v5227
        %5229 = vmatpush1.msra.mxu0 %v5228
        %v5230 = vand.u32 %v451, 4294901760
        %v5231 = vsub.f32 %v451, %v5230
        %5232 = vmatprep.subr.mxu0 %v5231
        %v5233 = vand.u32 %v450, 4294901760
        %v5234 = vsub.f32 %v450, %v5233
        %5235 = vmatpush1.msra.mxu0 %v5234
        %v5236 = vand.u32 %v455, 4294901760
        %v5237 = vsub.f32 %v455, %v5236
        %5238 = vmatprep.subr.mxu0 %v5237
        %v5239 = vand.u32 %v454, 4294901760
        %v5240 = vsub.f32 %v454, %v5239
        %5241 = vmatpush1.msra.mxu0 %v5240
        %v5242 = vand.u32 %v459, 4294901760
        %v5243 = vsub.f32 %v459, %v5242
        %5244 = vmatprep.subr.mxu0 %v5243
        %v5245 = vand.u32 %v458, 4294901760
        %v5246 = vsub.f32 %v458, %v5245
        %5247 = vmatpush1.msra.mxu0 %v5246
        %v5248 = vand.u32 %v463, 4294901760
        %v5249 = vsub.f32 %v463, %v5248
        %5250 = vmatprep.subr.mxu0 %v5249
        %v5251 = vand.u32 %v462, 4294901760
        %v5252 = vsub.f32 %v462, %v5251
        %5253 = vmatpush1.msra.mxu0 %v5252
        %v5254 = vand.u32 %v467, 4294901760
        %v5255 = vsub.f32 %v467, %v5254
        %5256 = vmatprep.subr.mxu0 %v5255
        %v5257 = vand.u32 %v466, 4294901760
        %v5258 = vsub.f32 %v466, %v5257
        %5259 = vmatpush1.msra.mxu0 %v5258
        %v5260 = vand.u32 %v207, 4294901760
        %v5261 = vsub.f32 %v207, %v5260
        %5262 = vmatprep.mubr.f32.mxu0 %v5261
        %v5263 = vand.u32 %v206, 4294901760
        %v5264 = vsub.f32 %v206, %v5263
        %5265 = vmatmul.mubr.f32.gmra.mrb[0].mxu0 %v5264
        %v5266 = vpop.f32.mrb[0].mxu0
        %v5267 = vadd.f32 %v5056, %v5266
        %v5268 = vpop.f32.mrb[0].mxu0
        %v5269 = vadd.f32 %v5058, %v5268
        %v5270 = vand.u32 %v211, 4294901760
        %v5271 = vsub.f32 %v211, %v5270
        %5272 = vmatprep.mubr.f32.mxu0 %v5271
        %v5273 = vand.u32 %v210, 4294901760
        %v5274 = vsub.f32 %v210, %v5273
        %5275 = vmatmul.mubr.f32.gmra.mrb[0].mxu0 %v5274
        %v5276 = vpop.f32.mrb[0].mxu0
        %v5277 = vadd.f32 %v5064, %v5276
        %v5278 = vpop.f32.mrb[0].mxu0
        %v5279 = vadd.f32 %v5066, %v5278
        %5280 = vdwg.mxu0
        %v5281 = vand.u32 %v343, 4294901760
        %5282 = vmatprep.subr.mxu0 %v5281
        %v5283 = vand.u32 %v342, 4294901760
        %5284 = vmatpush1.msra.mxu0 %v5283
        %v5285 = vand.u32 %v347, 4294901760
        %5286 = vmatprep.subr.mxu0 %v5285
        %v5287 = vand.u32 %v346, 4294901760
        %5288 = vmatpush1.msra.mxu0 %v5287
        %v5289 = vand.u32 %v351, 4294901760
        %5290 = vmatprep.subr.mxu0 %v5289
        %v5291 = vand.u32 %v350, 4294901760
        %5292 = vmatpush1.msra.mxu0 %v5291
        %v5293 = vand.u32 %v355, 4294901760
        %5294 = vmatprep.subr.mxu0 %v5293
        %v5295 = vand.u32 %v354, 4294901760
        %5296 = vmatpush1.msra.mxu0 %v5295
        %v5297 = vand.u32 %v359, 4294901760
        %5298 = vmatprep.subr.mxu0 %v5297
        %v5299 = vand.u32 %v358, 4294901760
        %5300 = vmatpush1.msra.mxu0 %v5299
        %v5301 = vand.u32 %v363, 4294901760
        %5302 = vmatprep.subr.mxu0 %v5301
        %v5303 = vand.u32 %v362, 4294901760
        %5304 = vmatpush1.msra.mxu0 %v5303
        %v5305 = vand.u32 %v367, 4294901760
        %5306 = vmatprep.subr.mxu0 %v5305
        %v5307 = vand.u32 %v366, 4294901760
        %5308 = vmatpush1.msra.mxu0 %v5307
        %v5309 = vand.u32 %v371, 4294901760
        %5310 = vmatprep.subr.mxu0 %v5309
        %v5311 = vand.u32 %v370, 4294901760
        %5312 = vmatpush1.msra.mxu0 %v5311
        %v5313 = vand.u32 %v375, 4294901760
        %5314 = vmatprep.subr.mxu0 %v5313
        %v5315 = vand.u32 %v374, 4294901760
        %5316 = vmatpush1.msra.mxu0 %v5315
        %v5317 = vand.u32 %v379, 4294901760
        %5318 = vmatprep.subr.mxu0 %v5317
        %v5319 = vand.u32 %v378, 4294901760
        %5320 = vmatpush1.msra.mxu0 %v5319
        %v5321 = vand.u32 %v383, 4294901760
        %5322 = vmatprep.subr.mxu0 %v5321
        %v5323 = vand.u32 %v382, 4294901760
        %5324 = vmatpush1.msra.mxu0 %v5323
        %v5325 = vand.u32 %v387, 4294901760
        %5326 = vmatprep.subr.mxu0 %v5325
        %v5327 = vand.u32 %v386, 4294901760
        %5328 = vmatpush1.msra.mxu0 %v5327
        %v5329 = vand.u32 %v391, 4294901760
        %5330 = vmatprep.subr.mxu0 %v5329
        %v5331 = vand.u32 %v390, 4294901760
        %5332 = vmatpush1.msra.mxu0 %v5331
        %v5333 = vand.u32 %v395, 4294901760
        %5334 = vmatprep.subr.mxu0 %v5333
        %v5335 = vand.u32 %v394, 4294901760
        %5336 = vmatpush1.msra.mxu0 %v5335
        %v5337 = vand.u32 %v399, 4294901760
        %5338 = vmatprep.subr.mxu0 %v5337
        %v5339 = vand.u32 %v398, 4294901760
        %5340 = vmatpush1.msra.mxu0 %v5339
        %v5341 = vand.u32 %v403, 4294901760
        %5342 = vmatprep.subr.mxu0 %v5341
        %v5343 = vand.u32 %v402, 4294901760
        %5344 = vmatpush1.msra.mxu0 %v5343
        %v5345 = vand.u32 %v407, 4294901760
        %5346 = vmatprep.subr.mxu0 %v5345
        %v5347 = vand.u32 %v406, 4294901760
        %5348 = vmatpush1.msra.mxu0 %v5347
        %v5349 = vand.u32 %v411, 4294901760
        %5350 = vmatprep.subr.mxu0 %v5349
        %v5351 = vand.u32 %v410, 4294901760
        %5352 = vmatpush1.msra.mxu0 %v5351
        %v5353 = vand.u32 %v415, 4294901760
        %5354 = vmatprep.subr.mxu0 %v5353
        %v5355 = vand.u32 %v414, 4294901760
        %5356 = vmatpush1.msra.mxu0 %v5355
        %v5357 = vand.u32 %v419, 4294901760
        %5358 = vmatprep.subr.mxu0 %v5357
        %v5359 = vand.u32 %v418, 4294901760
        %5360 = vmatpush1.msra.mxu0 %v5359
        %v5361 = vand.u32 %v423, 4294901760
        %5362 = vmatprep.subr.mxu0 %v5361
        %v5363 = vand.u32 %v422, 4294901760
        %5364 = vmatpush1.msra.mxu0 %v5363
        %v5365 = vand.u32 %v427, 4294901760
        %5366 = vmatprep.subr.mxu0 %v5365
        %v5367 = vand.u32 %v426, 4294901760
        %5368 = vmatpush1.msra.mxu0 %v5367
        %v5369 = vand.u32 %v431, 4294901760
        %5370 = vmatprep.subr.mxu0 %v5369
        %v5371 = vand.u32 %v430, 4294901760
        %5372 = vmatpush1.msra.mxu0 %v5371
        %v5373 = vand.u32 %v435, 4294901760
        %5374 = vmatprep.subr.mxu0 %v5373
        %v5375 = vand.u32 %v434, 4294901760
        %5376 = vmatpush1.msra.mxu0 %v5375
        %v5377 = vand.u32 %v439, 4294901760
        %5378 = vmatprep.subr.mxu0 %v5377
        %v5379 = vand.u32 %v438, 4294901760
        %5380 = vmatpush1.msra.mxu0 %v5379
        %v5381 = vand.u32 %v443, 4294901760
        %5382 = vmatprep.subr.mxu0 %v5381
        %v5383 = vand.u32 %v442, 4294901760
        %5384 = vmatpush1.msra.mxu0 %v5383
        %v5385 = vand.u32 %v447, 4294901760
        %5386 = vmatprep.subr.mxu0 %v5385
        %v5387 = vand.u32 %v446, 4294901760
        %5388 = vmatpush1.msra.mxu0 %v5387
        %v5389 = vand.u32 %v451, 4294901760
        %5390 = vmatprep.subr.mxu0 %v5389
        %v5391 = vand.u32 %v450, 4294901760
        %5392 = vmatpush1.msra.mxu0 %v5391
        %v5393 = vand.u32 %v455, 4294901760
        %5394 = vmatprep.subr.mxu0 %v5393
        %v5395 = vand.u32 %v454, 4294901760
        %5396 = vmatpush1.msra.mxu0 %v5395
        %v5397 = vand.u32 %v459, 4294901760
        %5398 = vmatprep.subr.mxu0 %v5397
        %v5399 = vand.u32 %v458, 4294901760
        %5400 = vmatpush1.msra.mxu0 %v5399
        %v5401 = vand.u32 %v463, 4294901760
        %5402 = vmatprep.subr.mxu0 %v5401
        %v5403 = vand.u32 %v462, 4294901760
        %5404 = vmatpush1.msra.mxu0 %v5403
        %v5405 = vand.u32 %v467, 4294901760
        %5406 = vmatprep.subr.mxu0 %v5405
        %v5407 = vand.u32 %v466, 4294901760
        %5408 = vmatpush1.msra.mxu0 %v5407
        %v5409 = vand.u32 %v207, 4294901760
        %v5410 = vsub.f32 %v207, %v5409
        %v5411 = vand.u32 %v5410, 4294901760
        %5412 = vmatprep.mubr.f32.mxu0 %v5411
        %v5413 = vand.u32 %v206, 4294901760
        %v5414 = vsub.f32 %v206, %v5413
        %v5415 = vand.u32 %v5414, 4294901760
        %5416 = vmatmul.mubr.f32.gmra.mrb[0].mxu0 %v5415
        %v5417 = vpop.f32.mrb[0].mxu0
        %v5418 = vadd.f32 %v5267, %v5417
        %v5419 = vpop.f32.mrb[0].mxu0
        %v5420 = vadd.f32 %v5269, %v5419
        %v5421 = vand.u32 %v211, 4294901760
        %v5422 = vsub.f32 %v211, %v5421
        %v5423 = vand.u32 %v5422, 4294901760
        %5424 = vmatprep.mubr.f32.mxu0 %v5423
        %v5425 = vand.u32 %v210, 4294901760
        %v5426 = vsub.f32 %v210, %v5425
        %v5427 = vand.u32 %v5426, 4294901760
        %5428 = vmatmul.mubr.f32.gmra.mrb[0].mxu0 %v5427
        %v5429 = vpop.f32.mrb[0].mxu0
        %v5430 = vadd.f32 %v5277, %v5429
        %v5431 = vpop.f32.mrb[0].mxu0
        %v5432 = vadd.f32 %v5279, %v5431
        %5433 = vdwg.mxu0
        %v5434 = vand.u32 %v343, 4294901760
        %v5435 = vsub.f32 %v343, %v5434
        %v5436 = vand.u32 %v5435, 4294901760
        %5437 = vmatprep.subr.mxu0 %v5436
        %v5438 = vand.u32 %v342, 4294901760
        %v5439 = vsub.f32 %v342, %v5438
        %v5440 = vand.u32 %v5439, 4294901760
        %5441 = vmatpush1.msra.mxu0 %v5440
        %v5442 = vand.u32 %v347, 4294901760
        %v5443 = vsub.f32 %v347, %v5442
        %v5444 = vand.u32 %v5443, 4294901760
        %5445 = vmatprep.subr.mxu0 %v5444
        %v5446 = vand.u32 %v346, 4294901760
        %v5447 = vsub.f32 %v346, %v5446
        %v5448 = vand.u32 %v5447, 4294901760
        %5449 = vmatpush1.msra.mxu0 %v5448
        %v5450 = vand.u32 %v351, 4294901760
        %v5451 = vsub.f32 %v351, %v5450
        %v5452 = vand.u32 %v5451, 4294901760
        %5453 = vmatprep.subr.mxu0 %v5452
        %v5454 = vand.u32 %v350, 4294901760
        %v5455 = vsub.f32 %v350, %v5454
        %v5456 = vand.u32 %v5455, 4294901760
        %5457 = vmatpush1.msra.mxu0 %v5456
        %v5458 = vand.u32 %v355, 4294901760
        %v5459 = vsub.f32 %v355, %v5458
        %v5460 = vand.u32 %v5459, 4294901760
        %5461 = vmatprep.subr.mxu0 %v5460
        %v5462 = vand.u32 %v354, 4294901760
        %v5463 = vsub.f32 %v354, %v5462
        %v5464 = vand.u32 %v5463, 4294901760
        %5465 = vmatpush1.msra.mxu0 %v5464
        %v5466 = vand.u32 %v359, 4294901760
        %v5467 = vsub.f32 %v359, %v5466
        %v5468 = vand.u32 %v5467, 4294901760
        %5469 = vmatprep.subr.mxu0 %v5468
        %v5470 = vand.u32 %v358, 4294901760
        %v5471 = vsub.f32 %v358, %v5470
        %v5472 = vand.u32 %v5471, 4294901760
        %5473 = vmatpush1.msra.mxu0 %v5472
        %v5474 = vand.u32 %v363, 4294901760
        %v5475 = vsub.f32 %v363, %v5474
        %v5476 = vand.u32 %v5475, 4294901760
        %5477 = vmatprep.subr.mxu0 %v5476
        %v5478 = vand.u32 %v362, 4294901760
        %v5479 = vsub.f32 %v362, %v5478
        %v5480 = vand.u32 %v5479, 4294901760
        %5481 = vmatpush1.msra.mxu0 %v5480
        %v5482 = vand.u32 %v367, 4294901760
        %v5483 = vsub.f32 %v367, %v5482
        %v5484 = vand.u32 %v5483, 4294901760
        %5485 = vmatprep.subr.mxu0 %v5484
        %v5486 = vand.u32 %v366, 4294901760
        %v5487 = vsub.f32 %v366, %v5486
        %v5488 = vand.u32 %v5487, 4294901760
        %5489 = vmatpush1.msra.mxu0 %v5488
        %v5490 = vand.u32 %v371, 4294901760
        %v5491 = vsub.f32 %v371, %v5490
        %v5492 = vand.u32 %v5491, 4294901760
        %5493 = vmatprep.subr.mxu0 %v5492
        %v5494 = vand.u32 %v370, 4294901760
        %v5495 = vsub.f32 %v370, %v5494
        %v5496 = vand.u32 %v5495, 4294901760
        %5497 = vmatpush1.msra.mxu0 %v5496
        %v5498 = vand.u32 %v375, 4294901760
        %v5499 = vsub.f32 %v375, %v5498
        %v5500 = vand.u32 %v5499, 4294901760
        %5501 = vmatprep.subr.mxu0 %v5500
        %v5502 = vand.u32 %v374, 4294901760
        %v5503 = vsub.f32 %v374, %v5502
        %v5504 = vand.u32 %v5503, 4294901760
        %5505 = vmatpush1.msra.mxu0 %v5504
        %v5506 = vand.u32 %v379, 4294901760
        %v5507 = vsub.f32 %v379, %v5506
        %v5508 = vand.u32 %v5507, 4294901760
        %5509 = vmatprep.subr.mxu0 %v5508
        %v5510 = vand.u32 %v378, 4294901760
        %v5511 = vsub.f32 %v378, %v5510
        %v5512 = vand.u32 %v5511, 4294901760
        %5513 = vmatpush1.msra.mxu0 %v5512
        %v5514 = vand.u32 %v383, 4294901760
        %v5515 = vsub.f32 %v383, %v5514
        %v5516 = vand.u32 %v5515, 4294901760
        %5517 = vmatprep.subr.mxu0 %v5516
        %v5518 = vand.u32 %v382, 4294901760
        %v5519 = vsub.f32 %v382, %v5518
        %v5520 = vand.u32 %v5519, 4294901760
        %5521 = vmatpush1.msra.mxu0 %v5520
        %v5522 = vand.u32 %v387, 4294901760
        %v5523 = vsub.f32 %v387, %v5522
        %v5524 = vand.u32 %v5523, 4294901760
        %5525 = vmatprep.subr.mxu0 %v5524
        %v5526 = vand.u32 %v386, 4294901760
        %v5527 = vsub.f32 %v386, %v5526
        %v5528 = vand.u32 %v5527, 4294901760
        %5529 = vmatpush1.msra.mxu0 %v5528
        %v5530 = vand.u32 %v391, 4294901760
        %v5531 = vsub.f32 %v391, %v5530
        %v5532 = vand.u32 %v5531, 4294901760
        %5533 = vmatprep.subr.mxu0 %v5532
        %v5534 = vand.u32 %v390, 4294901760
        %v5535 = vsub.f32 %v390, %v5534
        %v5536 = vand.u32 %v5535, 4294901760
        %5537 = vmatpush1.msra.mxu0 %v5536
        %v5538 = vand.u32 %v395, 4294901760
        %v5539 = vsub.f32 %v395, %v5538
        %v5540 = vand.u32 %v5539, 4294901760
        %5541 = vmatprep.subr.mxu0 %v5540
        %v5542 = vand.u32 %v394, 4294901760
        %v5543 = vsub.f32 %v394, %v5542
        %v5544 = vand.u32 %v5543, 4294901760
        %5545 = vmatpush1.msra.mxu0 %v5544
        %v5546 = vand.u32 %v399, 4294901760
        %v5547 = vsub.f32 %v399, %v5546
        %v5548 = vand.u32 %v5547, 4294901760
        %5549 = vmatprep.subr.mxu0 %v5548
        %v5550 = vand.u32 %v398, 4294901760
        %v5551 = vsub.f32 %v398, %v5550
        %v5552 = vand.u32 %v5551, 4294901760
        %5553 = vmatpush1.msra.mxu0 %v5552
        %v5554 = vand.u32 %v403, 4294901760
        %v5555 = vsub.f32 %v403, %v5554
        %v5556 = vand.u32 %v5555, 4294901760
        %5557 = vmatprep.subr.mxu0 %v5556
        %v5558 = vand.u32 %v402, 4294901760
        %v5559 = vsub.f32 %v402, %v5558
        %v5560 = vand.u32 %v5559, 4294901760
        %5561 = vmatpush1.msra.mxu0 %v5560
        %v5562 = vand.u32 %v407, 4294901760
        %v5563 = vsub.f32 %v407, %v5562
        %v5564 = vand.u32 %v5563, 4294901760
        %5565 = vmatprep.subr.mxu0 %v5564
        %v5566 = vand.u32 %v406, 4294901760
        %v5567 = vsub.f32 %v406, %v5566
        %v5568 = vand.u32 %v5567, 4294901760
        %5569 = vmatpush1.msra.mxu0 %v5568
        %v5570 = vand.u32 %v411, 4294901760
        %v5571 = vsub.f32 %v411, %v5570
        %v5572 = vand.u32 %v5571, 4294901760
        %5573 = vmatprep.subr.mxu0 %v5572
        %v5574 = vand.u32 %v410, 4294901760
        %v5575 = vsub.f32 %v410, %v5574
        %v5576 = vand.u32 %v5575, 4294901760
        %5577 = vmatpush1.msra.mxu0 %v5576
        %v5578 = vand.u32 %v415, 4294901760
        %v5579 = vsub.f32 %v415, %v5578
        %v5580 = vand.u32 %v5579, 4294901760
        %5581 = vmatprep.subr.mxu0 %v5580
        %v5582 = vand.u32 %v414, 4294901760
        %v5583 = vsub.f32 %v414, %v5582
        %v5584 = vand.u32 %v5583, 4294901760
        %5585 = vmatpush1.msra.mxu0 %v5584
        %v5586 = vand.u32 %v419, 4294901760
        %v5587 = vsub.f32 %v419, %v5586
        %v5588 = vand.u32 %v5587, 4294901760
        %5589 = vmatprep.subr.mxu0 %v5588
        %v5590 = vand.u32 %v418, 4294901760
        %v5591 = vsub.f32 %v418, %v5590
        %v5592 = vand.u32 %v5591, 4294901760
        %5593 = vmatpush1.msra.mxu0 %v5592
        %v5594 = vand.u32 %v423, 4294901760
        %v5595 = vsub.f32 %v423, %v5594
        %v5596 = vand.u32 %v5595, 4294901760
        %5597 = vmatprep.subr.mxu0 %v5596
        %v5598 = vand.u32 %v422, 4294901760
        %v5599 = vsub.f32 %v422, %v5598
        %v5600 = vand.u32 %v5599, 4294901760
        %5601 = vmatpush1.msra.mxu0 %v5600
        %v5602 = vand.u32 %v427, 4294901760
        %v5603 = vsub.f32 %v427, %v5602
        %v5604 = vand.u32 %v5603, 4294901760
        %5605 = vmatprep.subr.mxu0 %v5604
        %v5606 = vand.u32 %v426, 4294901760
        %v5607 = vsub.f32 %v426, %v5606
        %v5608 = vand.u32 %v5607, 4294901760
        %5609 = vmatpush1.msra.mxu0 %v5608
        %v5610 = vand.u32 %v431, 4294901760
        %v5611 = vsub.f32 %v431, %v5610
        %v5612 = vand.u32 %v5611, 4294901760
        %5613 = vmatprep.subr.mxu0 %v5612
        %v5614 = vand.u32 %v430, 4294901760
        %v5615 = vsub.f32 %v430, %v5614
        %v5616 = vand.u32 %v5615, 4294901760
        %5617 = vmatpush1.msra.mxu0 %v5616
        %v5618 = vand.u32 %v435, 4294901760
        %v5619 = vsub.f32 %v435, %v5618
        %v5620 = vand.u32 %v5619, 4294901760
        %5621 = vmatprep.subr.mxu0 %v5620
        %v5622 = vand.u32 %v434, 4294901760
        %v5623 = vsub.f32 %v434, %v5622
        %v5624 = vand.u32 %v5623, 4294901760
        %5625 = vmatpush1.msra.mxu0 %v5624
        %v5626 = vand.u32 %v439, 4294901760
        %v5627 = vsub.f32 %v439, %v5626
        %v5628 = vand.u32 %v5627, 4294901760
        %5629 = vmatprep.subr.mxu0 %v5628
        %v5630 = vand.u32 %v438, 4294901760
        %v5631 = vsub.f32 %v438, %v5630
        %v5632 = vand.u32 %v5631, 4294901760
        %5633 = vmatpush1.msra.mxu0 %v5632
        %v5634 = vand.u32 %v443, 4294901760
        %v5635 = vsub.f32 %v443, %v5634
        %v5636 = vand.u32 %v5635, 4294901760
        %5637 = vmatprep.subr.mxu0 %v5636
        %v5638 = vand.u32 %v442, 4294901760
        %v5639 = vsub.f32 %v442, %v5638
        %v5640 = vand.u32 %v5639, 4294901760
        %5641 = vmatpush1.msra.mxu0 %v5640
        %v5642 = vand.u32 %v447, 4294901760
        %v5643 = vsub.f32 %v447, %v5642
        %v5644 = vand.u32 %v5643, 4294901760
        %5645 = vmatprep.subr.mxu0 %v5644
        %v5646 = vand.u32 %v446, 4294901760
        %v5647 = vsub.f32 %v446, %v5646
        %v5648 = vand.u32 %v5647, 4294901760
        %5649 = vmatpush1.msra.mxu0 %v5648
        %v5650 = vand.u32 %v451, 4294901760
        %v5651 = vsub.f32 %v451, %v5650
        %v5652 = vand.u32 %v5651, 4294901760
        %5653 = vmatprep.subr.mxu0 %v5652
        %v5654 = vand.u32 %v450, 4294901760
        %v5655 = vsub.f32 %v450, %v5654
        %v5656 = vand.u32 %v5655, 4294901760
        %5657 = vmatpush1.msra.mxu0 %v5656
        %v5658 = vand.u32 %v455, 4294901760
        %v5659 = vsub.f32 %v455, %v5658
        %v5660 = vand.u32 %v5659, 4294901760
        %5661 = vmatprep.subr.mxu0 %v5660
        %v5662 = vand.u32 %v454, 4294901760
        %v5663 = vsub.f32 %v454, %v5662
        %v5664 = vand.u32 %v5663, 4294901760
        %5665 = vmatpush1.msra.mxu0 %v5664
        %v5666 = vand.u32 %v459, 4294901760
        %v5667 = vsub.f32 %v459, %v5666
        %v5668 = vand.u32 %v5667, 4294901760
        %5669 = vmatprep.subr.mxu0 %v5668
        %v5670 = vand.u32 %v458, 4294901760
        %v5671 = vsub.f32 %v458, %v5670
        %v5672 = vand.u32 %v5671, 4294901760
        %5673 = vmatpush1.msra.mxu0 %v5672
        %v5674 = vand.u32 %v463, 4294901760
        %v5675 = vsub.f32 %v463, %v5674
        %v5676 = vand.u32 %v5675, 4294901760
        %5677 = vmatprep.subr.mxu0 %v5676
        %v5678 = vand.u32 %v462, 4294901760
        %v5679 = vsub.f32 %v462, %v5678
        %v5680 = vand.u32 %v5679, 4294901760
        %5681 = vmatpush1.msra.mxu0 %v5680
        %v5682 = vand.u32 %v467, 4294901760
        %v5683 = vsub.f32 %v467, %v5682
        %v5684 = vand.u32 %v5683, 4294901760
        %5685 = vmatprep.subr.mxu0 %v5684
        %v5686 = vand.u32 %v466, 4294901760
        %v5687 = vsub.f32 %v466, %v5686
        %v5688 = vand.u32 %v5687, 4294901760
        %5689 = vmatpush1.msra.mxu0 %v5688
        %v5690 = vand.u32 %v207, 4294901760
        %5691 = vmatprep.mubr.f32.mxu0 %v5690
        %v5692 = vand.u32 %v206, 4294901760
        %5693 = vmatmul.mubr.f32.gmra.mrb[0].mxu0 %v5692
        %v5694 = vpop.f32.mrb[0].mxu0
        %v5695 = vadd.f32 %v5418, %v5694
        %v5696 = vpop.f32.mrb[0].mxu0
        %v5697 = vadd.f32 %v5420, %v5696
        %v5698 = vand.u32 %v211, 4294901760
        %5699 = vmatprep.mubr.f32.mxu0 %v5698
        %v5700 = vand.u32 %v210, 4294901760
        %5701 = vmatmul.mubr.f32.gmra.mrb[0].mxu0 %v5700
        %v5702 = vpop.f32.mrb[0].mxu0
        %v5703 = vadd.f32 %v5430, %v5702
        %v5704 = vpop.f32.mrb[0].mxu0
        %v5705 = vadd.f32 %v5432, %v5704
        %5706 = vdwg.mxu0
        %v5707 = vand.u32 %v343, 4294901760
        %5708 = vmatprep.subr.mxu0 %v5707
        %v5709 = vand.u32 %v342, 4294901760
        %5710 = vmatpush1.msra.mxu0 %v5709
        %v5711 = vand.u32 %v347, 4294901760
        %5712 = vmatprep.subr.mxu0 %v5711
        %v5713 = vand.u32 %v346, 4294901760
        %5714 = vmatpush1.msra.mxu0 %v5713
        %v5715 = vand.u32 %v351, 4294901760
        %5716 = vmatprep.subr.mxu0 %v5715
        %v5717 = vand.u32 %v350, 4294901760
        %5718 = vmatpush1.msra.mxu0 %v5717
        %v5719 = vand.u32 %v355, 4294901760
        %5720 = vmatprep.subr.mxu0 %v5719
        %v5721 = vand.u32 %v354, 4294901760
        %5722 = vmatpush1.msra.mxu0 %v5721
        %v5723 = vand.u32 %v359, 4294901760
        %5724 = vmatprep.subr.mxu0 %v5723
        %v5725 = vand.u32 %v358, 4294901760
        %5726 = vmatpush1.msra.mxu0 %v5725
        %v5727 = vand.u32 %v363, 4294901760
        %5728 = vmatprep.subr.mxu0 %v5727
        %v5729 = vand.u32 %v362, 4294901760
        %5730 = vmatpush1.msra.mxu0 %v5729
        %v5731 = vand.u32 %v367, 4294901760
        %5732 = vmatprep.subr.mxu0 %v5731
        %v5733 = vand.u32 %v366, 4294901760
        %5734 = vmatpush1.msra.mxu0 %v5733
        %v5735 = vand.u32 %v371, 4294901760
        %5736 = vmatprep.subr.mxu0 %v5735
        %v5737 = vand.u32 %v370, 4294901760
        %5738 = vmatpush1.msra.mxu0 %v5737
        %v5739 = vand.u32 %v375, 4294901760
        %5740 = vmatprep.subr.mxu0 %v5739
        %v5741 = vand.u32 %v374, 4294901760
        %5742 = vmatpush1.msra.mxu0 %v5741
        %v5743 = vand.u32 %v379, 4294901760
        %5744 = vmatprep.subr.mxu0 %v5743
        %v5745 = vand.u32 %v378, 4294901760
        %5746 = vmatpush1.msra.mxu0 %v5745
        %v5747 = vand.u32 %v383, 4294901760
        %5748 = vmatprep.subr.mxu0 %v5747
        %v5749 = vand.u32 %v382, 4294901760
        %5750 = vmatpush1.msra.mxu0 %v5749
        %v5751 = vand.u32 %v387, 4294901760
        %5752 = vmatprep.subr.mxu0 %v5751
        %v5753 = vand.u32 %v386, 4294901760
        %5754 = vmatpush1.msra.mxu0 %v5753
        %v5755 = vand.u32 %v391, 4294901760
        %5756 = vmatprep.subr.mxu0 %v5755
        %v5757 = vand.u32 %v390, 4294901760
        %5758 = vmatpush1.msra.mxu0 %v5757
        %v5759 = vand.u32 %v395, 4294901760
        %5760 = vmatprep.subr.mxu0 %v5759
        %v5761 = vand.u32 %v394, 4294901760
        %5762 = vmatpush1.msra.mxu0 %v5761
        %v5763 = vand.u32 %v399, 4294901760
        %5764 = vmatprep.subr.mxu0 %v5763
        %v5765 = vand.u32 %v398, 4294901760
        %5766 = vmatpush1.msra.mxu0 %v5765
        %v5767 = vand.u32 %v403, 4294901760
        %5768 = vmatprep.subr.mxu0 %v5767
        %v5769 = vand.u32 %v402, 4294901760
        %5770 = vmatpush1.msra.mxu0 %v5769
        %v5771 = vand.u32 %v407, 4294901760
        %5772 = vmatprep.subr.mxu0 %v5771
        %v5773 = vand.u32 %v406, 4294901760
        %5774 = vmatpush1.msra.mxu0 %v5773
        %v5775 = vand.u32 %v411, 4294901760
        %5776 = vmatprep.subr.mxu0 %v5775
        %v5777 = vand.u32 %v410, 4294901760
        %5778 = vmatpush1.msra.mxu0 %v5777
        %v5779 = vand.u32 %v415, 4294901760
        %5780 = vmatprep.subr.mxu0 %v5779
        %v5781 = vand.u32 %v414, 4294901760
        %5782 = vmatpush1.msra.mxu0 %v5781
        %v5783 = vand.u32 %v419, 4294901760
        %5784 = vmatprep.subr.mxu0 %v5783
        %v5785 = vand.u32 %v418, 4294901760
        %5786 = vmatpush1.msra.mxu0 %v5785
        %v5787 = vand.u32 %v423, 4294901760
        %5788 = vmatprep.subr.mxu0 %v5787
        %v5789 = vand.u32 %v422, 4294901760
        %5790 = vmatpush1.msra.mxu0 %v5789
        %v5791 = vand.u32 %v427, 4294901760
        %5792 = vmatprep.subr.mxu0 %v5791
        %v5793 = vand.u32 %v426, 4294901760
        %5794 = vmatpush1.msra.mxu0 %v5793
        %v5795 = vand.u32 %v431, 4294901760
        %5796 = vmatprep.subr.mxu0 %v5795
        %v5797 = vand.u32 %v430, 4294901760
        %5798 = vmatpush1.msra.mxu0 %v5797
        %v5799 = vand.u32 %v435, 4294901760
        %5800 = vmatprep.subr.mxu0 %v5799
        %v5801 = vand.u32 %v434, 4294901760
        %5802 = vmatpush1.msra.mxu0 %v5801
        %v5803 = vand.u32 %v439, 4294901760
        %5804 = vmatprep.subr.mxu0 %v5803
        %v5805 = vand.u32 %v438, 4294901760
        %5806 = vmatpush1.msra.mxu0 %v5805
        %v5807 = vand.u32 %v443, 4294901760
        %5808 = vmatprep.subr.mxu0 %v5807
        %v5809 = vand.u32 %v442, 4294901760
        %5810 = vmatpush1.msra.mxu0 %v5809
        %v5811 = vand.u32 %v447, 4294901760
        %5812 = vmatprep.subr.mxu0 %v5811
        %v5813 = vand.u32 %v446, 4294901760
        %5814 = vmatpush1.msra.mxu0 %v5813
        %v5815 = vand.u32 %v451, 4294901760
        %5816 = vmatprep.subr.mxu0 %v5815
        %v5817 = vand.u32 %v450, 4294901760
        %5818 = vmatpush1.msra.mxu0 %v5817
        %v5819 = vand.u32 %v455, 4294901760
        %5820 = vmatprep.subr.mxu0 %v5819
        %v5821 = vand.u32 %v454, 4294901760
        %5822 = vmatpush1.msra.mxu0 %v5821
        %v5823 = vand.u32 %v459, 4294901760
        %5824 = vmatprep.subr.mxu0 %v5823
        %v5825 = vand.u32 %v458, 4294901760
        %5826 = vmatpush1.msra.mxu0 %v5825
        %v5827 = vand.u32 %v463, 4294901760
        %5828 = vmatprep.subr.mxu0 %v5827
        %v5829 = vand.u32 %v462, 4294901760
        %5830 = vmatpush1.msra.mxu0 %v5829
        %v5831 = vand.u32 %v467, 4294901760
        %5832 = vmatprep.subr.mxu0 %v5831
        %v5833 = vand.u32 %v466, 4294901760
        %5834 = vmatpush1.msra.mxu0 %v5833
        %v5835 = vand.u32 %v207, 4294901760
        %5836 = vmatprep.mubr.f32.mxu0 %v5835
        %v5837 = vand.u32 %v206, 4294901760
        %5838 = vmatmul.mubr.f32.gmra.mrb[0].mxu0 %v5837
        %v5839 = vpop.f32.mrb[0].mxu0
        %v5840 = vadd.f32 %v5695, %v5839
        %v5841 = vpop.f32.mrb[0].mxu0
        %v5842 = vadd.f32 %v5697, %v5841
        %v5843 = vand.u32 %v211, 4294901760
        %5844 = vmatprep.mubr.f32.mxu0 %v5843
        %v5845 = vand.u32 %v210, 4294901760
        %5846 = vmatmul.mubr.f32.gmra.mrb[0].mxu0 %v5845
        %v5847 = vpop.f32.mrb[0].mxu0
        %v5848 = vadd.f32 %v5703, %v5847
        %v5849 = vpop.f32.mrb[0].mxu0
        %v5850 = vadd.f32 %v5705, %v5849
        %5851 = vdwg.mxu0
        %5852 = vst [vmem:[%s199] sm:$0xff] %v3148
        %5853 = vst [vmem:[%s199 + $0x8] sm:$0xff] %v3150
        %5854 = vst [vmem:[%s199 + $0x10] sm:$0xff] %v5840
        %5855 = vst [vmem:[%s199 + $0x18] sm:$0xff] %v5842
        %5856 = vst [vmem:[%s199 + $0x20] sm:$0xff] %v3156
        %5857 = vst [vmem:[%s199 + $0x28] sm:$0xff] %v3158
        %5858 = vst [vmem:[%s199 + $0x30] sm:$0xff] %v5848
        %5859 = vst [vmem:[%s199 + $0x38] sm:$0xff] %v5850
        %s5860 = sand.u32 %s94, 1
        %s5861 = scalar_lea.sflag [#allocation4], %s5860
        %s5862 = sand.u32 %s94, 1
        %s5863 = smul.addr %s5862, 64
        %s5864 = scalar_lea.vmem [#allocation7], %s5863
        // Predicated region
        $region37: #{tpu_custom_call.1} parent=27 // pred_check
          %p5865 = pneg %p104
        $region38: #{tpu_custom_call.1} parent=27 // pred_check_branch
          %5867 = sbr.rel (%p5865) target = $region40
        $region39: #{tpu_custom_call.1} parent=27 // pred_region
          %s5868 = smul.u32 2, %s24
          %s5869 = smul.u32 4, %s25
          %s5871 = ssub.s32 1024, 1024
          %5872 = vsyncadd %s5861, %s5871
          %s5873 = smul.addr %s5868, 8
          %s5874 = sadd.s32 %s5869, %s5873
          %s5875 = smul.addr %s5874, 128
          %s5876 = scalar_lea.hbm %s2, %s5875
          %s5877 = sshll.u32 %s5864, 4
          %s5878 = int_to_ptr.vmem [resolvable:$true] %s5877
          %5883 = dma.vmem_to_hbm [thread:$0]  %s5878, 1024, %s5876, %s5861, 512, 1024, 32
        $region40: #{tpu_custom_call.1} parent=27 // pred_fallthru
          _
      $region28: #{tpu_custom_call.1} parent=5 // pred_fallthru
        _
      %p5884 = scmp.le.s32.totalorder 2, %s15
      // Predicated region
      $region41: #{tpu_custom_call.1} parent=5 // pred_check
        %p5885 = pneg %p5884
      $region42: #{tpu_custom_call.1} parent=5 // pred_check_branch
        %5887 = sbr.rel (%p5885) target = $region44
      $region43: #{tpu_custom_call.1} parent=5 // pred_region
        %s5888 = ssub.s32 %s15, 2
        // Predicated region
        $region45: #{tpu_custom_call.1} parent=43 // pred_check
          %p5889 = pneg %p110
        $region46: #{tpu_custom_call.1} parent=43 // pred_check_branch
          %5891 = sbr.rel (%p5889) target = $region48
        $region47: #{tpu_custom_call.1} parent=43 // pred_region
          %s5892 = sand.u32 %s95, 1
          %s5893 = scalar_lea.sflag [#allocation4], %s5892
          %s5894 = sand.u32 %s95, 1
          %s5895 = smul.addr %s5894, 64
          %s5896 = scalar_lea.vmem [#allocation7], %s5895
          %5897 = dma.done %s5893, 1024
        $region48: #{tpu_custom_call.1} parent=43 // pred_fallthru
          _
      $region44: #{tpu_custom_call.1} parent=5 // pred_fallthru
        _
    $region6: #{tpu_custom_call.1} parent=1 // loop_footer
      %s19 = sadd.s32 1, %s15
    $region7: #{tpu_custom_call.1} parent=1 // loop_footer_branch
      %14 = sbr.rel target = $region3
    $region8: #{tpu_custom_call.1} parent=1 // loop_exit
      _
    %5898 = vsyncpa [#allocation3], 1
    %s5899 = scalar_lea.sflag [#allocation3], 1
    %5900 = vsyncpa %s5899, 1
    %5901 = vsyncpa [#allocation6], 1
    %s5902 = scalar_lea.sflag [#allocation6], 1
    %5903 = vsyncpa %s5902, 1
    %5904 = vsyncpa [#allocation4], 1
    %s5905 = scalar_lea.sflag [#allocation4], 1
    %5906 = vsyncpa %s5905, 1

</llo_original>
